<compile_context>
chip_gen: v5e
topology: v5e:2x2
jax: 0.10.0
libtpu: 0.0.40
codegen_flags: <defaults>
</compile_context>

<pallas_src>
import functools

import jax
import jax.numpy as jnp
import numpy as np
from jax.experimental import pallas as pl
from jax.experimental.pallas import tpu as pltpu

EPS = 1e-5


def _round_up(x, m):
    return (x + m - 1) // m * m


# ---------------------------------------------------------------------------
# Fused Pallas kernel: all TCN blocks + global average pool, time-tiled.
# ---------------------------------------------------------------------------
def _tcn_kernel(x_ref, s1_ref, t1_ref, s2_ref, t2_ref, *rest,
                num_layers, K, dils, proj_layers, PMAX, T, L, c_pad, bt):
    """One (batch tile, time tile) grid step of the full extractor.

    x_ref   : (bt, T, c_pad) bf16     current time tile, channels lane-padded
    s*/t*   : (num_layers, c_pad) f32 fused conv-bias + eval-BN scale/shift
    rest    : per layer [w1 (K,c_pad,c_pad) bf16, w2 (K,c_pad,c_pad) bf16,
              (wres (c_pad,c_pad) bf16, bres (1,c_pad) f32 for proj layers)],
              then out_ref (1, bt, c_pad) f32 (resident pooled accumulator),
              then scratch: shared work buffer (bt, PMAX+T, c_pad) bf16 and
              two per-layer causal history buffers (bt, pad_i, c_pad) bf16.
    """
    # ---- unpack variadic refs ----------------------------------------------
    idx = 0
    w_refs = []
    for i in range(num_layers):
        w1, w2 = rest[idx], rest[idx + 1]
        idx += 2
        if i in proj_layers:
            wres, bres = rest[idx], rest[idx + 1]
            idx += 2
        else:
            wres = bres = None
        w_refs.append((w1, w2, wres, bres))
    out_ref = rest[idx]
    work = rest[idx + 1]                       # (bt, PMAX + T, c_pad) bf16
    hists = rest[idx + 2:]                     # 2 per layer: input / h1 history

    t = pl.program_id(1)
    n_t = pl.num_programs(1)
    M = bt * T

    # Reset the carried causal state + pooled accumulator at sequence start
    # (guarded on the time axis, not program_id(0), so it is megacore-safe).
    @pl.when(t == 0)
    def _():
        for h in hists:
            h[...] = jnp.zeros_like(h)
        out_ref[...] = jnp.zeros_like(out_ref)

    def dilated_conv(pad_i, d, w_ref):
        # K per-tap (M, c_pad) @ (c_pad, c_pad) bf16 MXU matmuls, f32 accum.
        acc = None
        for j in range(K):
            s = PMAX - pad_i + j * d
            tap = work[:, s:s + T, :].reshape(M, c_pad)
            p = jnp.dot(tap, w_ref[j], preferred_element_type=jnp.float32)
            acc = p if acc is None else acc + p
        return acc

    cur = x_ref[...]                           # (bt, T, c_pad) bf16
    out_f32 = None
    for i in range(num_layers):
        d = dils[i]
        pad_i = (K - 1) * d
        w1, w2, wres, bres = w_refs[i]
        hist_in, hist_h1 = hists[2 * i], hists[2 * i + 1]
        s1 = s1_ref[i:i + 1, :]
        t1 = t1_ref[i:i + 1, :]
        s2 = s2_ref[i:i + 1, :]
        t2 = t2_ref[i:i + 1, :]

        # ---- conv1 (causal, dilated) + fused eval-BN + ReLU ----------------
        work[:, PMAX - pad_i:PMAX, :] = hist_in[...]     # history from prev tile
        work[:, PMAX:PMAX + T, :] = cur
        hist_in[...] = cur[:, T - pad_i:T, :]            # carry for next tile
        h1 = jnp.maximum(dilated_conv(pad_i, d, w1) * s1 + t1, 0.0)
        h1_b = h1.astype(jnp.bfloat16).reshape(bt, T, c_pad)

        # ---- conv2 (causal, dilated) + fused eval-BN + ReLU ----------------
        work[:, PMAX - pad_i:PMAX, :] = hist_h1[...]
        work[:, PMAX:PMAX + T, :] = h1_b
        hist_h1[...] = h1_b[:, T - pad_i:T, :]
        h2 = jnp.maximum(dilated_conv(pad_i, d, w2) * s2 + t2, 0.0)

        # ---- residual (1x1 projection only where Cin != Cout); add in f32 --
        if wres is not None:
            res = jnp.dot(cur.reshape(M, c_pad), wres[...],
                          preferred_element_type=jnp.float32) + bres[...]
        else:
            res = cur.reshape(M, c_pad).astype(jnp.float32)
        out_f32 = jnp.maximum(h2 + res, 0.0)             # (M, c_pad) f32
        cur = out_f32.astype(jnp.bfloat16).reshape(bt, T, c_pad)

    # AdaptiveAvgPool1d(1).squeeze(-1): accumulate masked partial time sums in
    # f32 on the resident output block; scale by 1/L at the last time tile.
    out3 = out_f32.reshape(bt, T, c_pad)
    if L % T != 0:
        valid = jnp.minimum(L - t * T, T)                # ragged last tile
        row = jax.lax.broadcasted_iota(jnp.int32, (bt, T, c_pad), 1)
        out3 = jnp.where(row < valid, out3, 0.0)
    out_ref[...] += jnp.sum(out3, axis=1)[None, :, :]

    @pl.when(t == n_t - 1)
    def _():
        out_ref[...] = out_ref[...] * (1.0 / L)


# ---------------------------------------------------------------------------
# Parameter packing: BN/bias folding, channel padding, bf16 weights
# ---------------------------------------------------------------------------
def _pack_params(params, *, K, c_pad):
    layers, S1, T1, S2, T2, proj_layers = [], [], [], [], [], []
    for i, p in enumerate(params):
        cin, cout = p["w1"].shape[1], p["w1"].shape[2]
        s1 = p["g1"] / jnp.sqrt(p["rv1"] + EPS)
        t1 = (p["b1"] - p["rm1"]) * s1 + p["be1"]
        s2 = p["g2"] / jnp.sqrt(p["rv2"] + EPS)
        t2 = (p["b2"] - p["rm2"]) * s2 + p["be2"]
        S1.append(jnp.pad(s1, (0, c_pad - cout)))
        T1.append(jnp.pad(t1, (0, c_pad - cout)))
        S2.append(jnp.pad(s2, (0, c_pad - cout)))
        T2.append(jnp.pad(t2, (0, c_pad - cout)))

        entry = dict(
            w1=jnp.pad(p["w1"], ((0, 0), (0, c_pad - cin), (0, c_pad - cout))
                       ).astype(jnp.bfloat16),
            w2=jnp.pad(p["w2"], ((0, 0), (0, c_pad - cout), (0, c_pad - cout))
                       ).astype(jnp.bfloat16))
        if p["is_proj"]:
            proj_layers.append(i)
            entry["wres"] = jnp.pad(p["wres_raw"],
                                    ((0, c_pad - cin), (0, c_pad - cout))
                                    ).astype(jnp.bfloat16)
            entry["bres"] = jnp.pad(p["bres_raw"], (0, c_pad - cout)
                                    ).reshape(1, c_pad)
        layers.append(entry)

    return dict(layers=layers,
                S1=jnp.stack(S1), T1=jnp.stack(T1),
                S2=jnp.stack(S2), T2=jnp.stack(T2),
                proj_layers=tuple(proj_layers))


# ---------------------------------------------------------------------------
# Wrapper: one pallas_call for the whole extractor
# ---------------------------------------------------------------------------
def tcn_feature_extractor(x, params, *, K=3, time_tile=None):
    """x: (B, L, input_dim) float32 -> (B, embed_dim) float32."""
    B, L, c_in = x.shape
    num_layers = len(params)
    c_out = params[-1]["w2"].shape[-1]
    c_pad = _round_up(max(c_in, c_out), 128)              # lane-dense channels
    dils = tuple(2 ** i for i in range(num_layers))
    PMAX = _round_up((K - 1) * dils[-1], 16)              # aligned halo region

    packed = _pack_params(params, K=K, c_pad=c_pad)
    proj_layers = packed["proj_layers"]

    # ---- batch tiling: keep the parallel grid axis >= 2 when possible ------
    if B >= 16:
        bt = 8
    elif B >= 2:
        bt = max(1, B // 2)
    else:
        bt = 1
    n_b = -(-B // bt)
    B_pad = n_b * bt

    # ---- time tiling (>= max causal halo, multiple of 16 for bf16 tiles) ---
    if time_tile is None:
        T = max(PMAX, min(512, _round_up(L, 16)))
    else:
        T = max(PMAX, time_tile)
    T = _round_up(T, 16)
    n_t = -(-L // T)
    L_pad = n_t * T

    # Single cheap pad + bf16 cast of the input (halves HBM->VMEM DMA bytes).
    x_wide = jnp.pad(x, ((0, B_pad - B), (0, L_pad - L), (0, c_pad - c_in))
                     ).astype(jnp.bfloat16)

    kernel = functools.partial(
        _tcn_kernel, num_layers=num_layers, K=K, dils=dils,
        proj_layers=proj_layers, PMAX=PMAX, T=T, L=L, c_pad=c_pad, bt=bt)

    vec_spec = pl.BlockSpec((num_layers, c_pad), lambda b, t: (0, 0))
    in_specs = [
        pl.BlockSpec((bt, T, c_pad), lambda b, t: (b, t, 0)),   # x tile
        vec_spec, vec_spec, vec_spec, vec_spec,                 # S1, T1, S2, T2
    ]
    args = [x_wide, packed["S1"], packed["T1"], packed["S2"], packed["T2"]]
    for i, entry in enumerate(packed["layers"]):
        in_specs.append(pl.BlockSpec((K, c_pad, c_pad), lambda b, t: (0, 0, 0)))
        args.append(entry["w1"])
        in_specs.append(pl.BlockSpec((K, c_pad, c_pad), lambda b, t: (0, 0, 0)))
        args.append(entry["w2"])
        if i in proj_layers:
            in_specs.append(pl.BlockSpec((c_pad, c_pad), lambda b, t: (0, 0)))
            args.append(entry["wres"])
            in_specs.append(pl.BlockSpec((1, c_pad), lambda b, t: (0, 0)))
            args.append(entry["bres"])

    scratch_shapes = [pltpu.VMEM((bt, PMAX + T, c_pad), jnp.bfloat16)]
    for d in dils:
        pad_i = (K - 1) * d
        scratch_shapes.append(pltpu.VMEM((bt, pad_i, c_pad), jnp.bfloat16))
        scratch_shapes.append(pltpu.VMEM((bt, pad_i, c_pad), jnp.bfloat16))

    # Scoped-VMEM budget from the actual footprint (double-buffered blocks +
    # persistent scratch + allowance for f32 temporaries), clamped to 64 MiB
    # (smallest physical VMEM across v5e/v6e/v7x).
    w_bytes = sum(int(a.size) * a.dtype.itemsize for a in args[1:])
    block_bytes = 2 * bt * T * c_pad * 2 + 2 * w_bytes + 2 * bt * c_pad * 4
    scratch_bytes = bt * (PMAX + T) * c_pad * 2 \
        + sum(2 * bt * (K - 1) * d * c_pad * 2 for d in dils)
    temp_bytes = 8 * bt * T * c_pad * 4
    vmem_limit = int(min(64 * 2 ** 20,
                         max(32 * 2 ** 20,
                             2 * (block_bytes + scratch_bytes + temp_bytes))))

    pooled = pl.pallas_call(
        kernel,
        out_shape=jax.ShapeDtypeStruct((n_b, bt, c_pad), jnp.float32),
        grid_spec=pltpu.PrefetchScalarGridSpec(
            num_scalar_prefetch=0,
            grid=(n_b, n_t),
            in_specs=in_specs,
            out_specs=pl.BlockSpec((1, bt, c_pad), lambda b, t: (b, 0, 0)),
            scratch_shapes=scratch_shapes,
        ),
        compiler_params=pltpu.CompilerParams(
            dimension_semantics=("parallel", "arbitrary"),
            vmem_limit_bytes=vmem_limit),
    )(*args)

    return pooled.reshape(B_pad, c_pad)[:B, :c_out]       # strip padding


# ---------------------------------------------------------------------------
# Deterministic parameter construction (synthetic, no checkpoint)
# ---------------------------------------------------------------------------
def init_params(key, input_dim, embed_dim, K, num_layers):
    params = []
    channels = [input_dim] + [embed_dim] * num_layers
    for i in range(num_layers):
        cin, cout = channels[i], channels[i + 1]
        ks = jax.random.split(jax.random.fold_in(key, i), 14)
        p = {
            "w1": 0.1 * jax.random.normal(ks[0], (K, cin, cout), jnp.float32),
            "b1": 0.1 * jax.random.normal(ks[1], (cout,), jnp.float32),
            "g1": 1.0 + 0.1 * jax.random.normal(ks[2], (cout,), jnp.float32),
            "be1": 0.1 * jax.random.normal(ks[3], (cout,), jnp.float32),
            "rm1": 0.1 * jax.random.normal(ks[4], (cout,), jnp.float32),
            "rv1": 1.0 + 0.1 * jnp.abs(jax.random.normal(ks[5], (cout,), jnp.float32)),
            "w2": 0.1 * jax.random.normal(ks[6], (K, cout, cout), jnp.float32),
            "b2": 0.1 * jax.random.normal(ks[7], (cout,), jnp.float32),
            "g2": 1.0 + 0.1 * jax.random.normal(ks[8], (cout,), jnp.float32),
            "be2": 0.1 * jax.random.normal(ks[9], (cout,), jnp.float32),
            "rm2": 0.1 * jax.random.normal(ks[10], (cout,), jnp.float32),
            "rv2": 1.0 + 0.1 * jnp.abs(jax.random.normal(ks[11], (cout,), jnp.float32)),
            "is_proj": cin != cout,
        }
        if p["is_proj"]:
            p["wres_raw"] = 0.1 * jax.random.normal(ks[12], (cin, cout), jnp.float32)
            p["bres_raw"] = 0.1 * jax.random.normal(ks[13], (cout,), jnp.float32)
        params.append(p)
    return params


# ---------------------------------------------------------------------------
# Pure-JAX reference replicating the PyTorch forward literally (f32)
# ---------------------------------------------------------------------------
def _ref_block(x_ncl, p, dilation, K):
    pad = (K - 1) * dilation

    def conv(inp, w_kio, bias):
        w = jnp.transpose(w_kio, (2, 1, 0))               # (Cout, Cin, K) torch layout
        y = jax.lax.conv_general_dilated(
            inp, w, window_strides=(1,), padding=[(pad, pad)],
            rhs_dilation=(dilation,), dimension_numbers=("NCH", "OIH", "NCH"))
        return y + bias[None, :, None]

    def bn(y, g, be, rm, rv):
        return (y - rm[None, :, None]) / jnp.sqrt(rv[None, :, None] + EPS) \
            * g[None, :, None] + be[None, :, None]

    out = jnp.maximum(bn(conv(x_ncl, p["w1"], p["b1"]),
                         p["g1"], p["be1"], p["rm1"], p["rv1"]), 0.0)
    out = jnp.maximum(bn(conv(out, p["w2"], p["b2"]),
                         p["g2"], p["be2"], p["rm2"], p["rv2"]), 0.0)
    if p["is_proj"]:
        res = jnp.einsum("bcl,cd->bdl", x_ncl, p["wres_raw"]) \
            + p["bres_raw"][None, :, None]
    else:
        res = x_ncl
    min_len = min(out.shape[2], res.shape[2])
    return jnp.maximum(out[:, :, :min_len] + res[:, :, :min_len], 0.0)


def ref_forward(x_blc, params, K):
    h = jnp.transpose(x_blc, (0, 2, 1))                    # x.permute(0, 2, 1)
    for i, p in enumerate(params):
        h = _ref_block(h, p, 2 ** i, K)
    return jnp.mean(h, axis=2)                             # AdaptiveAvgPool1d(1).squeeze


# ---------------------------------------------------------------------------
if __name__ == "__main__":
    B, L, INPUT_DIM = 2, 24, 8
    EMBED_DIM, K, NUM_LAYERS = 32, 3, 3

    key = jax.random.PRNGKey(0)
    kx, kp = jax.random.split(key)
    x = jax.random.normal(kx, (B, L, INPUT_DIM), jnp.float32)
    params = init_params(kp, INPUT_DIM, EMBED_DIM, K, NUM_LAYERS)

    # time_tile=16 -> 2 time tiles: exercises the causal carry between tiles
    # and the ragged-last-tile pooling mask at a small shape.
    out = jax.block_until_ready(
        tcn_feature_extractor(x, params, K=K, time_tile=16))
    assert out.shape == (B, EMBED_DIM), out.shape

    ref = ref_forward(x, params, K)
    # Kernel uses bf16 MXU operands and bf16 activation storage between layers
    # (f32 accumulation everywhere); tolerance widened accordingly.
    np.testing.assert_allclose(np.asarray(out), np.asarray(ref),
                               rtol=5e-2, atol=5e-2)
    print("KERNEL_OK")
</pallas_src>

<mosaic_0001>
module attributes {stable_mosaic.version = 11 : i64} {
  func.func @_tcn_kernel(%arg0: i32, %arg1: i32, %arg2: memref<1x16x128xbf16, #tpu.memory_space<vmem>>, %arg3: memref<3x128xf32, #tpu.memory_space<vmem>>, %arg4: memref<3x128xf32, #tpu.memory_space<vmem>>, %arg5: memref<3x128xf32, #tpu.memory_space<vmem>>, %arg6: memref<3x128xf32, #tpu.memory_space<vmem>>, %arg7: memref<3x128x128xbf16, #tpu.memory_space<vmem>>, %arg8: memref<3x128x128xbf16, #tpu.memory_space<vmem>>, %arg9: memref<128x128xbf16, #tpu.memory_space<vmem>>, %arg10: memref<1x128xf32, #tpu.memory_space<vmem>>, %arg11: memref<3x128x128xbf16, #tpu.memory_space<vmem>>, %arg12: memref<3x128x128xbf16, #tpu.memory_space<vmem>>, %arg13: memref<3x128x128xbf16, #tpu.memory_space<vmem>>, %arg14: memref<3x128x128xbf16, #tpu.memory_space<vmem>>, %arg15: memref<1x1x128xf32, #tpu.memory_space<vmem>>, %arg16: memref<1x32x128xbf16, #tpu.memory_space<vmem>>, %arg17: memref<1x2x128xbf16, #tpu.memory_space<vmem>>, %arg18: memref<1x2x128xbf16, #tpu.memory_space<vmem>>, %arg19: memref<1x4x128xbf16, #tpu.memory_space<vmem>>, %arg20: memref<1x4x128xbf16, #tpu.memory_space<vmem>>, %arg21: memref<1x8x128xbf16, #tpu.memory_space<vmem>>, %arg22: memref<1x8x128xbf16, #tpu.memory_space<vmem>>) attributes {dimension_semantics = [#tpu.dimension_semantics<parallel>, #tpu.dimension_semantics<arbitrary>], iteration_bounds = array<i64: 2, 2>, scalar_prefetch = 0 : i64, scratch_operands = 7 : i64, tpu.core_type = #tpu.core_type<tc>, window_params = [{transform_indices = @transform_0, window_bounds = array<i64: 1, 16, 128>}, {pipeline_mode = #tpu.pipeline_mode<synchronous>, transform_indices = @transform_1, window_bounds = array<i64: 3, 128>}, {pipeline_mode = #tpu.pipeline_mode<synchronous>, transform_indices = @transform_2, window_bounds = array<i64: 3, 128>}, {pipeline_mode = #tpu.pipeline_mode<synchronous>, transform_indices = @transform_3, window_bounds = array<i64: 3, 128>}, {pipeline_mode = #tpu.pipeline_mode<synchronous>, transform_indices = @transform_4, window_bounds = array<i64: 3, 128>}, {pipeline_mode = #tpu.pipeline_mode<synchronous>, transform_indices = @transform_5, window_bounds = array<i64: 3, 128, 128>}, {pipeline_mode = #tpu.pipeline_mode<synchronous>, transform_indices = @transform_6, window_bounds = array<i64: 3, 128, 128>}, {pipeline_mode = #tpu.pipeline_mode<synchronous>, transform_indices = @transform_7, window_bounds = array<i64: 128, 128>}, {pipeline_mode = #tpu.pipeline_mode<synchronous>, transform_indices = @transform_8, window_bounds = array<i64: 1, 128>}, {pipeline_mode = #tpu.pipeline_mode<synchronous>, transform_indices = @transform_9, window_bounds = array<i64: 3, 128, 128>}, {pipeline_mode = #tpu.pipeline_mode<synchronous>, transform_indices = @transform_10, window_bounds = array<i64: 3, 128, 128>}, {pipeline_mode = #tpu.pipeline_mode<synchronous>, transform_indices = @transform_11, window_bounds = array<i64: 3, 128, 128>}, {pipeline_mode = #tpu.pipeline_mode<synchronous>, transform_indices = @transform_12, window_bounds = array<i64: 3, 128, 128>}, {transform_indices = @transform_13, window_bounds = array<i64: 1, 1, 128>}]} {
    %c0_i32 = arith.constant 0 : i32
    %0 = arith.cmpi eq, %arg1, %c0_i32 : i32
    %1 = arith.extui %0 : i1 to i32
    %c0_i32_0 = arith.constant 0 : i32
    %2 = arith.cmpi ne, %1, %c0_i32_0 : i32
    scf.if %2 {
      %cst_241 = arith.constant 0.000000e+00 : bf16
      %230 = vector.broadcast %cst_241 : bf16 to vector<1x2x128xbf16>
      %c0_242 = arith.constant 0 : index
      %c0_243 = arith.constant 0 : index
      %c0_244 = arith.constant 0 : index
      %231 = vector.load %arg17[%c0_242, %c0_243, %c0_244] : memref<1x2x128xbf16, #tpu.memory_space<vmem>>, vector<1x2x128xbf16>
      tpu.vector_store %arg17[%c0_242, %c0_243, %c0_244], %230 {strides = array<i32>} : memref<1x2x128xbf16, #tpu.memory_space<vmem>>, vector<1x2x128xbf16>,
      %cst_245 = arith.constant 0.000000e+00 : bf16
      %232 = vector.broadcast %cst_245 : bf16 to vector<1x2x128xbf16>
      %c0_246 = arith.constant 0 : index
      %c0_247 = arith.constant 0 : index
      %c0_248 = arith.constant 0 : index
      %233 = vector.load %arg18[%c0_246, %c0_247, %c0_248] : memref<1x2x128xbf16, #tpu.memory_space<vmem>>, vector<1x2x128xbf16>
      tpu.vector_store %arg18[%c0_246, %c0_247, %c0_248], %232 {strides = array<i32>} : memref<1x2x128xbf16, #tpu.memory_space<vmem>>, vector<1x2x128xbf16>,
      %cst_249 = arith.constant 0.000000e+00 : bf16
      %234 = vector.broadcast %cst_249 : bf16 to vector<1x4x128xbf16>
      %c0_250 = arith.constant 0 : index
      %c0_251 = arith.constant 0 : index
      %c0_252 = arith.constant 0 : index
      %235 = vector.load %arg19[%c0_250, %c0_251, %c0_252] : memref<1x4x128xbf16, #tpu.memory_space<vmem>>, vector<1x4x128xbf16>
      tpu.vector_store %arg19[%c0_250, %c0_251, %c0_252], %234 {strides = array<i32>} : memref<1x4x128xbf16, #tpu.memory_space<vmem>>, vector<1x4x128xbf16>,
      %cst_253 = arith.constant 0.000000e+00 : bf16
      %236 = vector.broadcast %cst_253 : bf16 to vector<1x4x128xbf16>
      %c0_254 = arith.constant 0 : index
      %c0_255 = arith.constant 0 : index
      %c0_256 = arith.constant 0 : index
      %237 = vector.load %arg20[%c0_254, %c0_255, %c0_256] : memref<1x4x128xbf16, #tpu.memory_space<vmem>>, vector<1x4x128xbf16>
      tpu.vector_store %arg20[%c0_254, %c0_255, %c0_256], %236 {strides = array<i32>} : memref<1x4x128xbf16, #tpu.memory_space<vmem>>, vector<1x4x128xbf16>,
      %cst_257 = arith.constant 0.000000e+00 : bf16
      %238 = vector.broadcast %cst_257 : bf16 to vector<1x8x128xbf16>
      %c0_258 = arith.constant 0 : index
      %c0_259 = arith.constant 0 : index
      %c0_260 = arith.constant 0 : index
      %239 = vector.load %arg21[%c0_258, %c0_259, %c0_260] : memref<1x8x128xbf16, #tpu.memory_space<vmem>>, vector<1x8x128xbf16>
      tpu.vector_store %arg21[%c0_258, %c0_259, %c0_260], %238 {strides = array<i32>} : memref<1x8x128xbf16, #tpu.memory_space<vmem>>, vector<1x8x128xbf16>,
      %cst_261 = arith.constant 0.000000e+00 : bf16
      %240 = vector.broadcast %cst_261 : bf16 to vector<1x8x128xbf16>
      %c0_262 = arith.constant 0 : index
      %c0_263 = arith.constant 0 : index
      %c0_264 = arith.constant 0 : index
      %241 = vector.load %arg22[%c0_262, %c0_263, %c0_264] : memref<1x8x128xbf16, #tpu.memory_space<vmem>>, vector<1x8x128xbf16>
      tpu.vector_store %arg22[%c0_262, %c0_263, %c0_264], %240 {strides = array<i32>} : memref<1x8x128xbf16, #tpu.memory_space<vmem>>, vector<1x8x128xbf16>,
      %cst_265 = arith.constant 0.000000e+00 : f32
      %242 = vector.broadcast %cst_265 : f32 to vector<1x1x128xf32>
      %c0_266 = arith.constant 0 : index
      %c0_267 = arith.constant 0 : index
      %c0_268 = arith.constant 0 : index
      %243 = vector.load %arg15[%c0_266, %c0_267, %c0_268] : memref<1x1x128xf32, #tpu.memory_space<vmem>>, vector<1x1x128xf32>
      tpu.vector_store %arg15[%c0_266, %c0_267, %c0_268], %242 {strides = array<i32>} : memref<1x1x128xf32, #tpu.memory_space<vmem>>, vector<1x1x128xf32>,
    } else {
    }
    %c0 = arith.constant 0 : index
    %c0_1 = arith.constant 0 : index
    %c0_2 = arith.constant 0 : index
    %3 = vector.load %arg2[%c0, %c0_1, %c0_2] : memref<1x16x128xbf16, #tpu.memory_space<vmem>>, vector<1x16x128xbf16>
    %c0_3 = arith.constant 0 : index
    %c0_4 = arith.constant 0 : index
    %4 = vector.load %arg3[%c0_3, %c0_4] : memref<3x128xf32, #tpu.memory_space<vmem>>, vector<1x128xf32>
    %c0_5 = arith.constant 0 : index
    %c0_6 = arith.constant 0 : index
    %5 = vector.load %arg4[%c0_5, %c0_6] : memref<3x128xf32, #tpu.memory_space<vmem>>, vector<1x128xf32>
    %c0_7 = arith.constant 0 : index
    %c0_8 = arith.constant 0 : index
    %6 = vector.load %arg5[%c0_7, %c0_8] : memref<3x128xf32, #tpu.memory_space<vmem>>, vector<1x128xf32>
    %c0_9 = arith.constant 0 : index
    %c0_10 = arith.constant 0 : index
    %7 = vector.load %arg6[%c0_9, %c0_10] : memref<3x128xf32, #tpu.memory_space<vmem>>, vector<1x128xf32>
    %c0_11 = arith.constant 0 : index
    %c0_12 = arith.constant 0 : index
    %c0_13 = arith.constant 0 : index
    %8 = vector.load %arg17[%c0_11, %c0_12, %c0_13] : memref<1x2x128xbf16, #tpu.memory_space<vmem>>, vector<1x2x128xbf16>
    %c0_14 = arith.constant 0 : index
    %c14 = arith.constant 14 : index
    %c0_15 = arith.constant 0 : index
    %9 = vector.load %arg16[%c0_14, %c14, %c0_15] : memref<1x32x128xbf16, #tpu.memory_space<vmem>>, vector<1x2x128xbf16>
    tpu.vector_store %arg16[%c0_14, %c14, %c0_15], %8 {strides = array<i32>} : memref<1x32x128xbf16, #tpu.memory_space<vmem>>, vector<1x2x128xbf16>,
    %c0_16 = arith.constant 0 : index
    %c16 = arith.constant 16 : index
    %c0_17 = arith.constant 0 : index
    %10 = vector.load %arg16[%c0_16, %c16, %c0_17] : memref<1x32x128xbf16, #tpu.memory_space<vmem>>, vector<1x16x128xbf16>
    tpu.vector_store %arg16[%c0_16, %c16, %c0_17], %3 {strides = array<i32>} : memref<1x32x128xbf16, #tpu.memory_space<vmem>>, vector<1x16x128xbf16>,
    %11 = vector.extract_strided_slice %3 {offsets = [0, 14, 0], sizes = [1, 2, 128], strides = [1, 1, 1]} : vector<1x16x128xbf16> to vector<1x2x128xbf16>
    %c0_18 = arith.constant 0 : index
    %c0_19 = arith.constant 0 : index
    %c0_20 = arith.constant 0 : index
    %12 = vector.load %arg17[%c0_18, %c0_19, %c0_20] : memref<1x2x128xbf16, #tpu.memory_space<vmem>>, vector<1x2x128xbf16>
    tpu.vector_store %arg17[%c0_18, %c0_19, %c0_20], %11 {strides = array<i32>} : memref<1x2x128xbf16, #tpu.memory_space<vmem>>, vector<1x2x128xbf16>,
    %c0_21 = arith.constant 0 : index
    %c14_22 = arith.constant 14 : index
    %c0_23 = arith.constant 0 : index
    %13 = vector.load %arg16[%c0_21, %c14_22, %c0_23] : memref<1x32x128xbf16, #tpu.memory_space<vmem>>, vector<1x16x128xbf16>
    %14 = vector.shape_cast %13 : vector<1x16x128xbf16> to vector<16x128xbf16>
    %c0_24 = arith.constant 0 : index
    %c0_25 = arith.constant 0 : index
    %c0_26 = arith.constant 0 : index
    %15 = vector.load %arg7[%c0_24, %c0_25, %c0_26] : memref<3x128x128xbf16, #tpu.memory_space<vmem>>, vector<1x128x128xbf16>
    %16 = vector.shape_cast %15 : vector<1x128x128xbf16> to vector<128x128xbf16>
    %cst = arith.constant dense<0.000000e+00> : vector<16x128xf32>
    %17 = tpu.matmul %14, %16, %cst {dimension_numbers = #tpu.dot_dimension_numbers<[1], [0], [0], [1], [0, 0, 1, 1], [], []>} : vector<16x128xbf16>, vector<128x128xbf16>, vector<16x128xf32> -> vector<16x128xf32>
    %c0_27 = arith.constant 0 : index
    %c15 = arith.constant 15 : index
    %c0_28 = arith.constant 0 : index
    %18 = vector.load %arg16[%c0_27, %c15, %c0_28] : memref<1x32x128xbf16, #tpu.memory_space<vmem>>, vector<1x16x128xbf16>
    %19 = vector.shape_cast %18 : vector<1x16x128xbf16> to vector<16x128xbf16>
    %c1 = arith.constant 1 : index
    %c0_29 = arith.constant 0 : index
    %c0_30 = arith.constant 0 : index
    %20 = vector.load %arg7[%c1, %c0_29, %c0_30] : memref<3x128x128xbf16, #tpu.memory_space<vmem>>, vector<1x128x128xbf16>
    %21 = vector.shape_cast %20 : vector<1x128x128xbf16> to vector<128x128xbf16>
    %cst_31 = arith.constant dense<0.000000e+00> : vector<16x128xf32>
    %22 = tpu.matmul %19, %21, %cst_31 {dimension_numbers = #tpu.dot_dimension_numbers<[1], [0], [0], [1], [0, 0, 1, 1], [], []>} : vector<16x128xbf16>, vector<128x128xbf16>, vector<16x128xf32> -> vector<16x128xf32>
    %23 = arith.addf %17, %22 : vector<16x128xf32>
    %c0_32 = arith.constant 0 : index
    %c16_33 = arith.constant 16 : index
    %c0_34 = arith.constant 0 : index
    %24 = vector.load %arg16[%c0_32, %c16_33, %c0_34] : memref<1x32x128xbf16, #tpu.memory_space<vmem>>, vector<1x16x128xbf16>
    %25 = vector.shape_cast %24 : vector<1x16x128xbf16> to vector<16x128xbf16>
    %c2 = arith.constant 2 : index
    %c0_35 = arith.constant 0 : index
    %c0_36 = arith.constant 0 : index
    %26 = vector.load %arg7[%c2, %c0_35, %c0_36] : memref<3x128x128xbf16, #tpu.memory_space<vmem>>, vector<1x128x128xbf16>
    %27 = vector.shape_cast %26 : vector<1x128x128xbf16> to vector<128x128xbf16>
    %cst_37 = arith.constant dense<0.000000e+00> : vector<16x128xf32>
    %28 = tpu.matmul %25, %27, %cst_37 {dimension_numbers = #tpu.dot_dimension_numbers<[1], [0], [0], [1], [0, 0, 1, 1], [], []>} : vector<16x128xbf16>, vector<128x128xbf16>, vector<16x128xf32> -> vector<16x128xf32>
    %29 = arith.addf %23, %28 : vector<16x128xf32>
    %30 = vector.broadcast %4 : vector<1x128xf32> to vector<16x128xf32>
    %31 = arith.mulf %29, %30 : vector<16x128xf32>
    %32 = vector.broadcast %5 : vector<1x128xf32> to vector<16x128xf32>
    %33 = arith.addf %31, %32 : vector<16x128xf32>
    %cst_38 = arith.constant 0.000000e+00 : f32
    %34 = vector.broadcast %cst_38 : f32 to vector<16x128xf32>
    %35 = arith.maximumf %33, %34 : vector<16x128xf32>
    %36 = arith.truncf %35 : vector<16x128xf32> to vector<16x128xbf16>
    %37 = vector.shape_cast %36 : vector<16x128xbf16> to vector<1x16x128xbf16>
    %c0_39 = arith.constant 0 : index
    %c0_40 = arith.constant 0 : index
    %c0_41 = arith.constant 0 : index
    %38 = vector.load %arg18[%c0_39, %c0_40, %c0_41] : memref<1x2x128xbf16, #tpu.memory_space<vmem>>, vector<1x2x128xbf16>
    %c0_42 = arith.constant 0 : index
    %c14_43 = arith.constant 14 : index
    %c0_44 = arith.constant 0 : index
    %39 = vector.load %arg16[%c0_42, %c14_43, %c0_44] : memref<1x32x128xbf16, #tpu.memory_space<vmem>>, vector<1x2x128xbf16>
    tpu.vector_store %arg16[%c0_42, %c14_43, %c0_44], %38 {strides = array<i32>} : memref<1x32x128xbf16, #tpu.memory_space<vmem>>, vector<1x2x128xbf16>,
    %c0_45 = arith.constant 0 : index
    %c16_46 = arith.constant 16 : index
    %c0_47 = arith.constant 0 : index
    %40 = vector.load %arg16[%c0_45, %c16_46, %c0_47] : memref<1x32x128xbf16, #tpu.memory_space<vmem>>, vector<1x16x128xbf16>
    tpu.vector_store %arg16[%c0_45, %c16_46, %c0_47], %37 {strides = array<i32>} : memref<1x32x128xbf16, #tpu.memory_space<vmem>>, vector<1x16x128xbf16>,
    %41 = vector.extract_strided_slice %37 {offsets = [0, 14, 0], sizes = [1, 2, 128], strides = [1, 1, 1]} : vector<1x16x128xbf16> to vector<1x2x128xbf16>
    %c0_48 = arith.constant 0 : index
    %c0_49 = arith.constant 0 : index
    %c0_50 = arith.constant 0 : index
    %42 = vector.load %arg18[%c0_48, %c0_49, %c0_50] : memref<1x2x128xbf16, #tpu.memory_space<vmem>>, vector<1x2x128xbf16>
    tpu.vector_store %arg18[%c0_48, %c0_49, %c0_50], %41 {strides = array<i32>} : memref<1x2x128xbf16, #tpu.memory_space<vmem>>, vector<1x2x128xbf16>,
    %c0_51 = arith.constant 0 : index
    %c14_52 = arith.constant 14 : index
    %c0_53 = arith.constant 0 : index
    %43 = vector.load %arg16[%c0_51, %c14_52, %c0_53] : memref<1x32x128xbf16, #tpu.memory_space<vmem>>, vector<1x16x128xbf16>
    %44 = vector.shape_cast %43 : vector<1x16x128xbf16> to vector<16x128xbf16>
    %c0_54 = arith.constant 0 : index
    %c0_55 = arith.constant 0 : index
    %c0_56 = arith.constant 0 : index
    %45 = vector.load %arg8[%c0_54, %c0_55, %c0_56] : memref<3x128x128xbf16, #tpu.memory_space<vmem>>, vector<1x128x128xbf16>
    %46 = vector.shape_cast %45 : vector<1x128x128xbf16> to vector<128x128xbf16>
    %cst_57 = arith.constant dense<0.000000e+00> : vector<16x128xf32>
    %47 = tpu.matmul %44, %46, %cst_57 {dimension_numbers = #tpu.dot_dimension_numbers<[1], [0], [0], [1], [0, 0, 1, 1], [], []>} : vector<16x128xbf16>, vector<128x128xbf16>, vector<16x128xf32> -> vector<16x128xf32>
    %c0_58 = arith.constant 0 : index
    %c15_59 = arith.constant 15 : index
    %c0_60 = arith.constant 0 : index
    %48 = vector.load %arg16[%c0_58, %c15_59, %c0_60] : memref<1x32x128xbf16, #tpu.memory_space<vmem>>, vector<1x16x128xbf16>
    %49 = vector.shape_cast %48 : vector<1x16x128xbf16> to vector<16x128xbf16>
    %c1_61 = arith.constant 1 : index
    %c0_62 = arith.constant 0 : index
    %c0_63 = arith.constant 0 : index
    %50 = vector.load %arg8[%c1_61, %c0_62, %c0_63] : memref<3x128x128xbf16, #tpu.memory_space<vmem>>, vector<1x128x128xbf16>
    %51 = vector.shape_cast %50 : vector<1x128x128xbf16> to vector<128x128xbf16>
    %cst_64 = arith.constant dense<0.000000e+00> : vector<16x128xf32>
    %52 = tpu.matmul %49, %51, %cst_64 {dimension_numbers = #tpu.dot_dimension_numbers<[1], [0], [0], [1], [0, 0, 1, 1], [], []>} : vector<16x128xbf16>, vector<128x128xbf16>, vector<16x128xf32> -> vector<16x128xf32>
    %53 = arith.addf %47, %52 : vector<16x128xf32>
    %c0_65 = arith.constant 0 : index
    %c16_66 = arith.constant 16 : index
    %c0_67 = arith.constant 0 : index
    %54 = vector.load %arg16[%c0_65, %c16_66, %c0_67] : memref<1x32x128xbf16, #tpu.memory_space<vmem>>, vector<1x16x128xbf16>
    %55 = vector.shape_cast %54 : vector<1x16x128xbf16> to vector<16x128xbf16>
    %c2_68 = arith.constant 2 : index
    %c0_69 = arith.constant 0 : index
    %c0_70 = arith.constant 0 : index
    %56 = vector.load %arg8[%c2_68, %c0_69, %c0_70] : memref<3x128x128xbf16, #tpu.memory_space<vmem>>, vector<1x128x128xbf16>
    %57 = vector.shape_cast %56 : vector<1x128x128xbf16> to vector<128x128xbf16>
    %cst_71 = arith.constant dense<0.000000e+00> : vector<16x128xf32>
    %58 = tpu.matmul %55, %57, %cst_71 {dimension_numbers = #tpu.dot_dimension_numbers<[1], [0], [0], [1], [0, 0, 1, 1], [], []>} : vector<16x128xbf16>, vector<128x128xbf16>, vector<16x128xf32> -> vector<16x128xf32>
    %59 = arith.addf %53, %58 : vector<16x128xf32>
    %60 = vector.broadcast %6 : vector<1x128xf32> to vector<16x128xf32>
    %61 = arith.mulf %59, %60 : vector<16x128xf32>
    %62 = vector.broadcast %7 : vector<1x128xf32> to vector<16x128xf32>
    %63 = arith.addf %61, %62 : vector<16x128xf32>
    %cst_72 = arith.constant 0.000000e+00 : f32
    %64 = vector.broadcast %cst_72 : f32 to vector<16x128xf32>
    %65 = arith.maximumf %63, %64 : vector<16x128xf32>
    %66 = vector.shape_cast %3 : vector<1x16x128xbf16> to vector<16x128xbf16>
    %c0_73 = arith.constant 0 : index
    %c0_74 = arith.constant 0 : index
    %67 = vector.load %arg9[%c0_73, %c0_74] : memref<128x128xbf16, #tpu.memory_space<vmem>>, vector<128x128xbf16>
    %cst_75 = arith.constant dense<0.000000e+00> : vector<16x128xf32>
    %68 = tpu.matmul %66, %67, %cst_75 {dimension_numbers = #tpu.dot_dimension_numbers<[1], [0], [0], [1], [0, 0, 1, 1], [], []>} : vector<16x128xbf16>, vector<128x128xbf16>, vector<16x128xf32> -> vector<16x128xf32>
    %c0_76 = arith.constant 0 : index
    %c0_77 = arith.constant 0 : index
    %69 = vector.load %arg10[%c0_76, %c0_77] : memref<1x128xf32, #tpu.memory_space<vmem>>, vector<1x128xf32>
    %70 = vector.broadcast %69 : vector<1x128xf32> to vector<16x128xf32>
    %71 = arith.addf %68, %70 : vector<16x128xf32>
    %72 = arith.addf %65, %71 : vector<16x128xf32>
    %cst_78 = arith.constant 0.000000e+00 : f32
    %73 = vector.broadcast %cst_78 : f32 to vector<16x128xf32>
    %74 = arith.maximumf %72, %73 : vector<16x128xf32>
    %75 = arith.truncf %74 : vector<16x128xf32> to vector<16x128xbf16>
    %76 = vector.shape_cast %75 : vector<16x128xbf16> to vector<1x16x128xbf16>
    %c1_79 = arith.constant 1 : index
    %c0_80 = arith.constant 0 : index
    %77 = vector.load %arg3[%c1_79, %c0_80] : memref<3x128xf32, #tpu.memory_space<vmem>>, vector<1x128xf32>
    %c1_81 = arith.constant 1 : index
    %c0_82 = arith.constant 0 : index
    %78 = vector.load %arg4[%c1_81, %c0_82] : memref<3x128xf32, #tpu.memory_space<vmem>>, vector<1x128xf32>
    %c1_83 = arith.constant 1 : index
    %c0_84 = arith.constant 0 : index
    %79 = vector.load %arg5[%c1_83, %c0_84] : memref<3x128xf32, #tpu.memory_space<vmem>>, vector<1x128xf32>
    %c1_85 = arith.constant 1 : index
    %c0_86 = arith.constant 0 : index
    %80 = vector.load %arg6[%c1_85, %c0_86] : memref<3x128xf32, #tpu.memory_space<vmem>>, vector<1x128xf32>
    %c0_87 = arith.constant 0 : index
    %c0_88 = arith.constant 0 : index
    %c0_89 = arith.constant 0 : index
    %81 = vector.load %arg19[%c0_87, %c0_88, %c0_89] : memref<1x4x128xbf16, #tpu.memory_space<vmem>>, vector<1x4x128xbf16>
    %c0_90 = arith.constant 0 : index
    %c12 = arith.constant 12 : index
    %c0_91 = arith.constant 0 : index
    %82 = vector.load %arg16[%c0_90, %c12, %c0_91] : memref<1x32x128xbf16, #tpu.memory_space<vmem>>, vector<1x4x128xbf16>
    tpu.vector_store %arg16[%c0_90, %c12, %c0_91], %81 {strides = array<i32>} : memref<1x32x128xbf16, #tpu.memory_space<vmem>>, vector<1x4x128xbf16>,
    %c0_92 = arith.constant 0 : index
    %c16_93 = arith.constant 16 : index
    %c0_94 = arith.constant 0 : index
    %83 = vector.load %arg16[%c0_92, %c16_93, %c0_94] : memref<1x32x128xbf16, #tpu.memory_space<vmem>>, vector<1x16x128xbf16>
    tpu.vector_store %arg16[%c0_92, %c16_93, %c0_94], %76 {strides = array<i32>} : memref<1x32x128xbf16, #tpu.memory_space<vmem>>, vector<1x16x128xbf16>,
    %84 = vector.extract_strided_slice %76 {offsets = [0, 12, 0], sizes = [1, 4, 128], strides = [1, 1, 1]} : vector<1x16x128xbf16> to vector<1x4x128xbf16>
    %c0_95 = arith.constant 0 : index
    %c0_96 = arith.constant 0 : index
    %c0_97 = arith.constant 0 : index
    %85 = vector.load %arg19[%c0_95, %c0_96, %c0_97] : memref<1x4x128xbf16, #tpu.memory_space<vmem>>, vector<1x4x128xbf16>
    tpu.vector_store %arg19[%c0_95, %c0_96, %c0_97], %84 {strides = array<i32>} : memref<1x4x128xbf16, #tpu.memory_space<vmem>>, vector<1x4x128xbf16>,
    %c0_98 = arith.constant 0 : index
    %c12_99 = arith.constant 12 : index
    %c0_100 = arith.constant 0 : index
    %86 = vector.load %arg16[%c0_98, %c12_99, %c0_100] : memref<1x32x128xbf16, #tpu.memory_space<vmem>>, vector<1x16x128xbf16>
    %87 = vector.shape_cast %86 : vector<1x16x128xbf16> to vector<16x128xbf16>
    %c0_101 = arith.constant 0 : index
    %c0_102 = arith.constant 0 : index
    %c0_103 = arith.constant 0 : index
    %88 = vector.load %arg11[%c0_101, %c0_102, %c0_103] : memref<3x128x128xbf16, #tpu.memory_space<vmem>>, vector<1x128x128xbf16>
    %89 = vector.shape_cast %88 : vector<1x128x128xbf16> to vector<128x128xbf16>
    %cst_104 = arith.constant dense<0.000000e+00> : vector<16x128xf32>
    %90 = tpu.matmul %87, %89, %cst_104 {dimension_numbers = #tpu.dot_dimension_numbers<[1], [0], [0], [1], [0, 0, 1, 1], [], []>} : vector<16x128xbf16>, vector<128x128xbf16>, vector<16x128xf32> -> vector<16x128xf32>
    %c0_105 = arith.constant 0 : index
    %c14_106 = arith.constant 14 : index
    %c0_107 = arith.constant 0 : index
    %91 = vector.load %arg16[%c0_105, %c14_106, %c0_107] : memref<1x32x128xbf16, #tpu.memory_space<vmem>>, vector<1x16x128xbf16>
    %92 = vector.shape_cast %91 : vector<1x16x128xbf16> to vector<16x128xbf16>
    %c1_108 = arith.constant 1 : index
    %c0_109 = arith.constant 0 : index
    %c0_110 = arith.constant 0 : index
    %93 = vector.load %arg11[%c1_108, %c0_109, %c0_110] : memref<3x128x128xbf16, #tpu.memory_space<vmem>>, vector<1x128x128xbf16>
    %94 = vector.shape_cast %93 : vector<1x128x128xbf16> to vector<128x128xbf16>
    %cst_111 = arith.constant dense<0.000000e+00> : vector<16x128xf32>
    %95 = tpu.matmul %92, %94, %cst_111 {dimension_numbers = #tpu.dot_dimension_numbers<[1], [0], [0], [1], [0, 0, 1, 1], [], []>} : vector<16x128xbf16>, vector<128x128xbf16>, vector<16x128xf32> -> vector<16x128xf32>
    %96 = arith.addf %90, %95 : vector<16x128xf32>
    %c0_112 = arith.constant 0 : index
    %c16_113 = arith.constant 16 : index
    %c0_114 = arith.constant 0 : index
    %97 = vector.load %arg16[%c0_112, %c16_113, %c0_114] : memref<1x32x128xbf16, #tpu.memory_space<vmem>>, vector<1x16x128xbf16>
    %98 = vector.shape_cast %97 : vector<1x16x128xbf16> to vector<16x128xbf16>
    %c2_115 = arith.constant 2 : index
    %c0_116 = arith.constant 0 : index
    %c0_117 = arith.constant 0 : index
    %99 = vector.load %arg11[%c2_115, %c0_116, %c0_117] : memref<3x128x128xbf16, #tpu.memory_space<vmem>>, vector<1x128x128xbf16>
    %100 = vector.shape_cast %99 : vector<1x128x128xbf16> to vector<128x128xbf16>
    %cst_118 = arith.constant dense<0.000000e+00> : vector<16x128xf32>
    %101 = tpu.matmul %98, %100, %cst_118 {dimension_numbers = #tpu.dot_dimension_numbers<[1], [0], [0], [1], [0, 0, 1, 1], [], []>} : vector<16x128xbf16>, vector<128x128xbf16>, vector<16x128xf32> -> vector<16x128xf32>
    %102 = arith.addf %96, %101 : vector<16x128xf32>
    %103 = vector.broadcast %77 : vector<1x128xf32> to vector<16x128xf32>
    %104 = arith.mulf %102, %103 : vector<16x128xf32>
    %105 = vector.broadcast %78 : vector<1x128xf32> to vector<16x128xf32>
    %106 = arith.addf %104, %105 : vector<16x128xf32>
    %cst_119 = arith.constant 0.000000e+00 : f32
    %107 = vector.broadcast %cst_119 : f32 to vector<16x128xf32>
    %108 = arith.maximumf %106, %107 : vector<16x128xf32>
    %109 = arith.truncf %108 : vector<16x128xf32> to vector<16x128xbf16>
    %110 = vector.shape_cast %109 : vector<16x128xbf16> to vector<1x16x128xbf16>
    %c0_120 = arith.constant 0 : index
    %c0_121 = arith.constant 0 : index
    %c0_122 = arith.constant 0 : index
    %111 = vector.load %arg20[%c0_120, %c0_121, %c0_122] : memref<1x4x128xbf16, #tpu.memory_space<vmem>>, vector<1x4x128xbf16>
    %c0_123 = arith.constant 0 : index
    %c12_124 = arith.constant 12 : index
    %c0_125 = arith.constant 0 : index
    %112 = vector.load %arg16[%c0_123, %c12_124, %c0_125] : memref<1x32x128xbf16, #tpu.memory_space<vmem>>, vector<1x4x128xbf16>
    tpu.vector_store %arg16[%c0_123, %c12_124, %c0_125], %111 {strides = array<i32>} : memref<1x32x128xbf16, #tpu.memory_space<vmem>>, vector<1x4x128xbf16>,
    %c0_126 = arith.constant 0 : index
    %c16_127 = arith.constant 16 : index
    %c0_128 = arith.constant 0 : index
    %113 = vector.load %arg16[%c0_126, %c16_127, %c0_128] : memref<1x32x128xbf16, #tpu.memory_space<vmem>>, vector<1x16x128xbf16>
    tpu.vector_store %arg16[%c0_126, %c16_127, %c0_128], %110 {strides = array<i32>} : memref<1x32x128xbf16, #tpu.memory_space<vmem>>, vector<1x16x128xbf16>,
    %114 = vector.extract_strided_slice %110 {offsets = [0, 12, 0], sizes = [1, 4, 128], strides = [1, 1, 1]} : vector<1x16x128xbf16> to vector<1x4x128xbf16>
    %c0_129 = arith.constant 0 : index
    %c0_130 = arith.constant 0 : index
    %c0_131 = arith.constant 0 : index
    %115 = vector.load %arg20[%c0_129, %c0_130, %c0_131] : memref<1x4x128xbf16, #tpu.memory_space<vmem>>, vector<1x4x128xbf16>
    tpu.vector_store %arg20[%c0_129, %c0_130, %c0_131], %114 {strides = array<i32>} : memref<1x4x128xbf16, #tpu.memory_space<vmem>>, vector<1x4x128xbf16>,
    %c0_132 = arith.constant 0 : index
    %c12_133 = arith.constant 12 : index
    %c0_134 = arith.constant 0 : index
    %116 = vector.load %arg16[%c0_132, %c12_133, %c0_134] : memref<1x32x128xbf16, #tpu.memory_space<vmem>>, vector<1x16x128xbf16>
    %117 = vector.shape_cast %116 : vector<1x16x128xbf16> to vector<16x128xbf16>
    %c0_135 = arith.constant 0 : index
    %c0_136 = arith.constant 0 : index
    %c0_137 = arith.constant 0 : index
    %118 = vector.load %arg12[%c0_135, %c0_136, %c0_137] : memref<3x128x128xbf16, #tpu.memory_space<vmem>>, vector<1x128x128xbf16>
    %119 = vector.shape_cast %118 : vector<1x128x128xbf16> to vector<128x128xbf16>
    %cst_138 = arith.constant dense<0.000000e+00> : vector<16x128xf32>
    %120 = tpu.matmul %117, %119, %cst_138 {dimension_numbers = #tpu.dot_dimension_numbers<[1], [0], [0], [1], [0, 0, 1, 1], [], []>} : vector<16x128xbf16>, vector<128x128xbf16>, vector<16x128xf32> -> vector<16x128xf32>
    %c0_139 = arith.constant 0 : index
    %c14_140 = arith.constant 14 : index
    %c0_141 = arith.constant 0 : index
    %121 = vector.load %arg16[%c0_139, %c14_140, %c0_141] : memref<1x32x128xbf16, #tpu.memory_space<vmem>>, vector<1x16x128xbf16>
    %122 = vector.shape_cast %121 : vector<1x16x128xbf16> to vector<16x128xbf16>
    %c1_142 = arith.constant 1 : index
    %c0_143 = arith.constant 0 : index
    %c0_144 = arith.constant 0 : index
    %123 = vector.load %arg12[%c1_142, %c0_143, %c0_144] : memref<3x128x128xbf16, #tpu.memory_space<vmem>>, vector<1x128x128xbf16>
    %124 = vector.shape_cast %123 : vector<1x128x128xbf16> to vector<128x128xbf16>
    %cst_145 = arith.constant dense<0.000000e+00> : vector<16x128xf32>
    %125 = tpu.matmul %122, %124, %cst_145 {dimension_numbers = #tpu.dot_dimension_numbers<[1], [0], [0], [1], [0, 0, 1, 1], [], []>} : vector<16x128xbf16>, vector<128x128xbf16>, vector<16x128xf32> -> vector<16x128xf32>
    %126 = arith.addf %120, %125 : vector<16x128xf32>
    %c0_146 = arith.constant 0 : index
    %c16_147 = arith.constant 16 : index
    %c0_148 = arith.constant 0 : index
    %127 = vector.load %arg16[%c0_146, %c16_147, %c0_148] : memref<1x32x128xbf16, #tpu.memory_space<vmem>>, vector<1x16x128xbf16>
    %128 = vector.shape_cast %127 : vector<1x16x128xbf16> to vector<16x128xbf16>
    %c2_149 = arith.constant 2 : index
    %c0_150 = arith.constant 0 : index
    %c0_151 = arith.constant 0 : index
    %129 = vector.load %arg12[%c2_149, %c0_150, %c0_151] : memref<3x128x128xbf16, #tpu.memory_space<vmem>>, vector<1x128x128xbf16>
    %130 = vector.shape_cast %129 : vector<1x128x128xbf16> to vector<128x128xbf16>
    %cst_152 = arith.constant dense<0.000000e+00> : vector<16x128xf32>
    %131 = tpu.matmul %128, %130, %cst_152 {dimension_numbers = #tpu.dot_dimension_numbers<[1], [0], [0], [1], [0, 0, 1, 1], [], []>} : vector<16x128xbf16>, vector<128x128xbf16>, vector<16x128xf32> -> vector<16x128xf32>
    %132 = arith.addf %126, %131 : vector<16x128xf32>
    %133 = vector.broadcast %79 : vector<1x128xf32> to vector<16x128xf32>
    %134 = arith.mulf %132, %133 : vector<16x128xf32>
    %135 = vector.broadcast %80 : vector<1x128xf32> to vector<16x128xf32>
    %136 = arith.addf %134, %135 : vector<16x128xf32>
    %cst_153 = arith.constant 0.000000e+00 : f32
    %137 = vector.broadcast %cst_153 : f32 to vector<16x128xf32>
    %138 = arith.maximumf %136, %137 : vector<16x128xf32>
    %139 = vector.shape_cast %76 : vector<1x16x128xbf16> to vector<16x128xbf16>
    %140 = arith.extf %139 : vector<16x128xbf16> to vector<16x128xf32>
    %141 = arith.addf %138, %140 : vector<16x128xf32>
    %cst_154 = arith.constant 0.000000e+00 : f32
    %142 = vector.broadcast %cst_154 : f32 to vector<16x128xf32>
    %143 = arith.maximumf %141, %142 : vector<16x128xf32>
    %144 = arith.truncf %143 : vector<16x128xf32> to vector<16x128xbf16>
    %145 = vector.shape_cast %144 : vector<16x128xbf16> to vector<1x16x128xbf16>
    %c2_155 = arith.constant 2 : index
    %c0_156 = arith.constant 0 : index
    %146 = vector.load %arg3[%c2_155, %c0_156] : memref<3x128xf32, #tpu.memory_space<vmem>>, vector<1x128xf32>
    %c2_157 = arith.constant 2 : index
    %c0_158 = arith.constant 0 : index
    %147 = vector.load %arg4[%c2_157, %c0_158] : memref<3x128xf32, #tpu.memory_space<vmem>>, vector<1x128xf32>
    %c2_159 = arith.constant 2 : index
    %c0_160 = arith.constant 0 : index
    %148 = vector.load %arg5[%c2_159, %c0_160] : memref<3x128xf32, #tpu.memory_space<vmem>>, vector<1x128xf32>
    %c2_161 = arith.constant 2 : index
    %c0_162 = arith.constant 0 : index
    %149 = vector.load %arg6[%c2_161, %c0_162] : memref<3x128xf32, #tpu.memory_space<vmem>>, vector<1x128xf32>
    %c0_163 = arith.constant 0 : index
    %c0_164 = arith.constant 0 : index
    %c0_165 = arith.constant 0 : index
    %150 = vector.load %arg21[%c0_163, %c0_164, %c0_165] : memref<1x8x128xbf16, #tpu.memory_space<vmem>>, vector<1x8x128xbf16>
    %c0_166 = arith.constant 0 : index
    %c8 = arith.constant 8 : index
    %c0_167 = arith.constant 0 : index
    %151 = vector.load %arg16[%c0_166, %c8, %c0_167] : memref<1x32x128xbf16, #tpu.memory_space<vmem>>, vector<1x8x128xbf16>
    tpu.vector_store %arg16[%c0_166, %c8, %c0_167], %150 {strides = array<i32>} : memref<1x32x128xbf16, #tpu.memory_space<vmem>>, vector<1x8x128xbf16>,
    %c0_168 = arith.constant 0 : index
    %c16_169 = arith.constant 16 : index
    %c0_170 = arith.constant 0 : index
    %152 = vector.load %arg16[%c0_168, %c16_169, %c0_170] : memref<1x32x128xbf16, #tpu.memory_space<vmem>>, vector<1x16x128xbf16>
    tpu.vector_store %arg16[%c0_168, %c16_169, %c0_170], %145 {strides = array<i32>} : memref<1x32x128xbf16, #tpu.memory_space<vmem>>, vector<1x16x128xbf16>,
    %153 = vector.extract_strided_slice %145 {offsets = [0, 8, 0], sizes = [1, 8, 128], strides = [1, 1, 1]} : vector<1x16x128xbf16> to vector<1x8x128xbf16>
    %c0_171 = arith.constant 0 : index
    %c0_172 = arith.constant 0 : index
    %c0_173 = arith.constant 0 : index
    %154 = vector.load %arg21[%c0_171, %c0_172, %c0_173] : memref<1x8x128xbf16, #tpu.memory_space<vmem>>, vector<1x8x128xbf16>
    tpu.vector_store %arg21[%c0_171, %c0_172, %c0_173], %153 {strides = array<i32>} : memref<1x8x128xbf16, #tpu.memory_space<vmem>>, vector<1x8x128xbf16>,
    %c0_174 = arith.constant 0 : index
    %c8_175 = arith.constant 8 : index
    %c0_176 = arith.constant 0 : index
    %155 = vector.load %arg16[%c0_174, %c8_175, %c0_176] : memref<1x32x128xbf16, #tpu.memory_space<vmem>>, vector<1x16x128xbf16>
    %156 = vector.shape_cast %155 : vector<1x16x128xbf16> to vector<16x128xbf16>
    %c0_177 = arith.constant 0 : index
    %c0_178 = arith.constant 0 : index
    %c0_179 = arith.constant 0 : index
    %157 = vector.load %arg13[%c0_177, %c0_178, %c0_179] : memref<3x128x128xbf16, #tpu.memory_space<vmem>>, vector<1x128x128xbf16>
    %158 = vector.shape_cast %157 : vector<1x128x128xbf16> to vector<128x128xbf16>
    %cst_180 = arith.constant dense<0.000000e+00> : vector<16x128xf32>
    %159 = tpu.matmul %156, %158, %cst_180 {dimension_numbers = #tpu.dot_dimension_numbers<[1], [0], [0], [1], [0, 0, 1, 1], [], []>} : vector<16x128xbf16>, vector<128x128xbf16>, vector<16x128xf32> -> vector<16x128xf32>
    %c0_181 = arith.constant 0 : index
    %c12_182 = arith.constant 12 : index
    %c0_183 = arith.constant 0 : index
    %160 = vector.load %arg16[%c0_181, %c12_182, %c0_183] : memref<1x32x128xbf16, #tpu.memory_space<vmem>>, vector<1x16x128xbf16>
    %161 = vector.shape_cast %160 : vector<1x16x128xbf16> to vector<16x128xbf16>
    %c1_184 = arith.constant 1 : index
    %c0_185 = arith.constant 0 : index
    %c0_186 = arith.constant 0 : index
    %162 = vector.load %arg13[%c1_184, %c0_185, %c0_186] : memref<3x128x128xbf16, #tpu.memory_space<vmem>>, vector<1x128x128xbf16>
    %163 = vector.shape_cast %162 : vector<1x128x128xbf16> to vector<128x128xbf16>
    %cst_187 = arith.constant dense<0.000000e+00> : vector<16x128xf32>
    %164 = tpu.matmul %161, %163, %cst_187 {dimension_numbers = #tpu.dot_dimension_numbers<[1], [0], [0], [1], [0, 0, 1, 1], [], []>} : vector<16x128xbf16>, vector<128x128xbf16>, vector<16x128xf32> -> vector<16x128xf32>
    %165 = arith.addf %159, %164 : vector<16x128xf32>
    %c0_188 = arith.constant 0 : index
    %c16_189 = arith.constant 16 : index
    %c0_190 = arith.constant 0 : index
    %166 = vector.load %arg16[%c0_188, %c16_189, %c0_190] : memref<1x32x128xbf16, #tpu.memory_space<vmem>>, vector<1x16x128xbf16>
    %167 = vector.shape_cast %166 : vector<1x16x128xbf16> to vector<16x128xbf16>
    %c2_191 = arith.constant 2 : index
    %c0_192 = arith.constant 0 : index
    %c0_193 = arith.constant 0 : index
    %168 = vector.load %arg13[%c2_191, %c0_192, %c0_193] : memref<3x128x128xbf16, #tpu.memory_space<vmem>>, vector<1x128x128xbf16>
    %169 = vector.shape_cast %168 : vector<1x128x128xbf16> to vector<128x128xbf16>
    %cst_194 = arith.constant dense<0.000000e+00> : vector<16x128xf32>
    %170 = tpu.matmul %167, %169, %cst_194 {dimension_numbers = #tpu.dot_dimension_numbers<[1], [0], [0], [1], [0, 0, 1, 1], [], []>} : vector<16x128xbf16>, vector<128x128xbf16>, vector<16x128xf32> -> vector<16x128xf32>
    %171 = arith.addf %165, %170 : vector<16x128xf32>
    %172 = vector.broadcast %146 : vector<1x128xf32> to vector<16x128xf32>
    %173 = arith.mulf %171, %172 : vector<16x128xf32>
    %174 = vector.broadcast %147 : vector<1x128xf32> to vector<16x128xf32>
    %175 = arith.addf %173, %174 : vector<16x128xf32>
    %cst_195 = arith.constant 0.000000e+00 : f32
    %176 = vector.broadcast %cst_195 : f32 to vector<16x128xf32>
    %177 = arith.maximumf %175, %176 : vector<16x128xf32>
    %178 = arith.truncf %177 : vector<16x128xf32> to vector<16x128xbf16>
    %179 = vector.shape_cast %178 : vector<16x128xbf16> to vector<1x16x128xbf16>
    %c0_196 = arith.constant 0 : index
    %c0_197 = arith.constant 0 : index
    %c0_198 = arith.constant 0 : index
    %180 = vector.load %arg22[%c0_196, %c0_197, %c0_198] : memref<1x8x128xbf16, #tpu.memory_space<vmem>>, vector<1x8x128xbf16>
    %c0_199 = arith.constant 0 : index
    %c8_200 = arith.constant 8 : index
    %c0_201 = arith.constant 0 : index
    %181 = vector.load %arg16[%c0_199, %c8_200, %c0_201] : memref<1x32x128xbf16, #tpu.memory_space<vmem>>, vector<1x8x128xbf16>
    tpu.vector_store %arg16[%c0_199, %c8_200, %c0_201], %180 {strides = array<i32>} : memref<1x32x128xbf16, #tpu.memory_space<vmem>>, vector<1x8x128xbf16>,
    %c0_202 = arith.constant 0 : index
    %c16_203 = arith.constant 16 : index
    %c0_204 = arith.constant 0 : index
    %182 = vector.load %arg16[%c0_202, %c16_203, %c0_204] : memref<1x32x128xbf16, #tpu.memory_space<vmem>>, vector<1x16x128xbf16>
    tpu.vector_store %arg16[%c0_202, %c16_203, %c0_204], %179 {strides = array<i32>} : memref<1x32x128xbf16, #tpu.memory_space<vmem>>, vector<1x16x128xbf16>,
    %183 = vector.extract_strided_slice %179 {offsets = [0, 8, 0], sizes = [1, 8, 128], strides = [1, 1, 1]} : vector<1x16x128xbf16> to vector<1x8x128xbf16>
    %c0_205 = arith.constant 0 : index
    %c0_206 = arith.constant 0 : index
    %c0_207 = arith.constant 0 : index
    %184 = vector.load %arg22[%c0_205, %c0_206, %c0_207] : memref<1x8x128xbf16, #tpu.memory_space<vmem>>, vector<1x8x128xbf16>
    tpu.vector_store %arg22[%c0_205, %c0_206, %c0_207], %183 {strides = array<i32>} : memref<1x8x128xbf16, #tpu.memory_space<vmem>>, vector<1x8x128xbf16>,
    %c0_208 = arith.constant 0 : index
    %c8_209 = arith.constant 8 : index
    %c0_210 = arith.constant 0 : index
    %185 = vector.load %arg16[%c0_208, %c8_209, %c0_210] : memref<1x32x128xbf16, #tpu.memory_space<vmem>>, vector<1x16x128xbf16>
    %186 = vector.shape_cast %185 : vector<1x16x128xbf16> to vector<16x128xbf16>
    %c0_211 = arith.constant 0 : index
    %c0_212 = arith.constant 0 : index
    %c0_213 = arith.constant 0 : index
    %187 = vector.load %arg14[%c0_211, %c0_212, %c0_213] : memref<3x128x128xbf16, #tpu.memory_space<vmem>>, vector<1x128x128xbf16>
    %188 = vector.shape_cast %187 : vector<1x128x128xbf16> to vector<128x128xbf16>
    %cst_214 = arith.constant dense<0.000000e+00> : vector<16x128xf32>
    %189 = tpu.matmul %186, %188, %cst_214 {dimension_numbers = #tpu.dot_dimension_numbers<[1], [0], [0], [1], [0, 0, 1, 1], [], []>} : vector<16x128xbf16>, vector<128x128xbf16>, vector<16x128xf32> -> vector<16x128xf32>
    %c0_215 = arith.constant 0 : index
    %c12_216 = arith.constant 12 : index
    %c0_217 = arith.constant 0 : index
    %190 = vector.load %arg16[%c0_215, %c12_216, %c0_217] : memref<1x32x128xbf16, #tpu.memory_space<vmem>>, vector<1x16x128xbf16>
    %191 = vector.shape_cast %190 : vector<1x16x128xbf16> to vector<16x128xbf16>
    %c1_218 = arith.constant 1 : index
    %c0_219 = arith.constant 0 : index
    %c0_220 = arith.constant 0 : index
    %192 = vector.load %arg14[%c1_218, %c0_219, %c0_220] : memref<3x128x128xbf16, #tpu.memory_space<vmem>>, vector<1x128x128xbf16>
    %193 = vector.shape_cast %192 : vector<1x128x128xbf16> to vector<128x128xbf16>
    %cst_221 = arith.constant dense<0.000000e+00> : vector<16x128xf32>
    %194 = tpu.matmul %191, %193, %cst_221 {dimension_numbers = #tpu.dot_dimension_numbers<[1], [0], [0], [1], [0, 0, 1, 1], [], []>} : vector<16x128xbf16>, vector<128x128xbf16>, vector<16x128xf32> -> vector<16x128xf32>
    %195 = arith.addf %189, %194 : vector<16x128xf32>
    %c0_222 = arith.constant 0 : index
    %c16_223 = arith.constant 16 : index
    %c0_224 = arith.constant 0 : index
    %196 = vector.load %arg16[%c0_222, %c16_223, %c0_224] : memref<1x32x128xbf16, #tpu.memory_space<vmem>>, vector<1x16x128xbf16>
    %197 = vector.shape_cast %196 : vector<1x16x128xbf16> to vector<16x128xbf16>
    %c2_225 = arith.constant 2 : index
    %c0_226 = arith.constant 0 : index
    %c0_227 = arith.constant 0 : index
    %198 = vector.load %arg14[%c2_225, %c0_226, %c0_227] : memref<3x128x128xbf16, #tpu.memory_space<vmem>>, vector<1x128x128xbf16>
    %199 = vector.shape_cast %198 : vector<1x128x128xbf16> to vector<128x128xbf16>
    %cst_228 = arith.constant dense<0.000000e+00> : vector<16x128xf32>
    %200 = tpu.matmul %197, %199, %cst_228 {dimension_numbers = #tpu.dot_dimension_numbers<[1], [0], [0], [1], [0, 0, 1, 1], [], []>} : vector<16x128xbf16>, vector<128x128xbf16>, vector<16x128xf32> -> vector<16x128xf32>
    %201 = arith.addf %195, %200 : vector<16x128xf32>
    %202 = vector.broadcast %148 : vector<1x128xf32> to vector<16x128xf32>
    %203 = arith.mulf %201, %202 : vector<16x128xf32>
    %204 = vector.broadcast %149 : vector<1x128xf32> to vector<16x128xf32>
    %205 = arith.addf %203, %204 : vector<16x128xf32>
    %cst_229 = arith.constant 0.000000e+00 : f32
    %206 = vector.broadcast %cst_229 : f32 to vector<16x128xf32>
    %207 = arith.maximumf %205, %206 : vector<16x128xf32>
    %208 = vector.shape_cast %145 : vector<1x16x128xbf16> to vector<16x128xbf16>
    %209 = arith.extf %208 : vector<16x128xbf16> to vector<16x128xf32>
    %210 = arith.addf %207, %209 : vector<16x128xf32>
    %cst_230 = arith.constant 0.000000e+00 : f32
    %211 = vector.broadcast %cst_230 : f32 to vector<16x128xf32>
    %212 = arith.maximumf %210, %211 : vector<16x128xf32>
    %213 = vector.shape_cast %212 : vector<16x128xf32> to vector<1x16x128xf32>
    %c16_i32 = arith.constant 16 : i32
    %214 = arith.muli %arg1, %c16_i32 : i32
    %c24_i32 = arith.constant 24 : i32
    %215 = arith.subi %c24_i32, %214 : i32
    %c16_i32_231 = arith.constant 16 : i32
    %216 = arith.minsi %215, %c16_i32_231 : i32
    %217 = tpu.iota {dimensions = array<i32: 1>} : vector<1x16x128xi32>
    %218 = vector.broadcast %216 : i32 to vector<1x16x128xi32>
    %219 = arith.cmpi slt, %217, %218 : vector<1x16x128xi32>
    %cst_232 = arith.constant 0.000000e+00 : f32
    %220 = vector.broadcast %cst_232 : f32 to vector<1x16x128xf32>
    %221 = arith.select %219, %213, %220 : vector<1x16x128xi1>, vector<1x16x128xf32>
    %c0_233 = arith.constant 0 : index
    %c0_234 = arith.constant 0 : index
    %c0_235 = arith.constant 0 : index
    %222 = vector.load %arg15[%c0_233, %c0_234, %c0_235] : memref<1x1x128xf32, #tpu.memory_space<vmem>>, vector<1x1x128xf32>
    %cst_236 = arith.constant dense<0.000000e+00> : vector<1x128xf32>
    %223 = vector.multi_reduction <add>, %221, %cst_236 [1] : vector<1x16x128xf32> to vector<1x128xf32>
    %224 = vector.shape_cast %223 : vector<1x128xf32> to vector<1x1x128xf32>
    %225 = arith.addf %222, %224 : vector<1x1x128xf32>
    %c0_237 = arith.constant 0 : index
    %c0_238 = arith.constant 0 : index
    %c0_239 = arith.constant 0 : index
    %226 = vector.load %arg15[%c0_237, %c0_238, %c0_239] : memref<1x1x128xf32, #tpu.memory_space<vmem>>, vector<1x1x128xf32>
    tpu.vector_store %arg15[%c0_237, %c0_238, %c0_239], %225 {strides = array<i32>} : memref<1x1x128xf32, #tpu.memory_space<vmem>>, vector<1x1x128xf32>,
    %c1_i32 = arith.constant 1 : i32
    %227 = arith.cmpi eq, %arg1, %c1_i32 : i32
    %228 = arith.extui %227 : i1 to i32
    %c0_i32_240 = arith.constant 0 : i32
    %229 = arith.cmpi ne, %228, %c0_i32_240 : i32
    scf.if %229 {
      %c0_241 = arith.constant 0 : index
      %c0_242 = arith.constant 0 : index
      %c0_243 = arith.constant 0 : index
      %230 = vector.load %arg15[%c0_241, %c0_242, %c0_243] : memref<1x1x128xf32, #tpu.memory_space<vmem>>, vector<1x1x128xf32>
      %cst_244 = arith.constant 0.0416666679 : f32
      %231 = vector.broadcast %cst_244 : f32 to vector<1x1x128xf32>
      %232 = arith.mulf %230, %231 : vector<1x1x128xf32>
      %c0_245 = arith.constant 0 : index
      %c0_246 = arith.constant 0 : index
      %c0_247 = arith.constant 0 : index
      %233 = vector.load %arg15[%c0_245, %c0_246, %c0_247] : memref<1x1x128xf32, #tpu.memory_space<vmem>>, vector<1x1x128xf32>
      tpu.vector_store %arg15[%c0_245, %c0_246, %c0_247], %232 {strides = array<i32>} : memref<1x1x128xf32, #tpu.memory_space<vmem>>, vector<1x1x128xf32>,
    } else {
    }
    return
  }
  func.func @transform_0(%arg0: i32, %arg1: i32) -> (i32, i32, i32) {
    %c0_i32 = arith.constant 0 : i32
    %c0_i32_0 = arith.constant 0 : i32
    return %arg0, %arg1, %c0_i32 : i32, i32, i32
  }
  func.func @transform_1(%arg0: i32, %arg1: i32) -> (i32, i32) {
    %c0_i32 = arith.constant 0 : i32
    %c0_i32_0 = arith.constant 0 : i32
    %c0_i32_1 = arith.constant 0 : i32
    return %c0_i32, %c0_i32_0 : i32, i32
  }
  func.func @transform_2(%arg0: i32, %arg1: i32) -> (i32, i32) {
    %c0_i32 = arith.constant 0 : i32
    %c0_i32_0 = arith.constant 0 : i32
    %c0_i32_1 = arith.constant 0 : i32
    return %c0_i32, %c0_i32_0 : i32, i32
  }
  func.func @transform_3(%arg0: i32, %arg1: i32) -> (i32, i32) {
    %c0_i32 = arith.constant 0 : i32
    %c0_i32_0 = arith.constant 0 : i32
    %c0_i32_1 = arith.constant 0 : i32
    return %c0_i32, %c0_i32_0 : i32, i32
  }
  func.func @transform_4(%arg0: i32, %arg1: i32) -> (i32, i32) {
    %c0_i32 = arith.constant 0 : i32
    %c0_i32_0 = arith.constant 0 : i32
    %c0_i32_1 = arith.constant 0 : i32
    return %c0_i32, %c0_i32_0 : i32, i32
  }
  func.func @transform_5(%arg0: i32, %arg1: i32) -> (i32, i32, i32) {
    %c0_i32 = arith.constant 0 : i32
    %c0_i32_0 = arith.constant 0 : i32
    %c0_i32_1 = arith.constant 0 : i32
    %c0_i32_2 = arith.constant 0 : i32
    return %c0_i32, %c0_i32_0, %c0_i32_1 : i32, i32, i32
  }
  func.func @transform_6(%arg0: i32, %arg1: i32) -> (i32, i32, i32) {
    %c0_i32 = arith.constant 0 : i32
    %c0_i32_0 = arith.constant 0 : i32
    %c0_i32_1 = arith.constant 0 : i32
    %c0_i32_2 = arith.constant 0 : i32
    return %c0_i32, %c0_i32_0, %c0_i32_1 : i32, i32, i32
  }
  func.func @transform_7(%arg0: i32, %arg1: i32) -> (i32, i32) {
    %c0_i32 = arith.constant 0 : i32
    %c0_i32_0 = arith.constant 0 : i32
    %c0_i32_1 = arith.constant 0 : i32
    return %c0_i32, %c0_i32_0 : i32, i32
  }
  func.func @transform_8(%arg0: i32, %arg1: i32) -> (i32, i32) {
    %c0_i32 = arith.constant 0 : i32
    %c0_i32_0 = arith.constant 0 : i32
    %c0_i32_1 = arith.constant 0 : i32
    return %c0_i32, %c0_i32_0 : i32, i32
  }
  func.func @transform_9(%arg0: i32, %arg1: i32) -> (i32, i32, i32) {
    %c0_i32 = arith.constant 0 : i32
    %c0_i32_0 = arith.constant 0 : i32
    %c0_i32_1 = arith.constant 0 : i32
    %c0_i32_2 = arith.constant 0 : i32
    return %c0_i32, %c0_i32_0, %c0_i32_1 : i32, i32, i32
  }
  func.func @transform_10(%arg0: i32, %arg1: i32) -> (i32, i32, i32) {
    %c0_i32 = arith.constant 0 : i32
    %c0_i32_0 = arith.constant 0 : i32
    %c0_i32_1 = arith.constant 0 : i32
    %c0_i32_2 = arith.constant 0 : i32
    return %c0_i32, %c0_i32_0, %c0_i32_1 : i32, i32, i32
  }
  func.func @transform_11(%arg0: i32, %arg1: i32) -> (i32, i32, i32) {
    %c0_i32 = arith.constant 0 : i32
    %c0_i32_0 = arith.constant 0 : i32
    %c0_i32_1 = arith.constant 0 : i32
    %c0_i32_2 = arith.constant 0 : i32
    return %c0_i32, %c0_i32_0, %c0_i32_1 : i32, i32, i32
  }
  func.func @transform_12(%arg0: i32, %arg1: i32) -> (i32, i32, i32) {
    %c0_i32 = arith.constant 0 : i32
    %c0_i32_0 = arith.constant 0 : i32
    %c0_i32_1 = arith.constant 0 : i32
    %c0_i32_2 = arith.constant 0 : i32
    return %c0_i32, %c0_i32_0, %c0_i32_1 : i32, i32, i32
  }
  func.func @transform_13(%arg0: i32, %arg1: i32) -> (i32, i32, i32) {
    %c0_i32 = arith.constant 0 : i32
    %c0_i32_0 = arith.constant 0 : i32
    %c0_i32_1 = arith.constant 0 : i32
    return %arg0, %c0_i32, %c0_i32_0 : i32, i32, i32
  }
}

</mosaic_0001>

<llo_original>
// kernel: tpu_custom_call.1
$region0: #{tpu_custom_call.1}
  #allocation0 [shape = 'u32[]', space=smem, size = 0x4, offset = 0x4, fixed_abs, tag = 'smem constant byte address 0x4 - core index']
  #allocation1 [shape = 'u32[72,128]{1,0:T(1,128)}', space=vmem, size = 0x9000, scoped, tag = 'internal scratch']
  #allocation2 [shape = 'bf16[1,32,128]{2,1,0:T(8,128)(2,1)}', space=vmem, size = 0x2000, scoped, tag = 'scratch operand']
  #allocation3 [shape = 'bf16[1,2,128]{2,1,0:T(2,128)(2,1)}', space=vmem, size = 0x200, scoped, tag = 'scratch operand']
  #allocation4 [shape = 'bf16[1,2,128]{2,1,0:T(2,128)(2,1)}', space=vmem, size = 0x200, scoped, tag = 'scratch operand']
  #allocation5 [shape = 'bf16[1,4,128]{2,1,0:T(4,128)(2,1)}', space=vmem, size = 0x400, scoped, tag = 'scratch operand']
  #allocation6 [shape = 'bf16[1,4,128]{2,1,0:T(4,128)(2,1)}', space=vmem, size = 0x400, scoped, tag = 'scratch operand']
  #allocation7 [shape = 'bf16[1,8,128]{2,1,0:T(8,128)(2,1)}', space=vmem, size = 0x800, scoped, tag = 'scratch operand']
  #allocation8 [shape = 'bf16[1,8,128]{2,1,0:T(8,128)(2,1)}', space=vmem, size = 0x800, scoped, tag = 'scratch operand']
  %s0 = inlined_call_operand.hbm [shape: bf16[2,32,128], index: 0, kind: input, shape index: {}]
  %s1 = inlined_call_operand.hbm [shape: f32[3,128], index: 1, kind: input, shape index: {}]
  %s2 = inlined_call_operand.hbm [shape: f32[3,128], index: 2, kind: input, shape index: {}]
  %s3 = inlined_call_operand.hbm [shape: f32[3,128], index: 3, kind: input, shape index: {}]
  %s4 = inlined_call_operand.hbm [shape: f32[3,128], index: 4, kind: input, shape index: {}]
  %s5 = inlined_call_operand.hbm [shape: bf16[3,128,128], index: 5, kind: input, shape index: {}]
  %s6 = inlined_call_operand.hbm [shape: bf16[3,128,128], index: 6, kind: input, shape index: {}]
  %s7 = inlined_call_operand.hbm [shape: bf16[128,128], index: 7, kind: input, shape index: {}]
  %s8 = inlined_call_operand.vmem [shape: f32[1,128], index: 8, kind: input, shape index: {}]
  %s9 = inlined_call_operand.hbm [shape: bf16[3,128,128], index: 9, kind: input, shape index: {}]
  %s10 = inlined_call_operand.hbm [shape: bf16[3,128,128], index: 10, kind: input, shape index: {}]
  %s11 = inlined_call_operand.hbm [shape: bf16[3,128,128], index: 11, kind: input, shape index: {}]
  %s12 = inlined_call_operand.hbm [shape: bf16[3,128,128], index: 12, kind: input, shape index: {}]
  %s13 = inlined_call_operand.hbm [shape: f32[2,1,128], index: 13, kind: output, shape index: {}]
  %s14 = sld [smem:[#allocation0]]
  $region141: #{tpu_custom_call.1} parent=0
    _
  %s16 = ssub.s32 1, %s14
  %s17 = scalar_select 0, %s16, %s14
  $region1: #{tpu_custom_call.1} parent=0
    #allocation9 [shape = 'u8[8192]{0}', space=vmem, size = 0x2000, scoped, tag = 'input window, operand 0']
    #allocation10 [shape = 's32[2]{0}', space=sflag, size = 0x8, scoped, tag = 'scoped memory for tpu_custom_call.1']
    #allocation11 [shape = 's32[2]{0}', space=sflag, size = 0x8, scoped, tag = 'scoped memory for tpu_custom_call.1']
    #allocation12 [shape = 'u8[2048]{0}', space=vmem, size = 0x800, scoped, tag = 'input window, operand 1, single buffered']
    #allocation13 [shape = 's32[1]{0}', space=sflag, size = 0x4, scoped, tag = 'scoped memory for tpu_custom_call.1']
    #allocation14 [shape = 'u8[2048]{0}', space=vmem, size = 0x800, scoped, tag = 'input window, operand 2, single buffered']
    #allocation15 [shape = 'u8[2048]{0}', space=vmem, size = 0x800, scoped, tag = 'input window, operand 3, single buffered']
    #allocation16 [shape = 's32[1]{0}', space=sflag, size = 0x4, scoped, tag = 'scoped memory for tpu_custom_call.1']
    #allocation17 [shape = 'u8[2048]{0}', space=vmem, size = 0x800, scoped, tag = 'input window, operand 4, single buffered']
    #allocation18 [shape = 'u8[98304]{0}', space=vmem, size = 0x18000, scoped, tag = 'input window, operand 5, single buffered']
    #allocation19 [shape = 's32[1]{0}', space=sflag, size = 0x4, scoped, tag = 'scoped memory for tpu_custom_call.1']
    #allocation20 [shape = 'u8[98304]{0}', space=vmem, size = 0x18000, scoped, tag = 'input window, operand 6, single buffered']
    #allocation21 [shape = 'u8[32768]{0}', space=vmem, size = 0x8000, scoped, tag = 'input window, operand 7, single buffered']
    #allocation22 [shape = 's32[1]{0}', space=sflag, size = 0x4, scoped, tag = 'scoped memory for tpu_custom_call.1']
    #allocation23 [shape = 'u8[98304]{0}', space=vmem, size = 0x18000, scoped, tag = 'input window, operand 9, single buffered']
    #allocation24 [shape = 'u8[98304]{0}', space=vmem, size = 0x18000, scoped, tag = 'input window, operand 10, single buffered']
    #allocation25 [shape = 's32[1]{0}', space=sflag, size = 0x4, scoped, tag = 'scoped memory for tpu_custom_call.1']
    #allocation26 [shape = 'u8[98304]{0}', space=vmem, size = 0x18000, scoped, tag = 'input window, operand 11, single buffered']
    #allocation27 [shape = 'u8[98304]{0}', space=vmem, size = 0x18000, scoped, tag = 'input window, operand 12, single buffered']
    #allocation28 [shape = 's32[1]{0}', space=sflag, size = 0x4, scoped, tag = 'scoped memory for tpu_custom_call.1']
    #allocation29 [shape = 'u8[1024]{0}', space=vmem, size = 0x400, scoped, tag = 'output window, operand 0']
    %18 = vsyncpa [#allocation10], 0
    %s19 = scalar_lea.sflag [#allocation10], 1
    %20 = vsyncpa %s19, 0
    %21 = vsyncpa [#allocation13], 0
    %22 = vsyncpa [#allocation16], 0
    %23 = vsyncpa [#allocation19], 0
    %24 = vsyncpa [#allocation22], 0
    %25 = vsyncpa [#allocation25], 0
    %26 = vsyncpa [#allocation28], 0
    %27 = vsyncpa [#allocation11], 0
    %s28 = scalar_lea.sflag [#allocation11], 1
    %29 = vsyncpa %s28, 0
    loop: start=0, step=1, limit=6
    $region2: #{tpu_custom_call.1} parent=1 // loop_pre_header
      _
    $region3: #{tpu_custom_call.1} parent=1 // loop_header
      %s31 = sphi 0, %s35
      %p32 = scmp.ge.s32.totalorder %s31, 6
      %s38 = sphi 0, %s50
      %s39 = sphi 0, %s46
      %s40 = sphi 0, %s38
      %s41 = sphi 0, %s39
      %s42 = sphi 0, %s40
      %s43 = sphi 0, %s41
      %s55 = sphi 0, %s57
      %s58 = sphi 0, %s55
      %s59 = sphi 0, %s58
      %s75 = sphi 0, %s59
      %s79 = sphi 0, %s79
      %s81 = sphi 0, %s79
      %s82 = sphi 0, %s81
      %s96 = sphi 0, %s82
      %s100 = sphi 0, %s100
      %s102 = sphi 0, %s100
      %s103 = sphi 0, %s102
      %s117 = sphi 0, %s103
      %s121 = sphi 0, %s121
      %s123 = sphi 0, %s121
      %s124 = sphi 0, %s123
      %s138 = sphi 0, %s124
      %s142 = sphi 0, %s142
      %s144 = sphi 0, %s142
      %s145 = sphi 0, %s144
      %s159 = sphi 0, %s145
      %s163 = sphi 0, %s163
      %s165 = sphi 0, %s163
      %s166 = sphi 0, %s165
      %s180 = sphi 0, %s166
      %s184 = sphi 0, %s184
      %s186 = sphi 0, %s184
      %s187 = sphi 0, %s186
      %s201 = sphi 0, %s187
      %s205 = sphi 0, %s205
      %s207 = sphi 0, %s205
      %s208 = sphi 0, %s207
      %s222 = sphi 0, %s208
      %s226 = sphi 0, %s226
      %s228 = sphi 0, %s226
      %s229 = sphi 0, %s228
      %s243 = sphi 0, %s229
      %s247 = sphi 0, %s247
      %s249 = sphi 0, %s247
      %s250 = sphi 0, %s249
      %s264 = sphi 0, %s250
      %s268 = sphi 0, %s268
      %s270 = sphi 0, %s268
      %s271 = sphi 0, %s270
      %s285 = sphi 0, %s271
      %s289 = sphi 0, %s289
      %s291 = sphi 0, %s289
      %s292 = sphi 0, %s291
      %s306 = sphi 0, %s292
      %s310 = sphi 0, %s310
      %s312 = sphi 0, %s310
      %s313 = sphi 0, %s312
      %s327 = sphi 0, %s313
      %s333 = sphi 0, %s335
      %s336 = sphi 0, %s333
      %s337 = sphi 0, %s336
      %s353 = sphi 0, %s337
    $region4: #{tpu_custom_call.1} parent=1 // loop_header_branch
      %34 = sbr.rel (%p32) target = $region8
    $region5: #{tpu_custom_call.1} parent=1 // loop_body
      %s36 = ssub.s32 %s31, 1
      %s37 = ssub.s32 %s31, 2
      %s44 = sadd.s32 1, %s39
      %p45 = scmp.ge.s32.totalorder %s44, 2
      %s46 = scalar_select %p45, 0, %s44
      %s47 = sadd.s32 1, %s38
      %s48 = scalar_select %p45, %s47, %s38
      %p49 = scmp.ge.s32.totalorder %s48, 2
      %s50 = scalar_select %p49, 0, %s48
      %s51 = ssub.s32 %s38, %s50
      %s52 = ssub.s32 %s39, %s46
      %s53 = sor.u32 %s51, %s52
      %p54 = scmp.eq.s32.totalorder %s53, 0
      %s56 = sadd.s32 %s55, 1
      %s57 = scalar_select %p54, %s55, %s56
      %p60 = pneg %p54
      %p61 = scmp.eq.s32.totalorder %s31, 3
      %p62 = por %p60, %p61
      %p63 = scmp.ne.s32.totalorder %s55, %s58
      %p64 = scmp.eq.s32.totalorder %s31, 0
      %p65 = por %p63, %p64
      %p66 = scmp.ne.s32.totalorder %s55, %s58
      %p67 = scmp.eq.s32.totalorder %s36, 3
      %p68 = por %p66, %p67
      %p69 = scmp.ne.s32.totalorder %s58, %s59
      %p70 = scmp.eq.s32.totalorder %s36, 0
      %p71 = por %p69, %p70
      %p72 = scmp.ne.s32.totalorder %s58, %s59
      %p73 = scmp.eq.s32.totalorder %s37, 3
      %p74 = por %p72, %p73
      %p76 = scmp.ne.s32.totalorder %s59, %s75
      %p77 = scmp.eq.s32.totalorder %s37, 0
      %p78 = por %p76, %p77
      %s80 = sadd.s32 %s79, 1
      %p83 = scmp.eq.s32.totalorder %s31, 3
      %p84 = scmp.ne.s32.totalorder %s79, %s81
      %p85 = scmp.eq.s32.totalorder %s31, 0
      %p86 = por %p84, %p85
      %p87 = scmp.ne.s32.totalorder %s79, %s81
      %p88 = scmp.eq.s32.totalorder %s36, 3
      %p89 = por %p87, %p88
      %p90 = scmp.ne.s32.totalorder %s81, %s82
      %p91 = scmp.eq.s32.totalorder %s36, 0
      %p92 = por %p90, %p91
      %p93 = scmp.ne.s32.totalorder %s81, %s82
      %p94 = scmp.eq.s32.totalorder %s37, 3
      %p95 = por %p93, %p94
      %p97 = scmp.ne.s32.totalorder %s82, %s96
      %p98 = scmp.eq.s32.totalorder %s37, 0
      %p99 = por %p97, %p98
      %s101 = sadd.s32 %s100, 1
      %p104 = scmp.eq.s32.totalorder %s31, 3
      %p105 = scmp.ne.s32.totalorder %s100, %s102
      %p106 = scmp.eq.s32.totalorder %s31, 0
      %p107 = por %p105, %p106
      %p108 = scmp.ne.s32.totalorder %s100, %s102
      %p109 = scmp.eq.s32.totalorder %s36, 3
      %p110 = por %p108, %p109
      %p111 = scmp.ne.s32.totalorder %s102, %s103
      %p112 = scmp.eq.s32.totalorder %s36, 0
      %p113 = por %p111, %p112
      %p114 = scmp.ne.s32.totalorder %s102, %s103
      %p115 = scmp.eq.s32.totalorder %s37, 3
      %p116 = por %p114, %p115
      %p118 = scmp.ne.s32.totalorder %s103, %s117
      %p119 = scmp.eq.s32.totalorder %s37, 0
      %p120 = por %p118, %p119
      %s122 = sadd.s32 %s121, 1
      %p125 = scmp.eq.s32.totalorder %s31, 3
      %p126 = scmp.ne.s32.totalorder %s121, %s123
      %p127 = scmp.eq.s32.totalorder %s31, 0
      %p128 = por %p126, %p127
      %p129 = scmp.ne.s32.totalorder %s121, %s123
      %p130 = scmp.eq.s32.totalorder %s36, 3
      %p131 = por %p129, %p130
      %p132 = scmp.ne.s32.totalorder %s123, %s124
      %p133 = scmp.eq.s32.totalorder %s36, 0
      %p134 = por %p132, %p133
      %p135 = scmp.ne.s32.totalorder %s123, %s124
      %p136 = scmp.eq.s32.totalorder %s37, 3
      %p137 = por %p135, %p136
      %p139 = scmp.ne.s32.totalorder %s124, %s138
      %p140 = scmp.eq.s32.totalorder %s37, 0
      %p141 = por %p139, %p140
      %s143 = sadd.s32 %s142, 1
      %p146 = scmp.eq.s32.totalorder %s31, 3
      %p147 = scmp.ne.s32.totalorder %s142, %s144
      %p148 = scmp.eq.s32.totalorder %s31, 0
      %p149 = por %p147, %p148
      %p150 = scmp.ne.s32.totalorder %s142, %s144
      %p151 = scmp.eq.s32.totalorder %s36, 3
      %p152 = por %p150, %p151
      %p153 = scmp.ne.s32.totalorder %s144, %s145
      %p154 = scmp.eq.s32.totalorder %s36, 0
      %p155 = por %p153, %p154
      %p156 = scmp.ne.s32.totalorder %s144, %s145
      %p157 = scmp.eq.s32.totalorder %s37, 3
      %p158 = por %p156, %p157
      %p160 = scmp.ne.s32.totalorder %s145, %s159
      %p161 = scmp.eq.s32.totalorder %s37, 0
      %p162 = por %p160, %p161
      %s164 = sadd.s32 %s163, 1
      %p167 = scmp.eq.s32.totalorder %s31, 3
      %p168 = scmp.ne.s32.totalorder %s163, %s165
      %p169 = scmp.eq.s32.totalorder %s31, 0
      %p170 = por %p168, %p169
      %p171 = scmp.ne.s32.totalorder %s163, %s165
      %p172 = scmp.eq.s32.totalorder %s36, 3
      %p173 = por %p171, %p172
      %p174 = scmp.ne.s32.totalorder %s165, %s166
      %p175 = scmp.eq.s32.totalorder %s36, 0
      %p176 = por %p174, %p175
      %p177 = scmp.ne.s32.totalorder %s165, %s166
      %p178 = scmp.eq.s32.totalorder %s37, 3
      %p179 = por %p177, %p178
      %p181 = scmp.ne.s32.totalorder %s166, %s180
      %p182 = scmp.eq.s32.totalorder %s37, 0
      %p183 = por %p181, %p182
      %s185 = sadd.s32 %s184, 1
      %p188 = scmp.eq.s32.totalorder %s31, 3
      %p189 = scmp.ne.s32.totalorder %s184, %s186
      %p190 = scmp.eq.s32.totalorder %s31, 0
      %p191 = por %p189, %p190
      %p192 = scmp.ne.s32.totalorder %s184, %s186
      %p193 = scmp.eq.s32.totalorder %s36, 3
      %p194 = por %p192, %p193
      %p195 = scmp.ne.s32.totalorder %s186, %s187
      %p196 = scmp.eq.s32.totalorder %s36, 0
      %p197 = por %p195, %p196
      %p198 = scmp.ne.s32.totalorder %s186, %s187
      %p199 = scmp.eq.s32.totalorder %s37, 3
      %p200 = por %p198, %p199
      %p202 = scmp.ne.s32.totalorder %s187, %s201
      %p203 = scmp.eq.s32.totalorder %s37, 0
      %p204 = por %p202, %p203
      %s206 = sadd.s32 %s205, 1
      %p209 = scmp.eq.s32.totalorder %s31, 3
      %p210 = scmp.ne.s32.totalorder %s205, %s207
      %p211 = scmp.eq.s32.totalorder %s31, 0
      %p212 = por %p210, %p211
      %p213 = scmp.ne.s32.totalorder %s205, %s207
      %p214 = scmp.eq.s32.totalorder %s36, 3
      %p215 = por %p213, %p214
      %p216 = scmp.ne.s32.totalorder %s207, %s208
      %p217 = scmp.eq.s32.totalorder %s36, 0
      %p218 = por %p216, %p217
      %p219 = scmp.ne.s32.totalorder %s207, %s208
      %p220 = scmp.eq.s32.totalorder %s37, 3
      %p221 = por %p219, %p220
      %p223 = scmp.ne.s32.totalorder %s208, %s222
      %p224 = scmp.eq.s32.totalorder %s37, 0
      %p225 = por %p223, %p224
      %s227 = sadd.s32 %s226, 1
      %p230 = scmp.eq.s32.totalorder %s31, 3
      %p231 = scmp.ne.s32.totalorder %s226, %s228
      %p232 = scmp.eq.s32.totalorder %s31, 0
      %p233 = por %p231, %p232
      %p234 = scmp.ne.s32.totalorder %s226, %s228
      %p235 = scmp.eq.s32.totalorder %s36, 3
      %p236 = por %p234, %p235
      %p237 = scmp.ne.s32.totalorder %s228, %s229
      %p238 = scmp.eq.s32.totalorder %s36, 0
      %p239 = por %p237, %p238
      %p240 = scmp.ne.s32.totalorder %s228, %s229
      %p241 = scmp.eq.s32.totalorder %s37, 3
      %p242 = por %p240, %p241
      %p244 = scmp.ne.s32.totalorder %s229, %s243
      %p245 = scmp.eq.s32.totalorder %s37, 0
      %p246 = por %p244, %p245
      %s248 = sadd.s32 %s247, 1
      %p251 = scmp.eq.s32.totalorder %s31, 3
      %p252 = scmp.ne.s32.totalorder %s247, %s249
      %p253 = scmp.eq.s32.totalorder %s31, 0
      %p254 = por %p252, %p253
      %p255 = scmp.ne.s32.totalorder %s247, %s249
      %p256 = scmp.eq.s32.totalorder %s36, 3
      %p257 = por %p255, %p256
      %p258 = scmp.ne.s32.totalorder %s249, %s250
      %p259 = scmp.eq.s32.totalorder %s36, 0
      %p260 = por %p258, %p259
      %p261 = scmp.ne.s32.totalorder %s249, %s250
      %p262 = scmp.eq.s32.totalorder %s37, 3
      %p263 = por %p261, %p262
      %p265 = scmp.ne.s32.totalorder %s250, %s264
      %p266 = scmp.eq.s32.totalorder %s37, 0
      %p267 = por %p265, %p266
      %s269 = sadd.s32 %s268, 1
      %p272 = scmp.eq.s32.totalorder %s31, 3
      %p273 = scmp.ne.s32.totalorder %s268, %s270
      %p274 = scmp.eq.s32.totalorder %s31, 0
      %p275 = por %p273, %p274
      %p276 = scmp.ne.s32.totalorder %s268, %s270
      %p277 = scmp.eq.s32.totalorder %s36, 3
      %p278 = por %p276, %p277
      %p279 = scmp.ne.s32.totalorder %s270, %s271
      %p280 = scmp.eq.s32.totalorder %s36, 0
      %p281 = por %p279, %p280
      %p282 = scmp.ne.s32.totalorder %s270, %s271
      %p283 = scmp.eq.s32.totalorder %s37, 3
      %p284 = por %p282, %p283
      %p286 = scmp.ne.s32.totalorder %s271, %s285
      %p287 = scmp.eq.s32.totalorder %s37, 0
      %p288 = por %p286, %p287
      %s290 = sadd.s32 %s289, 1
      %p293 = scmp.eq.s32.totalorder %s31, 3
      %p294 = scmp.ne.s32.totalorder %s289, %s291
      %p295 = scmp.eq.s32.totalorder %s31, 0
      %p296 = por %p294, %p295
      %p297 = scmp.ne.s32.totalorder %s289, %s291
      %p298 = scmp.eq.s32.totalorder %s36, 3
      %p299 = por %p297, %p298
      %p300 = scmp.ne.s32.totalorder %s291, %s292
      %p301 = scmp.eq.s32.totalorder %s36, 0
      %p302 = por %p300, %p301
      %p303 = scmp.ne.s32.totalorder %s291, %s292
      %p304 = scmp.eq.s32.totalorder %s37, 3
      %p305 = por %p303, %p304
      %p307 = scmp.ne.s32.totalorder %s292, %s306
      %p308 = scmp.eq.s32.totalorder %s37, 0
      %p309 = por %p307, %p308
      %s311 = sadd.s32 %s310, 1
      %p314 = scmp.eq.s32.totalorder %s31, 3
      %p315 = scmp.ne.s32.totalorder %s310, %s312
      %p316 = scmp.eq.s32.totalorder %s31, 0
      %p317 = por %p315, %p316
      %p318 = scmp.ne.s32.totalorder %s310, %s312
      %p319 = scmp.eq.s32.totalorder %s36, 3
      %p320 = por %p318, %p319
      %p321 = scmp.ne.s32.totalorder %s312, %s313
      %p322 = scmp.eq.s32.totalorder %s36, 0
      %p323 = por %p321, %p322
      %p324 = scmp.ne.s32.totalorder %s312, %s313
      %p325 = scmp.eq.s32.totalorder %s37, 3
      %p326 = por %p324, %p325
      %p328 = scmp.ne.s32.totalorder %s313, %s327
      %p329 = scmp.eq.s32.totalorder %s37, 0
      %p330 = por %p328, %p329
      %s331 = ssub.s32 %s38, %s50
      %p332 = scmp.eq.s32.totalorder %s331, 0
      %s334 = sadd.s32 %s333, 1
      %s335 = scalar_select %p332, %s333, %s334
      %p338 = pneg %p332
      %p339 = scmp.eq.s32.totalorder %s31, 3
      %p340 = por %p338, %p339
      %p341 = scmp.ne.s32.totalorder %s333, %s336
      %p342 = scmp.eq.s32.totalorder %s31, 0
      %p343 = por %p341, %p342
      %p344 = scmp.ne.s32.totalorder %s333, %s336
      %p345 = scmp.eq.s32.totalorder %s36, 3
      %p346 = por %p344, %p345
      %p347 = scmp.ne.s32.totalorder %s336, %s337
      %p348 = scmp.eq.s32.totalorder %s36, 0
      %p349 = por %p347, %p348
      %p350 = scmp.ne.s32.totalorder %s336, %s337
      %p351 = scmp.eq.s32.totalorder %s37, 3
      %p352 = por %p350, %p351
      %p354 = scmp.ne.s32.totalorder %s337, %s353
      %p355 = scmp.eq.s32.totalorder %s37, 0
      %p356 = por %p354, %p355
      %p357 = scmp.le.s32.totalorder 1, %s31
      %p358 = scmp.lt.s32.totalorder %s31, 5
      %p359 = pnand %p357, %p358
      %p360 = pneg %p359
      // Predicated region
      $region9: #{tpu_custom_call.1} parent=5 // pred_check
        _
      $region10: #{tpu_custom_call.1} parent=5 // pred_check_branch
        %362 = sbr.rel (%p359) target = $region12
      $region11: #{tpu_custom_call.1} parent=5 // pred_region
        %s363 = ssub.s32 %s31, 1
        // Predicated region
        $region13: #{tpu_custom_call.1} parent=11 // pred_check
          %p364 = pneg %p92
        $region14: #{tpu_custom_call.1} parent=11 // pred_check_branch
          %366 = sbr.rel (%p364) target = $region16
        $region15: #{tpu_custom_call.1} parent=11 // pred_region
          %368 = vsyncadd [#allocation13], 0
          %s370 = sshll.u32 %s1, 4
          %s371 = int_to_ptr.hbm [resolvable:$true] %s370
          %s372 = sshll.u32 [#allocation12], 4
          %s373 = int_to_ptr.vmem [resolvable:$true] %s372
          %375 = dma.hbm_to_vmem [thread:$0]  %s371, 64, %s373, [#allocation13]
        $region16: #{tpu_custom_call.1} parent=11 // pred_fallthru
          _
        // Predicated region
        $region17: #{tpu_custom_call.1} parent=11 // pred_check
          %p376 = pneg %p113
        $region18: #{tpu_custom_call.1} parent=11 // pred_check_branch
          %378 = sbr.rel (%p376) target = $region20
        $region19: #{tpu_custom_call.1} parent=11 // pred_region
          %380 = vsyncadd [#allocation13], 0
          %s382 = sshll.u32 %s2, 4
          %s383 = int_to_ptr.hbm [resolvable:$true] %s382
          %s384 = sshll.u32 [#allocation14], 4
          %s385 = int_to_ptr.vmem [resolvable:$true] %s384
          %387 = dma.hbm_to_vmem [thread:$0]  %s383, 64, %s385, [#allocation13]
        $region20: #{tpu_custom_call.1} parent=11 // pred_fallthru
          _
        // Predicated region
        $region21: #{tpu_custom_call.1} parent=11 // pred_check
          %p388 = pneg %p134
        $region22: #{tpu_custom_call.1} parent=11 // pred_check_branch
          %390 = sbr.rel (%p388) target = $region24
        $region23: #{tpu_custom_call.1} parent=11 // pred_region
          %392 = vsyncadd [#allocation16], 0
          %s394 = sshll.u32 %s3, 4
          %s395 = int_to_ptr.hbm [resolvable:$true] %s394
          %s396 = sshll.u32 [#allocation15], 4
          %s397 = int_to_ptr.vmem [resolvable:$true] %s396
          %399 = dma.hbm_to_vmem [thread:$0]  %s395, 64, %s397, [#allocation16]
        $region24: #{tpu_custom_call.1} parent=11 // pred_fallthru
          _
        // Predicated region
        $region25: #{tpu_custom_call.1} parent=11 // pred_check
          %p400 = pneg %p155
        $region26: #{tpu_custom_call.1} parent=11 // pred_check_branch
          %402 = sbr.rel (%p400) target = $region28
        $region27: #{tpu_custom_call.1} parent=11 // pred_region
          %404 = vsyncadd [#allocation16], 0
          %s406 = sshll.u32 %s4, 4
          %s407 = int_to_ptr.hbm [resolvable:$true] %s406
          %s408 = sshll.u32 [#allocation17], 4
          %s409 = int_to_ptr.vmem [resolvable:$true] %s408
          %411 = dma.hbm_to_vmem [thread:$0]  %s407, 64, %s409, [#allocation16]
        $region28: #{tpu_custom_call.1} parent=11 // pred_fallthru
          _
        // Predicated region
        $region29: #{tpu_custom_call.1} parent=11 // pred_check
          %p412 = pneg %p176
        $region30: #{tpu_custom_call.1} parent=11 // pred_check_branch
          %414 = sbr.rel (%p412) target = $region32
        $region31: #{tpu_custom_call.1} parent=11 // pred_region
          %416 = vsyncadd [#allocation19], 0
          %s417 = sshll.u32 %s5, 4
          %s418 = int_to_ptr.hbm [resolvable:$true] %s417
          %s419 = sshll.u32 [#allocation18], 4
          %s420 = int_to_ptr.vmem [resolvable:$true] %s419
          %425 = dma.hbm_to_vmem [thread:$0]  %s418, 3072, %s420, [#allocation19], 64, 64, 4
        $region32: #{tpu_custom_call.1} parent=11 // pred_fallthru
          _
        // Predicated region
        $region33: #{tpu_custom_call.1} parent=11 // pred_check
          %p426 = pneg %p197
        $region34: #{tpu_custom_call.1} parent=11 // pred_check_branch
          %428 = sbr.rel (%p426) target = $region36
        $region35: #{tpu_custom_call.1} parent=11 // pred_region
          %430 = vsyncadd [#allocation19], 0
          %s431 = sshll.u32 %s6, 4
          %s432 = int_to_ptr.hbm [resolvable:$true] %s431
          %s433 = sshll.u32 [#allocation20], 4
          %s434 = int_to_ptr.vmem [resolvable:$true] %s433
          %439 = dma.hbm_to_vmem [thread:$0]  %s432, 3072, %s434, [#allocation19], 64, 64, 4
        $region36: #{tpu_custom_call.1} parent=11 // pred_fallthru
          _
        // Predicated region
        $region37: #{tpu_custom_call.1} parent=11 // pred_check
          %p440 = pneg %p218
        $region38: #{tpu_custom_call.1} parent=11 // pred_check_branch
          %442 = sbr.rel (%p440) target = $region40
        $region39: #{tpu_custom_call.1} parent=11 // pred_region
          %444 = vsyncadd [#allocation22], 0
          %s445 = sshll.u32 %s7, 4
          %s446 = int_to_ptr.hbm [resolvable:$true] %s445
          %s447 = sshll.u32 [#allocation21], 4
          %s448 = int_to_ptr.vmem [resolvable:$true] %s447
          %453 = dma.hbm_to_vmem [thread:$0]  %s446, 1024, %s448, [#allocation22], 64, 64, 4
        $region40: #{tpu_custom_call.1} parent=11 // pred_fallthru
          _
        // Predicated region
        $region41: #{tpu_custom_call.1} parent=11 // pred_check
          %p454 = pneg %p239
        $region42: #{tpu_custom_call.1} parent=11 // pred_check_branch
          %456 = sbr.rel (%p454) target = $region44
        $region43: #{tpu_custom_call.1} parent=11 // pred_region
          _
        $region44: #{tpu_custom_call.1} parent=11 // pred_fallthru
          _
        // Predicated region
        $region45: #{tpu_custom_call.1} parent=11 // pred_check
          %p457 = pneg %p260
        $region46: #{tpu_custom_call.1} parent=11 // pred_check_branch
          %459 = sbr.rel (%p457) target = $region48
        $region47: #{tpu_custom_call.1} parent=11 // pred_region
          %461 = vsyncadd [#allocation22], 0
          %s462 = sshll.u32 %s9, 4
          %s463 = int_to_ptr.hbm [resolvable:$true] %s462
          %s464 = sshll.u32 [#allocation23], 4
          %s465 = int_to_ptr.vmem [resolvable:$true] %s464
          %470 = dma.hbm_to_vmem [thread:$0]  %s463, 3072, %s465, [#allocation22], 64, 64, 4
        $region48: #{tpu_custom_call.1} parent=11 // pred_fallthru
          _
        // Predicated region
        $region49: #{tpu_custom_call.1} parent=11 // pred_check
          %p471 = pneg %p281
        $region50: #{tpu_custom_call.1} parent=11 // pred_check_branch
          %473 = sbr.rel (%p471) target = $region52
        $region51: #{tpu_custom_call.1} parent=11 // pred_region
          %475 = vsyncadd [#allocation25], 0
          %s476 = sshll.u32 %s10, 4
          %s477 = int_to_ptr.hbm [resolvable:$true] %s476
          %s478 = sshll.u32 [#allocation24], 4
          %s479 = int_to_ptr.vmem [resolvable:$true] %s478
          %484 = dma.hbm_to_vmem [thread:$0]  %s477, 3072, %s479, [#allocation25], 64, 64, 4
        $region52: #{tpu_custom_call.1} parent=11 // pred_fallthru
          _
        // Predicated region
        $region53: #{tpu_custom_call.1} parent=11 // pred_check
          %p485 = pneg %p302
        $region54: #{tpu_custom_call.1} parent=11 // pred_check_branch
          %487 = sbr.rel (%p485) target = $region56
        $region55: #{tpu_custom_call.1} parent=11 // pred_region
          %489 = vsyncadd [#allocation25], 0
          %s490 = sshll.u32 %s11, 4
          %s491 = int_to_ptr.hbm [resolvable:$true] %s490
          %s492 = sshll.u32 [#allocation26], 4
          %s493 = int_to_ptr.vmem [resolvable:$true] %s492
          %498 = dma.hbm_to_vmem [thread:$0]  %s491, 3072, %s493, [#allocation25], 64, 64, 4
        $region56: #{tpu_custom_call.1} parent=11 // pred_fallthru
          _
        // Predicated region
        $region57: #{tpu_custom_call.1} parent=11 // pred_check
          %p499 = pneg %p323
        $region58: #{tpu_custom_call.1} parent=11 // pred_check_branch
          %501 = sbr.rel (%p499) target = $region60
        $region59: #{tpu_custom_call.1} parent=11 // pred_region
          %503 = vsyncadd [#allocation28], 0
          %s504 = sshll.u32 %s12, 4
          %s505 = int_to_ptr.hbm [resolvable:$true] %s504
          %s506 = sshll.u32 [#allocation27], 4
          %s507 = int_to_ptr.vmem [resolvable:$true] %s506
          %512 = dma.hbm_to_vmem [thread:$0]  %s505, 3072, %s507, [#allocation28], 64, 64, 4
        $region60: #{tpu_custom_call.1} parent=11 // pred_fallthru
          _
      $region12: #{tpu_custom_call.1} parent=5 // pred_fallthru
        _
      %p513 = scmp.lt.s32.totalorder %s31, 4
      // Predicated region
      $region61: #{tpu_custom_call.1} parent=5 // pred_check
        %p514 = pneg %p513
      $region62: #{tpu_custom_call.1} parent=5 // pred_check_branch
        %516 = sbr.rel (%p514) target = $region64
      $region63: #{tpu_custom_call.1} parent=5 // pred_region
        // Predicated region
        $region65: #{tpu_custom_call.1} parent=63 // pred_check
          %p517 = pneg %p65
        $region66: #{tpu_custom_call.1} parent=63 // pred_check_branch
          %519 = sbr.rel (%p517) target = $region68
        $region67: #{tpu_custom_call.1} parent=63 // pred_region
          %s520 = sand.u32 %s55, 1
          %s521 = scalar_lea.sflag [#allocation10], %s520
          %s522 = sand.u32 %s55, 1
          %s523 = smul.addr %s522, 8
          %s524 = scalar_lea.vmem [#allocation9], %s523
          %s525 = smul.u32 2, %s39
          %527 = vsyncadd %s521, 0
          %s528 = smul.addr %s38, 4
          %s529 = sadd.s32 %s525, %s528
          %s530 = smul.addr %s529, 4
          %s531 = scalar_lea.hbm %s0, %s530
          %s532 = sshll.u32 %s531, 4
          %s533 = int_to_ptr.hbm [resolvable:$true] %s532
          %s534 = sshll.u32 %s524, 4
          %s535 = int_to_ptr.vmem [resolvable:$true] %s534
          %540 = dma.hbm_to_vmem [thread:$0]  %s533, 128, %s535, %s521, 64, 64, 4
        $region68: #{tpu_custom_call.1} parent=63 // pred_fallthru
          _
      $region64: #{tpu_custom_call.1} parent=5 // pred_fallthru
        _
      %p541 = scmp.le.s32.totalorder 1, %s31
      %p542 = scmp.lt.s32.totalorder %s31, 5
      %p543 = pnand %p541, %p542
      %p544 = pneg %p543
      // Predicated region
      $region69: #{tpu_custom_call.1} parent=5 // pred_check
        _
      $region70: #{tpu_custom_call.1} parent=5 // pred_check_branch
        %546 = sbr.rel (%p543) target = $region72
      $region71: #{tpu_custom_call.1} parent=5 // pred_region
        %s547 = ssub.s32 %s31, 1
        %s548 = sand.u32 %s58, 1
        %s549 = scalar_lea.sflag [#allocation10], %s548
        %s550 = sand.u32 %s58, 1
        %s551 = smul.addr %s550, 8
        %s552 = scalar_lea.vmem [#allocation9], %s551
        // Predicated region
        $region73: #{tpu_custom_call.1} parent=71 // pred_check
          %p553 = pneg %p71
        $region74: #{tpu_custom_call.1} parent=71 // pred_check_branch
          %555 = sbr.rel (%p553) target = $region76
        $region75: #{tpu_custom_call.1} parent=71 // pred_region
          %557 = dma.done %s549, 128
        $region76: #{tpu_custom_call.1} parent=71 // pred_fallthru
          _
        // Predicated region
        $region77: #{tpu_custom_call.1} parent=71 // pred_check
          %p558 = pneg %p92
        $region78: #{tpu_custom_call.1} parent=71 // pred_check_branch
          %560 = sbr.rel (%p558) target = $region80
        $region79: #{tpu_custom_call.1} parent=71 // pred_region
          %562 = dma.done [#allocation13], 64
        $region80: #{tpu_custom_call.1} parent=71 // pred_fallthru
          _
        // Predicated region
        $region81: #{tpu_custom_call.1} parent=71 // pred_check
          %p563 = pneg %p113
        $region82: #{tpu_custom_call.1} parent=71 // pred_check_branch
          %565 = sbr.rel (%p563) target = $region84
        $region83: #{tpu_custom_call.1} parent=71 // pred_region
          %567 = dma.done [#allocation13], 64
        $region84: #{tpu_custom_call.1} parent=71 // pred_fallthru
          _
        // Predicated region
        $region85: #{tpu_custom_call.1} parent=71 // pred_check
          %p568 = pneg %p134
        $region86: #{tpu_custom_call.1} parent=71 // pred_check_branch
          %570 = sbr.rel (%p568) target = $region88
        $region87: #{tpu_custom_call.1} parent=71 // pred_region
          %572 = dma.done [#allocation16], 64
        $region88: #{tpu_custom_call.1} parent=71 // pred_fallthru
          _
        // Predicated region
        $region89: #{tpu_custom_call.1} parent=71 // pred_check
          %p573 = pneg %p155
        $region90: #{tpu_custom_call.1} parent=71 // pred_check_branch
          %575 = sbr.rel (%p573) target = $region92
        $region91: #{tpu_custom_call.1} parent=71 // pred_region
          %577 = dma.done [#allocation16], 64
        $region92: #{tpu_custom_call.1} parent=71 // pred_fallthru
          _
        // Predicated region
        $region93: #{tpu_custom_call.1} parent=71 // pred_check
          %p578 = pneg %p176
        $region94: #{tpu_custom_call.1} parent=71 // pred_check_branch
          %580 = sbr.rel (%p578) target = $region96
        $region95: #{tpu_custom_call.1} parent=71 // pred_region
          %582 = dma.done [#allocation19], 3072
        $region96: #{tpu_custom_call.1} parent=71 // pred_fallthru
          _
        // Predicated region
        $region97: #{tpu_custom_call.1} parent=71 // pred_check
          %p583 = pneg %p197
        $region98: #{tpu_custom_call.1} parent=71 // pred_check_branch
          %585 = sbr.rel (%p583) target = $region100
        $region99: #{tpu_custom_call.1} parent=71 // pred_region
          %587 = dma.done [#allocation19], 3072
        $region100: #{tpu_custom_call.1} parent=71 // pred_fallthru
          _
        // Predicated region
        $region101: #{tpu_custom_call.1} parent=71 // pred_check
          %p588 = pneg %p218
        $region102: #{tpu_custom_call.1} parent=71 // pred_check_branch
          %590 = sbr.rel (%p588) target = $region104
        $region103: #{tpu_custom_call.1} parent=71 // pred_region
          %592 = dma.done [#allocation22], 1024
        $region104: #{tpu_custom_call.1} parent=71 // pred_fallthru
          _
        // Predicated region
        $region105: #{tpu_custom_call.1} parent=71 // pred_check
          %p593 = pneg %p260
        $region106: #{tpu_custom_call.1} parent=71 // pred_check_branch
          %595 = sbr.rel (%p593) target = $region108
        $region107: #{tpu_custom_call.1} parent=71 // pred_region
          %597 = dma.done [#allocation22], 3072
        $region108: #{tpu_custom_call.1} parent=71 // pred_fallthru
          _
        // Predicated region
        $region109: #{tpu_custom_call.1} parent=71 // pred_check
          %p598 = pneg %p281
        $region110: #{tpu_custom_call.1} parent=71 // pred_check_branch
          %600 = sbr.rel (%p598) target = $region112
        $region111: #{tpu_custom_call.1} parent=71 // pred_region
          %602 = dma.done [#allocation25], 3072
        $region112: #{tpu_custom_call.1} parent=71 // pred_fallthru
          _
        // Predicated region
        $region113: #{tpu_custom_call.1} parent=71 // pred_check
          %p603 = pneg %p302
        $region114: #{tpu_custom_call.1} parent=71 // pred_check_branch
          %605 = sbr.rel (%p603) target = $region116
        $region115: #{tpu_custom_call.1} parent=71 // pred_region
          %607 = dma.done [#allocation25], 3072
        $region116: #{tpu_custom_call.1} parent=71 // pred_fallthru
          _
        // Predicated region
        $region117: #{tpu_custom_call.1} parent=71 // pred_check
          %p608 = pneg %p323
        $region118: #{tpu_custom_call.1} parent=71 // pred_check_branch
          %610 = sbr.rel (%p608) target = $region120
        $region119: #{tpu_custom_call.1} parent=71 // pred_region
          %612 = dma.done [#allocation28], 3072
        $region120: #{tpu_custom_call.1} parent=71 // pred_fallthru
          _
        %s613 = sand.u32 %s58, 1
        %s614 = scalar_lea.sflag [#allocation10], %s613
        %s615 = sand.u32 %s58, 1
        %s616 = smul.addr %s615, 8
        %s617 = scalar_lea.vmem [#allocation9], %s616
        %p618 = pneg %p71
        %p619 = pneg %p68
        %p620 = pneg %p92
        %p621 = pneg %p89
        %p622 = pneg %p113
        %p623 = pneg %p110
        %p624 = pneg %p134
        %p625 = pneg %p131
        %p626 = pneg %p155
        %p627 = pneg %p152
        %p628 = pneg %p176
        %p629 = pneg %p173
        %p630 = pneg %p197
        %p631 = pneg %p194
        %p632 = pneg %p218
        %p633 = pneg %p215
        %p634 = pneg %p239
        %p635 = pneg %p236
        %p636 = pneg %p260
        %p637 = pneg %p257
        %p638 = pneg %p281
        %p639 = pneg %p278
        %p640 = pneg %p302
        %p641 = pneg %p299
        %p642 = pneg %p323
        %p643 = pneg %p320
        %p644 = pneg %p349
        %p645 = pneg %p346
        %s646 = sand.u32 %s336, 1
        %s647 = scalar_lea.sflag [#allocation11], %s646
        %s648 = sand.u32 %s336, 1
        %s649 = scalar_lea.vmem [#allocation29], %s648
        %s650 = smul.u32 2, %s41
        %p652 = scmp.eq.s32.totalorder %s41, 0
        // Predicated region
        $region121: #{tpu_custom_call.1} parent=71 // pred_check
          %p653 = pneg %p652
        $region122: #{tpu_custom_call.1} parent=71 // pred_check_branch
          %655 = sbr.rel (%p653) target = $region124
        $region123: #{tpu_custom_call.1} parent=71 // pred_region
          %656 = vst [vmem:[#allocation3] sm:$0x1] 0
          %657 = vst [vmem:[#allocation4] sm:$0x1] 0
          %658 = vst [vmem:[#allocation5] sm:$0x3] 0
          %659 = vst [vmem:[#allocation6] sm:$0x3] 0
          %660 = vst [vmem:[#allocation7] sm:$0xf] 0
          %661 = vst [vmem:[#allocation8] sm:$0xf] 0
          %662 = vst [vmem:[%s649] sm:$0x1] 0.0
        $region124: #{tpu_custom_call.1} parent=71 // pred_fallthru
          _
        %v663 = vld [vmem:[%s552] sm:$0xf]
        %v664 = vld [vmem:[%s552 + $0x4] sm:$0xf]
        %v665 = vld [vmem:[#allocation12] sm:$0x1]
        %v666 = vld [vmem:[#allocation14] sm:$0x1]
        %v667 = vld [vmem:[#allocation15] sm:$0x1]
        %v668 = vld [vmem:[#allocation17] sm:$0x1]
        %v669 = vld [vmem:[#allocation3] sm:$0x1]
        %s671 = scalar_lea.vmem [#allocation1], 3
        %672 = vst [vmem:[%s671] ss:$4 sm:$0xff] %v669
        %v673 = vld [vmem:[#allocation1] sm:$0xff]
        %675 = vst [vmem:[#allocation2 + $0x4] sm:$0x8] %v673
        %676 = vst [vmem:[#allocation2 + $0x8] sm:$0xf] %v663
        %677 = vst [vmem:[#allocation2 + $0xc] sm:$0xf] %v664
        %679 = vst [vmem:[#allocation1] sm:$0xff] %v664
        %s680 = scalar_lea.vmem [#allocation1], 3
        %v681 = vld [vmem:[%s680] ss:$4 sm:$0xff]
        %683 = vst [vmem:[#allocation3] sm:$0x1] %v681
        %v684 = vld [vmem:[#allocation2 + $0x4] sm:$0x8]
        %v685 = vld [vmem:[#allocation2 + $0x8] sm:$0xf]
        %v686 = vld [vmem:[#allocation2 + $0xc] sm:$0x7]
        %v687 = vld [vmem:[#allocation18] sm:$0xf]
        %v688 = vld [vmem:[#allocation18 + $0x4] sm:$0xf]
        %v689 = vld [vmem:[#allocation18 + $0x8] sm:$0xf]
        %v690 = vld [vmem:[#allocation18 + $0xc] sm:$0xf]
        %v691 = vld [vmem:[#allocation18 + $0x10] sm:$0xf]
        %v692 = vld [vmem:[#allocation18 + $0x14] sm:$0xf]
        %v693 = vld [vmem:[#allocation18 + $0x18] sm:$0xf]
        %v694 = vld [vmem:[#allocation18 + $0x1c] sm:$0xf]
        %v695 = vld [vmem:[#allocation18 + $0x20] sm:$0xf]
        %v696 = vld [vmem:[#allocation18 + $0x24] sm:$0xf]
        %v697 = vld [vmem:[#allocation18 + $0x28] sm:$0xf]
        %v698 = vld [vmem:[#allocation18 + $0x2c] sm:$0xf]
        %v699 = vld [vmem:[#allocation18 + $0x30] sm:$0xf]
        %v700 = vld [vmem:[#allocation18 + $0x34] sm:$0xf]
        %v701 = vld [vmem:[#allocation18 + $0x38] sm:$0xf]
        %v702 = vld [vmem:[#allocation18 + $0x3c] sm:$0xf]
        %v703 = vld [vmem:[#allocation2 + $0xc] sm:$0xf]
        %s704 = scalar_lea.vmem [#allocation18], 64
        %v705 = vld [vmem:[%s704] sm:$0xf]
        %v706 = vld [vmem:[%s704 + $0x4] sm:$0xf]
        %v707 = vld [vmem:[%s704 + $0x8] sm:$0xf]
        %v708 = vld [vmem:[%s704 + $0xc] sm:$0xf]
        %v709 = vld [vmem:[%s704 + $0x10] sm:$0xf]
        %v710 = vld [vmem:[%s704 + $0x14] sm:$0xf]
        %v711 = vld [vmem:[%s704 + $0x18] sm:$0xf]
        %v712 = vld [vmem:[%s704 + $0x1c] sm:$0xf]
        %v713 = vld [vmem:[%s704 + $0x20] sm:$0xf]
        %v714 = vld [vmem:[%s704 + $0x24] sm:$0xf]
        %v715 = vld [vmem:[%s704 + $0x28] sm:$0xf]
        %v716 = vld [vmem:[%s704 + $0x2c] sm:$0xf]
        %v717 = vld [vmem:[%s704 + $0x30] sm:$0xf]
        %v718 = vld [vmem:[%s704 + $0x34] sm:$0xf]
        %v719 = vld [vmem:[%s704 + $0x38] sm:$0xf]
        %v720 = vld [vmem:[%s704 + $0x3c] sm:$0xf]
        %v724 = vunpack.c.l.b16 %v684
        %v725 = vunpack.c.l.b16 %v685
        %v726 = vunpack.c.l.b16 %v703
        %v727 = vpack.c.b16 %v725, %v724
        %v728 = vpack.c.b16 %v726, %v726
        %vm729 = vsmask.f32 4352
        %v731 = vshrl.u32 %v727, 16
        %v733 = vrot.slane %v731, 3
        %v734 = vshll.u32 %v727, 16
        %v736 = vrot.slane %v734, 4
        %v737 = vor.u32 %v733, %v736
        %v739 = vshrl.u32 %v728, 16
        %v741 = vrot.slane %v739, 3
        %v742 = vshll.u32 %v728, 16
        %v744 = vrot.slane %v742, 4
        %v745 = vor.u32 %v741, %v744
        %v746 = vsel %vm729, %v737, %v745
        %v764 = vunpack.c.l.b16 %v705
        %v765 = vunpack.c.l.b16 %v706
        %v766 = vunpack.c.l.b16 %v707
        %v767 = vunpack.c.l.b16 %v708
        %v768 = vunpack.c.l.b16 %v709
        %v769 = vunpack.c.l.b16 %v710
        %v770 = vunpack.c.l.b16 %v711
        %v771 = vunpack.c.l.b16 %v712
        %v772 = vunpack.c.l.b16 %v713
        %v773 = vunpack.c.l.b16 %v714
        %v774 = vunpack.c.l.b16 %v715
        %v775 = vunpack.c.l.b16 %v716
        %v776 = vunpack.c.l.b16 %v717
        %v777 = vunpack.c.l.b16 %v718
        %v778 = vunpack.c.l.b16 %v719
        %v779 = vunpack.c.l.b16 %v720
        %v780 = vpack.c.b16 %v765, %v764
        %v781 = vpack.c.b16 %v767, %v766
        %v782 = vpack.c.b16 %v769, %v768
        %v783 = vpack.c.b16 %v771, %v770
        %v784 = vpack.c.b16 %v773, %v772
        %v785 = vpack.c.b16 %v775, %v774
        %v786 = vpack.c.b16 %v777, %v776
        %v787 = vpack.c.b16 %v779, %v778
        %796 = vmatpush.bf16.msra.mxu0 %v787
        %797 = vmatpush.bf16.msra.mxu0 %v786
        %798 = vmatpush.bf16.msra.mxu0 %v785
        %799 = vmatpush.bf16.msra.mxu0 %v784
        %800 = vmatpush.bf16.msra.mxu0 %v783
        %801 = vmatpush.bf16.msra.mxu0 %v782
        %802 = vmatpush.bf16.msra.mxu0 %v781
        %803 = vmatpush.bf16.msra.mxu0 %v780
        %804 = vmatmul.bf16.gmra.mxu0 %v746
        %v805 = vpop.f32.mrf.mxu0
        %v806 = vadd.f32 0.0, %v805
        %v807 = vpop.f32.mrf.mxu0
        %v808 = vadd.f32 0.0, %v807
        %809 = vdwg.mxu0
        %v811 = vunpack.c.l.b16 %v686
        %v812 = vpack.c.b16 %v811, %v811
        %vm813 = vcmask 1044480
        %v814 = vrot.slane %v727, 3
        %v815 = vrot.slane %v812, 3
        %v816 = vsel %vm813, %v814, %v815
        %v834 = vunpack.c.l.b16 %v687
        %v835 = vunpack.c.l.b16 %v688
        %v836 = vunpack.c.l.b16 %v689
        %v837 = vunpack.c.l.b16 %v690
        %v838 = vunpack.c.l.b16 %v691
        %v839 = vunpack.c.l.b16 %v692
        %v840 = vunpack.c.l.b16 %v693
        %v841 = vunpack.c.l.b16 %v694
        %v842 = vunpack.c.l.b16 %v695
        %v843 = vunpack.c.l.b16 %v696
        %v844 = vunpack.c.l.b16 %v697
        %v845 = vunpack.c.l.b16 %v698
        %v846 = vunpack.c.l.b16 %v699
        %v847 = vunpack.c.l.b16 %v700
        %v848 = vunpack.c.l.b16 %v701
        %v849 = vunpack.c.l.b16 %v702
        %v850 = vpack.c.b16 %v835, %v834
        %v851 = vpack.c.b16 %v837, %v836
        %v852 = vpack.c.b16 %v839, %v838
        %v853 = vpack.c.b16 %v841, %v840
        %v854 = vpack.c.b16 %v843, %v842
        %v855 = vpack.c.b16 %v845, %v844
        %v856 = vpack.c.b16 %v847, %v846
        %v857 = vpack.c.b16 %v849, %v848
        %866 = vmatpush.bf16.msra.mxu0 %v857
        %867 = vmatpush.bf16.msra.mxu0 %v856
        %868 = vmatpush.bf16.msra.mxu0 %v855
        %869 = vmatpush.bf16.msra.mxu0 %v854
        %870 = vmatpush.bf16.msra.mxu0 %v853
        %871 = vmatpush.bf16.msra.mxu0 %v852
        %872 = vmatpush.bf16.msra.mxu0 %v851
        %873 = vmatpush.bf16.msra.mxu0 %v850
        %874 = vmatmul.bf16.gmra.mxu0 %v816
        %v875 = vpop.f32.mrf.mxu0
        %v876 = vadd.f32 %v806, %v875
        %v877 = vpop.f32.mrf.mxu0
        %v878 = vadd.f32 %v808, %v877
        %879 = vdwg.mxu0
        %s880 = scalar_lea.vmem [#allocation18], 128
        %v881 = vld [vmem:[%s880] sm:$0xf]
        %v882 = vld [vmem:[%s880 + $0x4] sm:$0xf]
        %v883 = vld [vmem:[%s880 + $0x8] sm:$0xf]
        %v884 = vld [vmem:[%s880 + $0xc] sm:$0xf]
        %v885 = vld [vmem:[%s880 + $0x10] sm:$0xf]
        %v886 = vld [vmem:[%s880 + $0x14] sm:$0xf]
        %v887 = vld [vmem:[%s880 + $0x18] sm:$0xf]
        %v888 = vld [vmem:[%s880 + $0x1c] sm:$0xf]
        %v889 = vld [vmem:[%s880 + $0x20] sm:$0xf]
        %v890 = vld [vmem:[%s880 + $0x24] sm:$0xf]
        %v891 = vld [vmem:[%s880 + $0x28] sm:$0xf]
        %v892 = vld [vmem:[%s880 + $0x2c] sm:$0xf]
        %v893 = vld [vmem:[%s880 + $0x30] sm:$0xf]
        %v894 = vld [vmem:[%s880 + $0x34] sm:$0xf]
        %v895 = vld [vmem:[%s880 + $0x38] sm:$0xf]
        %v896 = vld [vmem:[%s880 + $0x3c] sm:$0xf]
        %v897 = vpack.c.b16 %v726, %v725
        %v915 = vunpack.c.l.b16 %v881
        %v916 = vunpack.c.l.b16 %v882
        %v917 = vunpack.c.l.b16 %v883
        %v918 = vunpack.c.l.b16 %v884
        %v919 = vunpack.c.l.b16 %v885
        %v920 = vunpack.c.l.b16 %v886
        %v921 = vunpack.c.l.b16 %v887
        %v922 = vunpack.c.l.b16 %v888
        %v923 = vunpack.c.l.b16 %v889
        %v924 = vunpack.c.l.b16 %v890
        %v925 = vunpack.c.l.b16 %v891
        %v926 = vunpack.c.l.b16 %v892
        %v927 = vunpack.c.l.b16 %v893
        %v928 = vunpack.c.l.b16 %v894
        %v929 = vunpack.c.l.b16 %v895
        %v930 = vunpack.c.l.b16 %v896
        %v931 = vpack.c.b16 %v916, %v915
        %v932 = vpack.c.b16 %v918, %v917
        %v933 = vpack.c.b16 %v920, %v919
        %v934 = vpack.c.b16 %v922, %v921
        %v935 = vpack.c.b16 %v924, %v923
        %v936 = vpack.c.b16 %v926, %v925
        %v937 = vpack.c.b16 %v928, %v927
        %v938 = vpack.c.b16 %v930, %v929
        %947 = vmatpush.bf16.msra.mxu0 %v938
        %948 = vmatpush.bf16.msra.mxu0 %v937
        %949 = vmatpush.bf16.msra.mxu0 %v936
        %950 = vmatpush.bf16.msra.mxu0 %v935
        %951 = vmatpush.bf16.msra.mxu0 %v934
        %952 = vmatpush.bf16.msra.mxu0 %v933
        %953 = vmatpush.bf16.msra.mxu0 %v932
        %954 = vmatpush.bf16.msra.mxu0 %v931
        %955 = vmatmul.bf16.gmra.mxu0 %v897
        %v956 = vpop.f32.mrf.mxu0
        %v957 = vadd.f32 0.0, %v956
        %v958 = vpop.f32.mrf.mxu0
        %v959 = vadd.f32 0.0, %v958
        %960 = vdwg.mxu0
        %v961 = vadd.f32 %v876, %v957
        %v962 = vadd.f32 %v878, %v959
        %v963 = vperm.slane %v665, 0
        %v964 = vmul.f32 %v961, %v963
        %v965 = vmul.f32 %v962, %v963
        %v966 = vperm.slane %v666, 0
        %v967 = vadd.f32 %v964, %v966
        %v968 = vadd.f32 %v965, %v966
        %v969 = vmax.f32 %v967, 0.0
        %v970 = vmax.f32 %v968, 0.0
        %v971 = vpack.c.bf16 %v969, %v969
        %v972 = vpack.c.bf16 %v970, %v970
        %v973 = vld [vmem:[#allocation4] sm:$0x1]
        %s975 = scalar_lea.vmem [#allocation1], 3
        %976 = vst [vmem:[%s975] ss:$4 sm:$0xff] %v973
        %v977 = vld [vmem:[#allocation1] sm:$0xff]
        %979 = vst [vmem:[#allocation2 + $0x4] sm:$0x8] %v977
        %980 = vst [vmem:[#allocation2 + $0x8] sm:$0xf] %v971
        %981 = vst [vmem:[#allocation2 + $0xc] sm:$0xf] %v972
        %983 = vst [vmem:[#allocation1] sm:$0xff] %v972
        %s984 = scalar_lea.vmem [#allocation1], 3
        %v985 = vld [vmem:[%s984] ss:$4 sm:$0xff]
        %987 = vst [vmem:[#allocation4] sm:$0x1] %v985
        %v988 = vld [vmem:[#allocation2 + $0x4] sm:$0x8]
        %v989 = vld [vmem:[#allocation2 + $0x8] sm:$0xf]
        %v990 = vld [vmem:[#allocation2 + $0xc] sm:$0x7]
        %v991 = vld [vmem:[#allocation20] sm:$0xf]
        %v992 = vld [vmem:[#allocation20 + $0x4] sm:$0xf]
        %v993 = vld [vmem:[#allocation20 + $0x8] sm:$0xf]
        %v994 = vld [vmem:[#allocation20 + $0xc] sm:$0xf]
        %v995 = vld [vmem:[#allocation20 + $0x10] sm:$0xf]
        %v996 = vld [vmem:[#allocation20 + $0x14] sm:$0xf]
        %v997 = vld [vmem:[#allocation20 + $0x18] sm:$0xf]
        %v998 = vld [vmem:[#allocation20 + $0x1c] sm:$0xf]
        %v999 = vld [vmem:[#allocation20 + $0x20] sm:$0xf]
        %v1000 = vld [vmem:[#allocation20 + $0x24] sm:$0xf]
        %v1001 = vld [vmem:[#allocation20 + $0x28] sm:$0xf]
        %v1002 = vld [vmem:[#allocation20 + $0x2c] sm:$0xf]
        %v1003 = vld [vmem:[#allocation20 + $0x30] sm:$0xf]
        %v1004 = vld [vmem:[#allocation20 + $0x34] sm:$0xf]
        %v1005 = vld [vmem:[#allocation20 + $0x38] sm:$0xf]
        %v1006 = vld [vmem:[#allocation20 + $0x3c] sm:$0xf]
        %v1007 = vld [vmem:[#allocation2 + $0xc] sm:$0xf]
        %s1008 = scalar_lea.vmem [#allocation20], 64
        %v1009 = vld [vmem:[%s1008] sm:$0xf]
        %v1010 = vld [vmem:[%s1008 + $0x4] sm:$0xf]
        %v1011 = vld [vmem:[%s1008 + $0x8] sm:$0xf]
        %v1012 = vld [vmem:[%s1008 + $0xc] sm:$0xf]
        %v1013 = vld [vmem:[%s1008 + $0x10] sm:$0xf]
        %v1014 = vld [vmem:[%s1008 + $0x14] sm:$0xf]
        %v1015 = vld [vmem:[%s1008 + $0x18] sm:$0xf]
        %v1016 = vld [vmem:[%s1008 + $0x1c] sm:$0xf]
        %v1017 = vld [vmem:[%s1008 + $0x20] sm:$0xf]
        %v1018 = vld [vmem:[%s1008 + $0x24] sm:$0xf]
        %v1019 = vld [vmem:[%s1008 + $0x28] sm:$0xf]
        %v1020 = vld [vmem:[%s1008 + $0x2c] sm:$0xf]
        %v1021 = vld [vmem:[%s1008 + $0x30] sm:$0xf]
        %v1022 = vld [vmem:[%s1008 + $0x34] sm:$0xf]
        %v1023 = vld [vmem:[%s1008 + $0x38] sm:$0xf]
        %v1024 = vld [vmem:[%s1008 + $0x3c] sm:$0xf]
        %v1028 = vunpack.c.l.b16 %v988
        %v1029 = vunpack.c.l.b16 %v989
        %v1030 = vunpack.c.l.b16 %v1007
        %v1031 = vpack.c.b16 %v1029, %v1028
        %v1032 = vpack.c.b16 %v1030, %v1030
        %v1034 = vshrl.u32 %v1031, 16
        %v1036 = vrot.slane %v1034, 3
        %v1037 = vshll.u32 %v1031, 16
        %v1039 = vrot.slane %v1037, 4
        %v1040 = vor.u32 %v1036, %v1039
        %v1042 = vshrl.u32 %v1032, 16
        %v1044 = vrot.slane %v1042, 3
        %v1045 = vshll.u32 %v1032, 16
        %v1047 = vrot.slane %v1045, 4
        %v1048 = vor.u32 %v1044, %v1047
        %v1049 = vsel %vm729, %v1040, %v1048
        %v1067 = vunpack.c.l.b16 %v1009
        %v1068 = vunpack.c.l.b16 %v1010
        %v1069 = vunpack.c.l.b16 %v1011
        %v1070 = vunpack.c.l.b16 %v1012
        %v1071 = vunpack.c.l.b16 %v1013
        %v1072 = vunpack.c.l.b16 %v1014
        %v1073 = vunpack.c.l.b16 %v1015
        %v1074 = vunpack.c.l.b16 %v1016
        %v1075 = vunpack.c.l.b16 %v1017
        %v1076 = vunpack.c.l.b16 %v1018
        %v1077 = vunpack.c.l.b16 %v1019
        %v1078 = vunpack.c.l.b16 %v1020
        %v1079 = vunpack.c.l.b16 %v1021
        %v1080 = vunpack.c.l.b16 %v1022
        %v1081 = vunpack.c.l.b16 %v1023
        %v1082 = vunpack.c.l.b16 %v1024
        %v1083 = vpack.c.b16 %v1068, %v1067
        %v1084 = vpack.c.b16 %v1070, %v1069
        %v1085 = vpack.c.b16 %v1072, %v1071
        %v1086 = vpack.c.b16 %v1074, %v1073
        %v1087 = vpack.c.b16 %v1076, %v1075
        %v1088 = vpack.c.b16 %v1078, %v1077
        %v1089 = vpack.c.b16 %v1080, %v1079
        %v1090 = vpack.c.b16 %v1082, %v1081
        %1099 = vmatpush.bf16.msra.mxu0 %v1090
        %1100 = vmatpush.bf16.msra.mxu0 %v1089
        %1101 = vmatpush.bf16.msra.mxu0 %v1088
        %1102 = vmatpush.bf16.msra.mxu0 %v1087
        %1103 = vmatpush.bf16.msra.mxu0 %v1086
        %1104 = vmatpush.bf16.msra.mxu0 %v1085
        %1105 = vmatpush.bf16.msra.mxu0 %v1084
        %1106 = vmatpush.bf16.msra.mxu0 %v1083
        %1107 = vmatmul.bf16.gmra.mxu0 %v1049
        %v1108 = vpop.f32.mrf.mxu0
        %v1109 = vadd.f32 0.0, %v1108
        %v1110 = vpop.f32.mrf.mxu0
        %v1111 = vadd.f32 0.0, %v1110
        %1112 = vdwg.mxu0
        %v1114 = vunpack.c.l.b16 %v990
        %v1115 = vpack.c.b16 %v1114, %v1114
        %v1116 = vrot.slane %v1031, 3
        %v1117 = vrot.slane %v1115, 3
        %v1118 = vsel %vm813, %v1116, %v1117
        %v1136 = vunpack.c.l.b16 %v991
        %v1137 = vunpack.c.l.b16 %v992
        %v1138 = vunpack.c.l.b16 %v993
        %v1139 = vunpack.c.l.b16 %v994
        %v1140 = vunpack.c.l.b16 %v995
        %v1141 = vunpack.c.l.b16 %v996
        %v1142 = vunpack.c.l.b16 %v997
        %v1143 = vunpack.c.l.b16 %v998
        %v1144 = vunpack.c.l.b16 %v999
        %v1145 = vunpack.c.l.b16 %v1000
        %v1146 = vunpack.c.l.b16 %v1001
        %v1147 = vunpack.c.l.b16 %v1002
        %v1148 = vunpack.c.l.b16 %v1003
        %v1149 = vunpack.c.l.b16 %v1004
        %v1150 = vunpack.c.l.b16 %v1005
        %v1151 = vunpack.c.l.b16 %v1006
        %v1152 = vpack.c.b16 %v1137, %v1136
        %v1153 = vpack.c.b16 %v1139, %v1138
        %v1154 = vpack.c.b16 %v1141, %v1140
        %v1155 = vpack.c.b16 %v1143, %v1142
        %v1156 = vpack.c.b16 %v1145, %v1144
        %v1157 = vpack.c.b16 %v1147, %v1146
        %v1158 = vpack.c.b16 %v1149, %v1148
        %v1159 = vpack.c.b16 %v1151, %v1150
        %1168 = vmatpush.bf16.msra.mxu0 %v1159
        %1169 = vmatpush.bf16.msra.mxu0 %v1158
        %1170 = vmatpush.bf16.msra.mxu0 %v1157
        %1171 = vmatpush.bf16.msra.mxu0 %v1156
        %1172 = vmatpush.bf16.msra.mxu0 %v1155
        %1173 = vmatpush.bf16.msra.mxu0 %v1154
        %1174 = vmatpush.bf16.msra.mxu0 %v1153
        %1175 = vmatpush.bf16.msra.mxu0 %v1152
        %1176 = vmatmul.bf16.gmra.mxu0 %v1118
        %v1177 = vpop.f32.mrf.mxu0
        %v1178 = vadd.f32 %v1109, %v1177
        %v1179 = vpop.f32.mrf.mxu0
        %v1180 = vadd.f32 %v1111, %v1179
        %1181 = vdwg.mxu0
        %s1182 = scalar_lea.vmem [#allocation20], 128
        %v1183 = vld [vmem:[%s1182] sm:$0xf]
        %v1184 = vld [vmem:[%s1182 + $0x4] sm:$0xf]
        %v1185 = vld [vmem:[%s1182 + $0x8] sm:$0xf]
        %v1186 = vld [vmem:[%s1182 + $0xc] sm:$0xf]
        %v1187 = vld [vmem:[%s1182 + $0x10] sm:$0xf]
        %v1188 = vld [vmem:[%s1182 + $0x14] sm:$0xf]
        %v1189 = vld [vmem:[%s1182 + $0x18] sm:$0xf]
        %v1190 = vld [vmem:[%s1182 + $0x1c] sm:$0xf]
        %v1191 = vld [vmem:[%s1182 + $0x20] sm:$0xf]
        %v1192 = vld [vmem:[%s1182 + $0x24] sm:$0xf]
        %v1193 = vld [vmem:[%s1182 + $0x28] sm:$0xf]
        %v1194 = vld [vmem:[%s1182 + $0x2c] sm:$0xf]
        %v1195 = vld [vmem:[%s1182 + $0x30] sm:$0xf]
        %v1196 = vld [vmem:[%s1182 + $0x34] sm:$0xf]
        %v1197 = vld [vmem:[%s1182 + $0x38] sm:$0xf]
        %v1198 = vld [vmem:[%s1182 + $0x3c] sm:$0xf]
        %v1199 = vpack.c.b16 %v1030, %v1029
        %v1217 = vunpack.c.l.b16 %v1183
        %v1218 = vunpack.c.l.b16 %v1184
        %v1219 = vunpack.c.l.b16 %v1185
        %v1220 = vunpack.c.l.b16 %v1186
        %v1221 = vunpack.c.l.b16 %v1187
        %v1222 = vunpack.c.l.b16 %v1188
        %v1223 = vunpack.c.l.b16 %v1189
        %v1224 = vunpack.c.l.b16 %v1190
        %v1225 = vunpack.c.l.b16 %v1191
        %v1226 = vunpack.c.l.b16 %v1192
        %v1227 = vunpack.c.l.b16 %v1193
        %v1228 = vunpack.c.l.b16 %v1194
        %v1229 = vunpack.c.l.b16 %v1195
        %v1230 = vunpack.c.l.b16 %v1196
        %v1231 = vunpack.c.l.b16 %v1197
        %v1232 = vunpack.c.l.b16 %v1198
        %v1233 = vpack.c.b16 %v1218, %v1217
        %v1234 = vpack.c.b16 %v1220, %v1219
        %v1235 = vpack.c.b16 %v1222, %v1221
        %v1236 = vpack.c.b16 %v1224, %v1223
        %v1237 = vpack.c.b16 %v1226, %v1225
        %v1238 = vpack.c.b16 %v1228, %v1227
        %v1239 = vpack.c.b16 %v1230, %v1229
        %v1240 = vpack.c.b16 %v1232, %v1231
        %1249 = vmatpush.bf16.msra.mxu0 %v1240
        %1250 = vmatpush.bf16.msra.mxu0 %v1239
        %1251 = vmatpush.bf16.msra.mxu0 %v1238
        %1252 = vmatpush.bf16.msra.mxu0 %v1237
        %1253 = vmatpush.bf16.msra.mxu0 %v1236
        %1254 = vmatpush.bf16.msra.mxu0 %v1235
        %1255 = vmatpush.bf16.msra.mxu0 %v1234
        %1256 = vmatpush.bf16.msra.mxu0 %v1233
        %1257 = vmatmul.bf16.gmra.mxu0 %v1199
        %v1258 = vpop.f32.mrf.mxu0
        %v1259 = vadd.f32 0.0, %v1258
        %v1260 = vpop.f32.mrf.mxu0
        %v1261 = vadd.f32 0.0, %v1260
        %1262 = vdwg.mxu0
        %v1263 = vadd.f32 %v1178, %v1259
        %v1264 = vadd.f32 %v1180, %v1261
        %v1265 = vperm.slane %v667, 0
        %v1266 = vmul.f32 %v1263, %v1265
        %v1267 = vmul.f32 %v1264, %v1265
        %v1268 = vperm.slane %v668, 0
        %v1269 = vadd.f32 %v1266, %v1268
        %v1270 = vadd.f32 %v1267, %v1268
        %v1271 = vmax.f32 %v1269, 0.0
        %v1272 = vmax.f32 %v1270, 0.0
        %v1273 = vld [vmem:[#allocation21] sm:$0xf]
        %v1274 = vld [vmem:[#allocation21 + $0x4] sm:$0xf]
        %v1275 = vld [vmem:[#allocation21 + $0x8] sm:$0xf]
        %v1276 = vld [vmem:[#allocation21 + $0xc] sm:$0xf]
        %v1277 = vld [vmem:[#allocation21 + $0x10] sm:$0xf]
        %v1278 = vld [vmem:[#allocation21 + $0x14] sm:$0xf]
        %v1279 = vld [vmem:[#allocation21 + $0x18] sm:$0xf]
        %v1280 = vld [vmem:[#allocation21 + $0x1c] sm:$0xf]
        %v1281 = vld [vmem:[#allocation21 + $0x20] sm:$0xf]
        %v1282 = vld [vmem:[#allocation21 + $0x24] sm:$0xf]
        %v1283 = vld [vmem:[#allocation21 + $0x28] sm:$0xf]
        %v1284 = vld [vmem:[#allocation21 + $0x2c] sm:$0xf]
        %v1285 = vld [vmem:[#allocation21 + $0x30] sm:$0xf]
        %v1286 = vld [vmem:[#allocation21 + $0x34] sm:$0xf]
        %v1287 = vld [vmem:[#allocation21 + $0x38] sm:$0xf]
        %v1288 = vld [vmem:[#allocation21 + $0x3c] sm:$0xf]
        %v1289 = vld [vmem:[%s8] sm:$0x1]
        %v1291 = vperm.slane %v1289, 0
        %v1295 = vunpack.c.l.b16 %v663
        %v1296 = vunpack.c.l.b16 %v664
        %v1297 = vpack.c.b16 %v1296, %v1295
        %v1315 = vunpack.c.l.b16 %v1273
        %v1316 = vunpack.c.l.b16 %v1274
        %v1317 = vunpack.c.l.b16 %v1275
        %v1318 = vunpack.c.l.b16 %v1276
        %v1319 = vunpack.c.l.b16 %v1277
        %v1320 = vunpack.c.l.b16 %v1278
        %v1321 = vunpack.c.l.b16 %v1279
        %v1322 = vunpack.c.l.b16 %v1280
        %v1323 = vunpack.c.l.b16 %v1281
        %v1324 = vunpack.c.l.b16 %v1282
        %v1325 = vunpack.c.l.b16 %v1283
        %v1326 = vunpack.c.l.b16 %v1284
        %v1327 = vunpack.c.l.b16 %v1285
        %v1328 = vunpack.c.l.b16 %v1286
        %v1329 = vunpack.c.l.b16 %v1287
        %v1330 = vunpack.c.l.b16 %v1288
        %v1331 = vpack.c.b16 %v1316, %v1315
        %v1332 = vpack.c.b16 %v1318, %v1317
        %v1333 = vpack.c.b16 %v1320, %v1319
        %v1334 = vpack.c.b16 %v1322, %v1321
        %v1335 = vpack.c.b16 %v1324, %v1323
        %v1336 = vpack.c.b16 %v1326, %v1325
        %v1337 = vpack.c.b16 %v1328, %v1327
        %v1338 = vpack.c.b16 %v1330, %v1329
        %1347 = vmatpush.bf16.msra.mxu0 %v1338
        %1348 = vmatpush.bf16.msra.mxu0 %v1337
        %1349 = vmatpush.bf16.msra.mxu0 %v1336
        %1350 = vmatpush.bf16.msra.mxu0 %v1335
        %1351 = vmatpush.bf16.msra.mxu0 %v1334
        %1352 = vmatpush.bf16.msra.mxu0 %v1333
        %1353 = vmatpush.bf16.msra.mxu0 %v1332
        %1354 = vmatpush.bf16.msra.mxu0 %v1331
        %1355 = vmatmul.bf16.gmra.mxu0 %v1297
        %v1356 = vpop.f32.mrf.mxu0
        %v1357 = vadd.f32 %v1291, %v1356
        %v1358 = vpop.f32.mrf.mxu0
        %v1359 = vadd.f32 %v1291, %v1358
        %1360 = vdwg.mxu0
        %v1361 = vadd.f32 %v1271, %v1357
        %v1362 = vadd.f32 %v1272, %v1359
        %v1363 = vmax.f32 %v1361, 0.0
        %v1364 = vmax.f32 %v1362, 0.0
        %v1365 = vpack.c.bf16 %v1363, %v1363
        %v1366 = vpack.c.bf16 %v1364, %v1364
        %v1367 = vld [vmem:[#allocation12 + $0x1] sm:$0x1]
        %v1368 = vld [vmem:[#allocation14 + $0x1] sm:$0x1]
        %v1369 = vld [vmem:[#allocation15 + $0x1] sm:$0x1]
        %v1370 = vld [vmem:[#allocation17 + $0x1] sm:$0x1]
        %v1371 = vld [vmem:[#allocation5] sm:$0x3]
        %s1373 = scalar_lea.vmem [#allocation1], 1
        %1374 = vst [vmem:[%s1373] ss:$2 sm:$0xff] %v1371
        %v1375 = vld.sshfl [vmem:[#allocation1] sm:$0xff pattern:$0x75643120]
        %1377 = vst [vmem:[#allocation2 + $0x4] sm:$0xc] %v1375
        %1378 = vst [vmem:[#allocation2 + $0x8] sm:$0xf] %v1365
        %1379 = vst [vmem:[#allocation2 + $0xc] sm:$0xf] %v1366
        %1381 = vst.sshfl [vmem:[#allocation1] sm:$0xff pattern:$0x75643120] %v1366
        %s1382 = scalar_lea.vmem [#allocation1], 1
        %v1383 = vld [vmem:[%s1382] ss:$2 sm:$0xff]
        %1385 = vst [vmem:[#allocation5] sm:$0x3] %v1383
        %v1386 = vld [vmem:[#allocation2 + $0x4] sm:$0xc]
        %v1387 = vld [vmem:[#allocation2 + $0x8] sm:$0xf]
        %v1388 = vld [vmem:[#allocation2 + $0xc] sm:$0x3]
        %v1389 = vld [vmem:[#allocation23] sm:$0xf]
        %v1390 = vld [vmem:[#allocation23 + $0x4] sm:$0xf]
        %v1391 = vld [vmem:[#allocation23 + $0x8] sm:$0xf]
        %v1392 = vld [vmem:[#allocation23 + $0xc] sm:$0xf]
        %v1393 = vld [vmem:[#allocation23 + $0x10] sm:$0xf]
        %v1394 = vld [vmem:[#allocation23 + $0x14] sm:$0xf]
        %v1395 = vld [vmem:[#allocation23 + $0x18] sm:$0xf]
        %v1396 = vld [vmem:[#allocation23 + $0x1c] sm:$0xf]
        %v1397 = vld [vmem:[#allocation23 + $0x20] sm:$0xf]
        %v1398 = vld [vmem:[#allocation23 + $0x24] sm:$0xf]
        %v1399 = vld [vmem:[#allocation23 + $0x28] sm:$0xf]
        %v1400 = vld [vmem:[#allocation23 + $0x2c] sm:$0xf]
        %v1401 = vld [vmem:[#allocation23 + $0x30] sm:$0xf]
        %v1402 = vld [vmem:[#allocation23 + $0x34] sm:$0xf]
        %v1403 = vld [vmem:[#allocation23 + $0x38] sm:$0xf]
        %v1404 = vld [vmem:[#allocation23 + $0x3c] sm:$0xf]
        %v1405 = vld [vmem:[#allocation2 + $0x4] sm:$0x8]
        %v1406 = vld [vmem:[#allocation2 + $0xc] sm:$0x7]
        %s1407 = scalar_lea.vmem [#allocation23], 64
        %v1408 = vld [vmem:[%s1407] sm:$0xf]
        %v1409 = vld [vmem:[%s1407 + $0x4] sm:$0xf]
        %v1410 = vld [vmem:[%s1407 + $0x8] sm:$0xf]
        %v1411 = vld [vmem:[%s1407 + $0xc] sm:$0xf]
        %v1412 = vld [vmem:[%s1407 + $0x10] sm:$0xf]
        %v1413 = vld [vmem:[%s1407 + $0x14] sm:$0xf]
        %v1414 = vld [vmem:[%s1407 + $0x18] sm:$0xf]
        %v1415 = vld [vmem:[%s1407 + $0x1c] sm:$0xf]
        %v1416 = vld [vmem:[%s1407 + $0x20] sm:$0xf]
        %v1417 = vld [vmem:[%s1407 + $0x24] sm:$0xf]
        %v1418 = vld [vmem:[%s1407 + $0x28] sm:$0xf]
        %v1419 = vld [vmem:[%s1407 + $0x2c] sm:$0xf]
        %v1420 = vld [vmem:[%s1407 + $0x30] sm:$0xf]
        %v1421 = vld [vmem:[%s1407 + $0x34] sm:$0xf]
        %v1422 = vld [vmem:[%s1407 + $0x38] sm:$0xf]
        %v1423 = vld [vmem:[%s1407 + $0x3c] sm:$0xf]
        %v1427 = vunpack.c.l.b16 %v1405
        %v1428 = vunpack.c.l.b16 %v1387
        %v1429 = vunpack.c.l.b16 %v1406
        %v1430 = vpack.c.b16 %v1428, %v1427
        %v1431 = vpack.c.b16 %v1429, %v1429
        %v1432 = vrot.slane %v1430, 3
        %v1433 = vrot.slane %v1431, 3
        %v1434 = vsel %vm813, %v1432, %v1433
        %v1452 = vunpack.c.l.b16 %v1408
        %v1453 = vunpack.c.l.b16 %v1409
        %v1454 = vunpack.c.l.b16 %v1410
        %v1455 = vunpack.c.l.b16 %v1411
        %v1456 = vunpack.c.l.b16 %v1412
        %v1457 = vunpack.c.l.b16 %v1413
        %v1458 = vunpack.c.l.b16 %v1414
        %v1459 = vunpack.c.l.b16 %v1415
        %v1460 = vunpack.c.l.b16 %v1416
        %v1461 = vunpack.c.l.b16 %v1417
        %v1462 = vunpack.c.l.b16 %v1418
        %v1463 = vunpack.c.l.b16 %v1419
        %v1464 = vunpack.c.l.b16 %v1420
        %v1465 = vunpack.c.l.b16 %v1421
        %v1466 = vunpack.c.l.b16 %v1422
        %v1467 = vunpack.c.l.b16 %v1423
        %v1468 = vpack.c.b16 %v1453, %v1452
        %v1469 = vpack.c.b16 %v1455, %v1454
        %v1470 = vpack.c.b16 %v1457, %v1456
        %v1471 = vpack.c.b16 %v1459, %v1458
        %v1472 = vpack.c.b16 %v1461, %v1460
        %v1473 = vpack.c.b16 %v1463, %v1462
        %v1474 = vpack.c.b16 %v1465, %v1464
        %v1475 = vpack.c.b16 %v1467, %v1466
        %1484 = vmatpush.bf16.msra.mxu0 %v1475
        %1485 = vmatpush.bf16.msra.mxu0 %v1474
        %1486 = vmatpush.bf16.msra.mxu0 %v1473
        %1487 = vmatpush.bf16.msra.mxu0 %v1472
        %1488 = vmatpush.bf16.msra.mxu0 %v1471
        %1489 = vmatpush.bf16.msra.mxu0 %v1470
        %1490 = vmatpush.bf16.msra.mxu0 %v1469
        %1491 = vmatpush.bf16.msra.mxu0 %v1468
        %1492 = vmatmul.bf16.gmra.mxu0 %v1434
        %v1493 = vpop.f32.mrf.mxu0
        %v1494 = vadd.f32 0.0, %v1493
        %v1495 = vpop.f32.mrf.mxu0
        %v1496 = vadd.f32 0.0, %v1495
        %1497 = vdwg.mxu0
        %v1500 = vunpack.c.l.b16 %v1386
        %v1501 = vunpack.c.l.b16 %v1388
        %v1502 = vpack.c.b16 %v1428, %v1500
        %v1503 = vpack.c.b16 %v1501, %v1501
        %vm1504 = vcmask 1045504
        %v1505 = vrot.slane %v1502, 2
        %v1506 = vrot.slane %v1503, 2
        %v1507 = vsel %vm1504, %v1505, %v1506
        %v1525 = vunpack.c.l.b16 %v1389
        %v1526 = vunpack.c.l.b16 %v1390
        %v1527 = vunpack.c.l.b16 %v1391
        %v1528 = vunpack.c.l.b16 %v1392
        %v1529 = vunpack.c.l.b16 %v1393
        %v1530 = vunpack.c.l.b16 %v1394
        %v1531 = vunpack.c.l.b16 %v1395
        %v1532 = vunpack.c.l.b16 %v1396
        %v1533 = vunpack.c.l.b16 %v1397
        %v1534 = vunpack.c.l.b16 %v1398
        %v1535 = vunpack.c.l.b16 %v1399
        %v1536 = vunpack.c.l.b16 %v1400
        %v1537 = vunpack.c.l.b16 %v1401
        %v1538 = vunpack.c.l.b16 %v1402
        %v1539 = vunpack.c.l.b16 %v1403
        %v1540 = vunpack.c.l.b16 %v1404
        %v1541 = vpack.c.b16 %v1526, %v1525
        %v1542 = vpack.c.b16 %v1528, %v1527
        %v1543 = vpack.c.b16 %v1530, %v1529
        %v1544 = vpack.c.b16 %v1532, %v1531
        %v1545 = vpack.c.b16 %v1534, %v1533
        %v1546 = vpack.c.b16 %v1536, %v1535
        %v1547 = vpack.c.b16 %v1538, %v1537
        %v1548 = vpack.c.b16 %v1540, %v1539
        %1557 = vmatpush.bf16.msra.mxu0 %v1548
        %1558 = vmatpush.bf16.msra.mxu0 %v1547
        %1559 = vmatpush.bf16.msra.mxu0 %v1546
        %1560 = vmatpush.bf16.msra.mxu0 %v1545
        %1561 = vmatpush.bf16.msra.mxu0 %v1544
        %1562 = vmatpush.bf16.msra.mxu0 %v1543
        %1563 = vmatpush.bf16.msra.mxu0 %v1542
        %1564 = vmatpush.bf16.msra.mxu0 %v1541
        %1565 = vmatmul.bf16.gmra.mxu0 %v1507
        %v1566 = vpop.f32.mrf.mxu0
        %v1567 = vadd.f32 %v1494, %v1566
        %v1568 = vpop.f32.mrf.mxu0
        %v1569 = vadd.f32 %v1496, %v1568
        %1570 = vdwg.mxu0
        %v1571 = vld [vmem:[#allocation2 + $0xc] sm:$0xf]
        %s1572 = scalar_lea.vmem [#allocation23], 128
        %v1573 = vld [vmem:[%s1572] sm:$0xf]
        %v1574 = vld [vmem:[%s1572 + $0x4] sm:$0xf]
        %v1575 = vld [vmem:[%s1572 + $0x8] sm:$0xf]
        %v1576 = vld [vmem:[%s1572 + $0xc] sm:$0xf]
        %v1577 = vld [vmem:[%s1572 + $0x10] sm:$0xf]
        %v1578 = vld [vmem:[%s1572 + $0x14] sm:$0xf]
        %v1579 = vld [vmem:[%s1572 + $0x18] sm:$0xf]
        %v1580 = vld [vmem:[%s1572 + $0x1c] sm:$0xf]
        %v1581 = vld [vmem:[%s1572 + $0x20] sm:$0xf]
        %v1582 = vld [vmem:[%s1572 + $0x24] sm:$0xf]
        %v1583 = vld [vmem:[%s1572 + $0x28] sm:$0xf]
        %v1584 = vld [vmem:[%s1572 + $0x2c] sm:$0xf]
        %v1585 = vld [vmem:[%s1572 + $0x30] sm:$0xf]
        %v1586 = vld [vmem:[%s1572 + $0x34] sm:$0xf]
        %v1587 = vld [vmem:[%s1572 + $0x38] sm:$0xf]
        %v1588 = vld [vmem:[%s1572 + $0x3c] sm:$0xf]
        %v1590 = vunpack.c.l.b16 %v1571
        %v1591 = vpack.c.b16 %v1590, %v1428
        %v1609 = vunpack.c.l.b16 %v1573
        %v1610 = vunpack.c.l.b16 %v1574
        %v1611 = vunpack.c.l.b16 %v1575
        %v1612 = vunpack.c.l.b16 %v1576
        %v1613 = vunpack.c.l.b16 %v1577
        %v1614 = vunpack.c.l.b16 %v1578
        %v1615 = vunpack.c.l.b16 %v1579
        %v1616 = vunpack.c.l.b16 %v1580
        %v1617 = vunpack.c.l.b16 %v1581
        %v1618 = vunpack.c.l.b16 %v1582
        %v1619 = vunpack.c.l.b16 %v1583
        %v1620 = vunpack.c.l.b16 %v1584
        %v1621 = vunpack.c.l.b16 %v1585
        %v1622 = vunpack.c.l.b16 %v1586
        %v1623 = vunpack.c.l.b16 %v1587
        %v1624 = vunpack.c.l.b16 %v1588
        %v1625 = vpack.c.b16 %v1610, %v1609
        %v1626 = vpack.c.b16 %v1612, %v1611
        %v1627 = vpack.c.b16 %v1614, %v1613
        %v1628 = vpack.c.b16 %v1616, %v1615
        %v1629 = vpack.c.b16 %v1618, %v1617
        %v1630 = vpack.c.b16 %v1620, %v1619
        %v1631 = vpack.c.b16 %v1622, %v1621
        %v1632 = vpack.c.b16 %v1624, %v1623
        %1641 = vmatpush.bf16.msra.mxu0 %v1632
        %1642 = vmatpush.bf16.msra.mxu0 %v1631
        %1643 = vmatpush.bf16.msra.mxu0 %v1630
        %1644 = vmatpush.bf16.msra.mxu0 %v1629
        %1645 = vmatpush.bf16.msra.mxu0 %v1628
        %1646 = vmatpush.bf16.msra.mxu0 %v1627
        %1647 = vmatpush.bf16.msra.mxu0 %v1626
        %1648 = vmatpush.bf16.msra.mxu0 %v1625
        %1649 = vmatmul.bf16.gmra.mxu0 %v1591
        %v1650 = vpop.f32.mrf.mxu0
        %v1651 = vadd.f32 0.0, %v1650
        %v1652 = vpop.f32.mrf.mxu0
        %v1653 = vadd.f32 0.0, %v1652
        %1654 = vdwg.mxu0
        %v1655 = vadd.f32 %v1567, %v1651
        %v1656 = vadd.f32 %v1569, %v1653
        %v1657 = vperm.slane %v1367, 0
        %v1658 = vmul.f32 %v1655, %v1657
        %v1659 = vmul.f32 %v1656, %v1657
        %v1660 = vperm.slane %v1368, 0
        %v1661 = vadd.f32 %v1658, %v1660
        %v1662 = vadd.f32 %v1659, %v1660
        %v1663 = vmax.f32 %v1661, 0.0
        %v1664 = vmax.f32 %v1662, 0.0
        %v1665 = vpack.c.bf16 %v1663, %v1663
        %v1666 = vpack.c.bf16 %v1664, %v1664
        %v1667 = vld [vmem:[#allocation6] sm:$0x3]
        %s1669 = scalar_lea.vmem [#allocation1], 1
        %1670 = vst [vmem:[%s1669] ss:$2 sm:$0xff] %v1667
        %v1671 = vld.sshfl [vmem:[#allocation1] sm:$0xff pattern:$0x75643120]
        %1673 = vst [vmem:[#allocation2 + $0x4] sm:$0xc] %v1671
        %1674 = vst [vmem:[#allocation2 + $0x8] sm:$0xf] %v1665
        %1675 = vst [vmem:[#allocation2 + $0xc] sm:$0xf] %v1666
        %1677 = vst.sshfl [vmem:[#allocation1] sm:$0xff pattern:$0x75643120] %v1666
        %s1678 = scalar_lea.vmem [#allocation1], 1
        %v1679 = vld [vmem:[%s1678] ss:$2 sm:$0xff]
        %1681 = vst [vmem:[#allocation6] sm:$0x3] %v1679
        %v1682 = vld [vmem:[#allocation2 + $0x4] sm:$0xc]
        %v1683 = vld [vmem:[#allocation2 + $0x8] sm:$0xf]
        %v1684 = vld [vmem:[#allocation2 + $0xc] sm:$0x3]
        %v1685 = vld [vmem:[#allocation24] sm:$0xf]
        %v1686 = vld [vmem:[#allocation24 + $0x4] sm:$0xf]
        %v1687 = vld [vmem:[#allocation24 + $0x8] sm:$0xf]
        %v1688 = vld [vmem:[#allocation24 + $0xc] sm:$0xf]
        %v1689 = vld [vmem:[#allocation24 + $0x10] sm:$0xf]
        %v1690 = vld [vmem:[#allocation24 + $0x14] sm:$0xf]
        %v1691 = vld [vmem:[#allocation24 + $0x18] sm:$0xf]
        %v1692 = vld [vmem:[#allocation24 + $0x1c] sm:$0xf]
        %v1693 = vld [vmem:[#allocation24 + $0x20] sm:$0xf]
        %v1694 = vld [vmem:[#allocation24 + $0x24] sm:$0xf]
        %v1695 = vld [vmem:[#allocation24 + $0x28] sm:$0xf]
        %v1696 = vld [vmem:[#allocation24 + $0x2c] sm:$0xf]
        %v1697 = vld [vmem:[#allocation24 + $0x30] sm:$0xf]
        %v1698 = vld [vmem:[#allocation24 + $0x34] sm:$0xf]
        %v1699 = vld [vmem:[#allocation24 + $0x38] sm:$0xf]
        %v1700 = vld [vmem:[#allocation24 + $0x3c] sm:$0xf]
        %v1701 = vld [vmem:[#allocation2 + $0x4] sm:$0x8]
        %v1702 = vld [vmem:[#allocation2 + $0xc] sm:$0x7]
        %s1703 = scalar_lea.vmem [#allocation24], 64
        %v1704 = vld [vmem:[%s1703] sm:$0xf]
        %v1705 = vld [vmem:[%s1703 + $0x4] sm:$0xf]
        %v1706 = vld [vmem:[%s1703 + $0x8] sm:$0xf]
        %v1707 = vld [vmem:[%s1703 + $0xc] sm:$0xf]
        %v1708 = vld [vmem:[%s1703 + $0x10] sm:$0xf]
        %v1709 = vld [vmem:[%s1703 + $0x14] sm:$0xf]
        %v1710 = vld [vmem:[%s1703 + $0x18] sm:$0xf]
        %v1711 = vld [vmem:[%s1703 + $0x1c] sm:$0xf]
        %v1712 = vld [vmem:[%s1703 + $0x20] sm:$0xf]
        %v1713 = vld [vmem:[%s1703 + $0x24] sm:$0xf]
        %v1714 = vld [vmem:[%s1703 + $0x28] sm:$0xf]
        %v1715 = vld [vmem:[%s1703 + $0x2c] sm:$0xf]
        %v1716 = vld [vmem:[%s1703 + $0x30] sm:$0xf]
        %v1717 = vld [vmem:[%s1703 + $0x34] sm:$0xf]
        %v1718 = vld [vmem:[%s1703 + $0x38] sm:$0xf]
        %v1719 = vld [vmem:[%s1703 + $0x3c] sm:$0xf]
        %v1723 = vunpack.c.l.b16 %v1701
        %v1724 = vunpack.c.l.b16 %v1683
        %v1725 = vunpack.c.l.b16 %v1702
        %v1726 = vpack.c.b16 %v1724, %v1723
        %v1727 = vpack.c.b16 %v1725, %v1725
        %v1728 = vrot.slane %v1726, 3
        %v1729 = vrot.slane %v1727, 3
        %v1730 = vsel %vm813, %v1728, %v1729
        %v1748 = vunpack.c.l.b16 %v1704
        %v1749 = vunpack.c.l.b16 %v1705
        %v1750 = vunpack.c.l.b16 %v1706
        %v1751 = vunpack.c.l.b16 %v1707
        %v1752 = vunpack.c.l.b16 %v1708
        %v1753 = vunpack.c.l.b16 %v1709
        %v1754 = vunpack.c.l.b16 %v1710
        %v1755 = vunpack.c.l.b16 %v1711
        %v1756 = vunpack.c.l.b16 %v1712
        %v1757 = vunpack.c.l.b16 %v1713
        %v1758 = vunpack.c.l.b16 %v1714
        %v1759 = vunpack.c.l.b16 %v1715
        %v1760 = vunpack.c.l.b16 %v1716
        %v1761 = vunpack.c.l.b16 %v1717
        %v1762 = vunpack.c.l.b16 %v1718
        %v1763 = vunpack.c.l.b16 %v1719
        %v1764 = vpack.c.b16 %v1749, %v1748
        %v1765 = vpack.c.b16 %v1751, %v1750
        %v1766 = vpack.c.b16 %v1753, %v1752
        %v1767 = vpack.c.b16 %v1755, %v1754
        %v1768 = vpack.c.b16 %v1757, %v1756
        %v1769 = vpack.c.b16 %v1759, %v1758
        %v1770 = vpack.c.b16 %v1761, %v1760
        %v1771 = vpack.c.b16 %v1763, %v1762
        %1780 = vmatpush.bf16.msra.mxu0 %v1771
        %1781 = vmatpush.bf16.msra.mxu0 %v1770
        %1782 = vmatpush.bf16.msra.mxu0 %v1769
        %1783 = vmatpush.bf16.msra.mxu0 %v1768
        %1784 = vmatpush.bf16.msra.mxu0 %v1767
        %1785 = vmatpush.bf16.msra.mxu0 %v1766
        %1786 = vmatpush.bf16.msra.mxu0 %v1765
        %1787 = vmatpush.bf16.msra.mxu0 %v1764
        %1788 = vmatmul.bf16.gmra.mxu0 %v1730
        %v1789 = vpop.f32.mrf.mxu0
        %v1790 = vadd.f32 0.0, %v1789
        %v1791 = vpop.f32.mrf.mxu0
        %v1792 = vadd.f32 0.0, %v1791
        %1793 = vdwg.mxu0
        %v1796 = vunpack.c.l.b16 %v1682
        %v1797 = vunpack.c.l.b16 %v1684
        %v1798 = vpack.c.b16 %v1724, %v1796
        %v1799 = vpack.c.b16 %v1797, %v1797
        %v1800 = vrot.slane %v1798, 2
        %v1801 = vrot.slane %v1799, 2
        %v1802 = vsel %vm1504, %v1800, %v1801
        %v1820 = vunpack.c.l.b16 %v1685
        %v1821 = vunpack.c.l.b16 %v1686
        %v1822 = vunpack.c.l.b16 %v1687
        %v1823 = vunpack.c.l.b16 %v1688
        %v1824 = vunpack.c.l.b16 %v1689
        %v1825 = vunpack.c.l.b16 %v1690
        %v1826 = vunpack.c.l.b16 %v1691
        %v1827 = vunpack.c.l.b16 %v1692
        %v1828 = vunpack.c.l.b16 %v1693
        %v1829 = vunpack.c.l.b16 %v1694
        %v1830 = vunpack.c.l.b16 %v1695
        %v1831 = vunpack.c.l.b16 %v1696
        %v1832 = vunpack.c.l.b16 %v1697
        %v1833 = vunpack.c.l.b16 %v1698
        %v1834 = vunpack.c.l.b16 %v1699
        %v1835 = vunpack.c.l.b16 %v1700
        %v1836 = vpack.c.b16 %v1821, %v1820
        %v1837 = vpack.c.b16 %v1823, %v1822
        %v1838 = vpack.c.b16 %v1825, %v1824
        %v1839 = vpack.c.b16 %v1827, %v1826
        %v1840 = vpack.c.b16 %v1829, %v1828
        %v1841 = vpack.c.b16 %v1831, %v1830
        %v1842 = vpack.c.b16 %v1833, %v1832
        %v1843 = vpack.c.b16 %v1835, %v1834
        %1852 = vmatpush.bf16.msra.mxu0 %v1843
        %1853 = vmatpush.bf16.msra.mxu0 %v1842
        %1854 = vmatpush.bf16.msra.mxu0 %v1841
        %1855 = vmatpush.bf16.msra.mxu0 %v1840
        %1856 = vmatpush.bf16.msra.mxu0 %v1839
        %1857 = vmatpush.bf16.msra.mxu0 %v1838
        %1858 = vmatpush.bf16.msra.mxu0 %v1837
        %1859 = vmatpush.bf16.msra.mxu0 %v1836
        %1860 = vmatmul.bf16.gmra.mxu0 %v1802
        %v1861 = vpop.f32.mrf.mxu0
        %v1862 = vadd.f32 %v1790, %v1861
        %v1863 = vpop.f32.mrf.mxu0
        %v1864 = vadd.f32 %v1792, %v1863
        %1865 = vdwg.mxu0
        %v1866 = vld [vmem:[#allocation2 + $0xc] sm:$0xf]
        %s1867 = scalar_lea.vmem [#allocation24], 128
        %v1868 = vld [vmem:[%s1867] sm:$0xf]
        %v1869 = vld [vmem:[%s1867 + $0x4] sm:$0xf]
        %v1870 = vld [vmem:[%s1867 + $0x8] sm:$0xf]
        %v1871 = vld [vmem:[%s1867 + $0xc] sm:$0xf]
        %v1872 = vld [vmem:[%s1867 + $0x10] sm:$0xf]
        %v1873 = vld [vmem:[%s1867 + $0x14] sm:$0xf]
        %v1874 = vld [vmem:[%s1867 + $0x18] sm:$0xf]
        %v1875 = vld [vmem:[%s1867 + $0x1c] sm:$0xf]
        %v1876 = vld [vmem:[%s1867 + $0x20] sm:$0xf]
        %v1877 = vld [vmem:[%s1867 + $0x24] sm:$0xf]
        %v1878 = vld [vmem:[%s1867 + $0x28] sm:$0xf]
        %v1879 = vld [vmem:[%s1867 + $0x2c] sm:$0xf]
        %v1880 = vld [vmem:[%s1867 + $0x30] sm:$0xf]
        %v1881 = vld [vmem:[%s1867 + $0x34] sm:$0xf]
        %v1882 = vld [vmem:[%s1867 + $0x38] sm:$0xf]
        %v1883 = vld [vmem:[%s1867 + $0x3c] sm:$0xf]
        %v1885 = vunpack.c.l.b16 %v1866
        %v1886 = vpack.c.b16 %v1885, %v1724
        %v1904 = vunpack.c.l.b16 %v1868
        %v1905 = vunpack.c.l.b16 %v1869
        %v1906 = vunpack.c.l.b16 %v1870
        %v1907 = vunpack.c.l.b16 %v1871
        %v1908 = vunpack.c.l.b16 %v1872
        %v1909 = vunpack.c.l.b16 %v1873
        %v1910 = vunpack.c.l.b16 %v1874
        %v1911 = vunpack.c.l.b16 %v1875
        %v1912 = vunpack.c.l.b16 %v1876
        %v1913 = vunpack.c.l.b16 %v1877
        %v1914 = vunpack.c.l.b16 %v1878
        %v1915 = vunpack.c.l.b16 %v1879
        %v1916 = vunpack.c.l.b16 %v1880
        %v1917 = vunpack.c.l.b16 %v1881
        %v1918 = vunpack.c.l.b16 %v1882
        %v1919 = vunpack.c.l.b16 %v1883
        %v1920 = vpack.c.b16 %v1905, %v1904
        %v1921 = vpack.c.b16 %v1907, %v1906
        %v1922 = vpack.c.b16 %v1909, %v1908
        %v1923 = vpack.c.b16 %v1911, %v1910
        %v1924 = vpack.c.b16 %v1913, %v1912
        %v1925 = vpack.c.b16 %v1915, %v1914
        %v1926 = vpack.c.b16 %v1917, %v1916
        %v1927 = vpack.c.b16 %v1919, %v1918
        %1936 = vmatpush.bf16.msra.mxu0 %v1927
        %1937 = vmatpush.bf16.msra.mxu0 %v1926
        %1938 = vmatpush.bf16.msra.mxu0 %v1925
        %1939 = vmatpush.bf16.msra.mxu0 %v1924
        %1940 = vmatpush.bf16.msra.mxu0 %v1923
        %1941 = vmatpush.bf16.msra.mxu0 %v1922
        %1942 = vmatpush.bf16.msra.mxu0 %v1921
        %1943 = vmatpush.bf16.msra.mxu0 %v1920
        %1944 = vmatmul.bf16.gmra.mxu0 %v1886
        %v1945 = vpop.f32.mrf.mxu0
        %v1946 = vadd.f32 0.0, %v1945
        %v1947 = vpop.f32.mrf.mxu0
        %v1948 = vadd.f32 0.0, %v1947
        %1949 = vdwg.mxu0
        %v1950 = vadd.f32 %v1862, %v1946
        %v1951 = vadd.f32 %v1864, %v1948
        %v1952 = vperm.slane %v1369, 0
        %v1953 = vmul.f32 %v1950, %v1952
        %v1954 = vmul.f32 %v1951, %v1952
        %v1955 = vperm.slane %v1370, 0
        %v1956 = vadd.f32 %v1953, %v1955
        %v1957 = vadd.f32 %v1954, %v1955
        %v1958 = vmax.f32 %v1956, 0.0
        %v1959 = vmax.f32 %v1957, 0.0
        %v1960 = vunpack.c.l.bf16 %v1365
        %v1961 = vunpack.c.l.bf16 %v1366
        %v1962 = vadd.f32 %v1958, %v1960
        %v1963 = vadd.f32 %v1959, %v1961
        %v1964 = vmax.f32 %v1962, 0.0
        %v1965 = vmax.f32 %v1963, 0.0
        %v1966 = vpack.c.bf16 %v1964, %v1964
        %v1967 = vpack.c.bf16 %v1965, %v1965
        %v1968 = vld [vmem:[#allocation12 + $0x2] sm:$0x1]
        %v1969 = vld [vmem:[#allocation14 + $0x2] sm:$0x1]
        %v1970 = vld [vmem:[#allocation15 + $0x2] sm:$0x1]
        %v1971 = vld [vmem:[#allocation17 + $0x2] sm:$0x1]
        %v1972 = vld [vmem:[#allocation7] sm:$0xf]
        %1973 = vst [vmem:[#allocation2 + $0x4] sm:$0xf] %v1972
        %1974 = vst [vmem:[#allocation2 + $0x8] sm:$0xf] %v1966
        %1975 = vst [vmem:[#allocation2 + $0xc] sm:$0xf] %v1967
        %1976 = vst [vmem:[#allocation7] sm:$0xf] %v1967
        %v1977 = vld [vmem:[#allocation2 + $0x4] sm:$0xf]
        %v1978 = vld [vmem:[#allocation2 + $0x8] sm:$0xf]
        %v1979 = vld [vmem:[#allocation26] sm:$0xf]
        %v1980 = vld [vmem:[#allocation26 + $0x4] sm:$0xf]
        %v1981 = vld [vmem:[#allocation26 + $0x8] sm:$0xf]
        %v1982 = vld [vmem:[#allocation26 + $0xc] sm:$0xf]
        %v1983 = vld [vmem:[#allocation26 + $0x10] sm:$0xf]
        %v1984 = vld [vmem:[#allocation26 + $0x14] sm:$0xf]
        %v1985 = vld [vmem:[#allocation26 + $0x18] sm:$0xf]
        %v1986 = vld [vmem:[#allocation26 + $0x1c] sm:$0xf]
        %v1987 = vld [vmem:[#allocation26 + $0x20] sm:$0xf]
        %v1988 = vld [vmem:[#allocation26 + $0x24] sm:$0xf]
        %v1989 = vld [vmem:[#allocation26 + $0x28] sm:$0xf]
        %v1990 = vld [vmem:[#allocation26 + $0x2c] sm:$0xf]
        %v1991 = vld [vmem:[#allocation26 + $0x30] sm:$0xf]
        %v1992 = vld [vmem:[#allocation26 + $0x34] sm:$0xf]
        %v1993 = vld [vmem:[#allocation26 + $0x38] sm:$0xf]
        %v1994 = vld [vmem:[#allocation26 + $0x3c] sm:$0xf]
        %v1995 = vld [vmem:[#allocation2 + $0x4] sm:$0xc]
        %v1996 = vld [vmem:[#allocation2 + $0x8] sm:$0xf]
        %v1997 = vld [vmem:[#allocation2 + $0xc] sm:$0x3]
        %s1998 = scalar_lea.vmem [#allocation26], 64
        %v1999 = vld [vmem:[%s1998] sm:$0xf]
        %v2000 = vld [vmem:[%s1998 + $0x4] sm:$0xf]
        %v2001 = vld [vmem:[%s1998 + $0x8] sm:$0xf]
        %v2002 = vld [vmem:[%s1998 + $0xc] sm:$0xf]
        %v2003 = vld [vmem:[%s1998 + $0x10] sm:$0xf]
        %v2004 = vld [vmem:[%s1998 + $0x14] sm:$0xf]
        %v2005 = vld [vmem:[%s1998 + $0x18] sm:$0xf]
        %v2006 = vld [vmem:[%s1998 + $0x1c] sm:$0xf]
        %v2007 = vld [vmem:[%s1998 + $0x20] sm:$0xf]
        %v2008 = vld [vmem:[%s1998 + $0x24] sm:$0xf]
        %v2009 = vld [vmem:[%s1998 + $0x28] sm:$0xf]
        %v2010 = vld [vmem:[%s1998 + $0x2c] sm:$0xf]
        %v2011 = vld [vmem:[%s1998 + $0x30] sm:$0xf]
        %v2012 = vld [vmem:[%s1998 + $0x34] sm:$0xf]
        %v2013 = vld [vmem:[%s1998 + $0x38] sm:$0xf]
        %v2014 = vld [vmem:[%s1998 + $0x3c] sm:$0xf]
        %v2018 = vunpack.c.l.b16 %v1995
        %v2019 = vunpack.c.l.b16 %v1996
        %v2020 = vunpack.c.l.b16 %v1997
        %v2021 = vpack.c.b16 %v2019, %v2018
        %v2022 = vpack.c.b16 %v2020, %v2020
        %v2023 = vrot.slane %v2021, 2
        %v2024 = vrot.slane %v2022, 2
        %v2025 = vsel %vm1504, %v2023, %v2024
        %v2043 = vunpack.c.l.b16 %v1999
        %v2044 = vunpack.c.l.b16 %v2000
        %v2045 = vunpack.c.l.b16 %v2001
        %v2046 = vunpack.c.l.b16 %v2002
        %v2047 = vunpack.c.l.b16 %v2003
        %v2048 = vunpack.c.l.b16 %v2004
        %v2049 = vunpack.c.l.b16 %v2005
        %v2050 = vunpack.c.l.b16 %v2006
        %v2051 = vunpack.c.l.b16 %v2007
        %v2052 = vunpack.c.l.b16 %v2008
        %v2053 = vunpack.c.l.b16 %v2009
        %v2054 = vunpack.c.l.b16 %v2010
        %v2055 = vunpack.c.l.b16 %v2011
        %v2056 = vunpack.c.l.b16 %v2012
        %v2057 = vunpack.c.l.b16 %v2013
        %v2058 = vunpack.c.l.b16 %v2014
        %v2059 = vpack.c.b16 %v2044, %v2043
        %v2060 = vpack.c.b16 %v2046, %v2045
        %v2061 = vpack.c.b16 %v2048, %v2047
        %v2062 = vpack.c.b16 %v2050, %v2049
        %v2063 = vpack.c.b16 %v2052, %v2051
        %v2064 = vpack.c.b16 %v2054, %v2053
        %v2065 = vpack.c.b16 %v2056, %v2055
        %v2066 = vpack.c.b16 %v2058, %v2057
        %2075 = vmatpush.bf16.msra.mxu0 %v2066
        %2076 = vmatpush.bf16.msra.mxu0 %v2065
        %2077 = vmatpush.bf16.msra.mxu0 %v2064
        %2078 = vmatpush.bf16.msra.mxu0 %v2063
        %2079 = vmatpush.bf16.msra.mxu0 %v2062
        %2080 = vmatpush.bf16.msra.mxu0 %v2061
        %2081 = vmatpush.bf16.msra.mxu0 %v2060
        %2082 = vmatpush.bf16.msra.mxu0 %v2059
        %2083 = vmatmul.bf16.gmra.mxu0 %v2025
        %v2084 = vpop.f32.mrf.mxu0
        %v2085 = vadd.f32 0.0, %v2084
        %v2086 = vpop.f32.mrf.mxu0
        %v2087 = vadd.f32 0.0, %v2086
        %2088 = vdwg.mxu0
        %v2091 = vunpack.c.l.b16 %v1977
        %v2092 = vunpack.c.l.b16 %v1978
        %v2093 = vpack.c.b16 %v2092, %v2091
        %v2111 = vunpack.c.l.b16 %v1979
        %v2112 = vunpack.c.l.b16 %v1980
        %v2113 = vunpack.c.l.b16 %v1981
        %v2114 = vunpack.c.l.b16 %v1982
        %v2115 = vunpack.c.l.b16 %v1983
        %v2116 = vunpack.c.l.b16 %v1984
        %v2117 = vunpack.c.l.b16 %v1985
        %v2118 = vunpack.c.l.b16 %v1986
        %v2119 = vunpack.c.l.b16 %v1987
        %v2120 = vunpack.c.l.b16 %v1988
        %v2121 = vunpack.c.l.b16 %v1989
        %v2122 = vunpack.c.l.b16 %v1990
        %v2123 = vunpack.c.l.b16 %v1991
        %v2124 = vunpack.c.l.b16 %v1992
        %v2125 = vunpack.c.l.b16 %v1993
        %v2126 = vunpack.c.l.b16 %v1994
        %v2127 = vpack.c.b16 %v2112, %v2111
        %v2128 = vpack.c.b16 %v2114, %v2113
        %v2129 = vpack.c.b16 %v2116, %v2115
        %v2130 = vpack.c.b16 %v2118, %v2117
        %v2131 = vpack.c.b16 %v2120, %v2119
        %v2132 = vpack.c.b16 %v2122, %v2121
        %v2133 = vpack.c.b16 %v2124, %v2123
        %v2134 = vpack.c.b16 %v2126, %v2125
        %2143 = vmatpush.bf16.msra.mxu0 %v2134
        %2144 = vmatpush.bf16.msra.mxu0 %v2133
        %2145 = vmatpush.bf16.msra.mxu0 %v2132
        %2146 = vmatpush.bf16.msra.mxu0 %v2131
        %2147 = vmatpush.bf16.msra.mxu0 %v2130
        %2148 = vmatpush.bf16.msra.mxu0 %v2129
        %2149 = vmatpush.bf16.msra.mxu0 %v2128
        %2150 = vmatpush.bf16.msra.mxu0 %v2127
        %2151 = vmatmul.bf16.gmra.mxu0 %v2093
        %v2152 = vpop.f32.mrf.mxu0
        %v2153 = vadd.f32 %v2085, %v2152
        %v2154 = vpop.f32.mrf.mxu0
        %v2155 = vadd.f32 %v2087, %v2154
        %2156 = vdwg.mxu0
        %v2157 = vld [vmem:[#allocation2 + $0xc] sm:$0xf]
        %s2158 = scalar_lea.vmem [#allocation26], 128
        %v2159 = vld [vmem:[%s2158] sm:$0xf]
        %v2160 = vld [vmem:[%s2158 + $0x4] sm:$0xf]
        %v2161 = vld [vmem:[%s2158 + $0x8] sm:$0xf]
        %v2162 = vld [vmem:[%s2158 + $0xc] sm:$0xf]
        %v2163 = vld [vmem:[%s2158 + $0x10] sm:$0xf]
        %v2164 = vld [vmem:[%s2158 + $0x14] sm:$0xf]
        %v2165 = vld [vmem:[%s2158 + $0x18] sm:$0xf]
        %v2166 = vld [vmem:[%s2158 + $0x1c] sm:$0xf]
        %v2167 = vld [vmem:[%s2158 + $0x20] sm:$0xf]
        %v2168 = vld [vmem:[%s2158 + $0x24] sm:$0xf]
        %v2169 = vld [vmem:[%s2158 + $0x28] sm:$0xf]
        %v2170 = vld [vmem:[%s2158 + $0x2c] sm:$0xf]
        %v2171 = vld [vmem:[%s2158 + $0x30] sm:$0xf]
        %v2172 = vld [vmem:[%s2158 + $0x34] sm:$0xf]
        %v2173 = vld [vmem:[%s2158 + $0x38] sm:$0xf]
        %v2174 = vld [vmem:[%s2158 + $0x3c] sm:$0xf]
        %v2176 = vunpack.c.l.b16 %v2157
        %v2177 = vpack.c.b16 %v2176, %v2019
        %v2195 = vunpack.c.l.b16 %v2159
        %v2196 = vunpack.c.l.b16 %v2160
        %v2197 = vunpack.c.l.b16 %v2161
        %v2198 = vunpack.c.l.b16 %v2162
        %v2199 = vunpack.c.l.b16 %v2163
        %v2200 = vunpack.c.l.b16 %v2164
        %v2201 = vunpack.c.l.b16 %v2165
        %v2202 = vunpack.c.l.b16 %v2166
        %v2203 = vunpack.c.l.b16 %v2167
        %v2204 = vunpack.c.l.b16 %v2168
        %v2205 = vunpack.c.l.b16 %v2169
        %v2206 = vunpack.c.l.b16 %v2170
        %v2207 = vunpack.c.l.b16 %v2171
        %v2208 = vunpack.c.l.b16 %v2172
        %v2209 = vunpack.c.l.b16 %v2173
        %v2210 = vunpack.c.l.b16 %v2174
        %v2211 = vpack.c.b16 %v2196, %v2195
        %v2212 = vpack.c.b16 %v2198, %v2197
        %v2213 = vpack.c.b16 %v2200, %v2199
        %v2214 = vpack.c.b16 %v2202, %v2201
        %v2215 = vpack.c.b16 %v2204, %v2203
        %v2216 = vpack.c.b16 %v2206, %v2205
        %v2217 = vpack.c.b16 %v2208, %v2207
        %v2218 = vpack.c.b16 %v2210, %v2209
        %2227 = vmatpush.bf16.msra.mxu0 %v2218
        %2228 = vmatpush.bf16.msra.mxu0 %v2217
        %2229 = vmatpush.bf16.msra.mxu0 %v2216
        %2230 = vmatpush.bf16.msra.mxu0 %v2215
        %2231 = vmatpush.bf16.msra.mxu0 %v2214
        %2232 = vmatpush.bf16.msra.mxu0 %v2213
        %2233 = vmatpush.bf16.msra.mxu0 %v2212
        %2234 = vmatpush.bf16.msra.mxu0 %v2211
        %2235 = vmatmul.bf16.gmra.mxu0 %v2177
        %v2236 = vpop.f32.mrf.mxu0
        %v2237 = vadd.f32 0.0, %v2236
        %v2238 = vpop.f32.mrf.mxu0
        %v2239 = vadd.f32 0.0, %v2238
        %2240 = vdwg.mxu0
        %v2241 = vadd.f32 %v2153, %v2237
        %v2242 = vadd.f32 %v2155, %v2239
        %v2243 = vperm.slane %v1968, 0
        %v2244 = vmul.f32 %v2241, %v2243
        %v2245 = vmul.f32 %v2242, %v2243
        %v2246 = vperm.slane %v1969, 0
        %v2247 = vadd.f32 %v2244, %v2246
        %v2248 = vadd.f32 %v2245, %v2246
        %v2249 = vmax.f32 %v2247, 0.0
        %v2250 = vmax.f32 %v2248, 0.0
        %v2251 = vpack.c.bf16 %v2249, %v2249
        %v2252 = vpack.c.bf16 %v2250, %v2250
        %v2253 = vld [vmem:[#allocation8] sm:$0xf]
        %2254 = vst [vmem:[#allocation2 + $0x4] sm:$0xf] %v2253
        %2255 = vst [vmem:[#allocation2 + $0x8] sm:$0xf] %v2251
        %2256 = vst [vmem:[#allocation2 + $0xc] sm:$0xf] %v2252
        %2257 = vst [vmem:[#allocation8] sm:$0xf] %v2252
        %v2258 = vld [vmem:[#allocation2 + $0x4] sm:$0xf]
        %v2259 = vld [vmem:[#allocation2 + $0x8] sm:$0xf]
        %v2260 = vld [vmem:[#allocation27] sm:$0xf]
        %v2261 = vld [vmem:[#allocation27 + $0x4] sm:$0xf]
        %v2262 = vld [vmem:[#allocation27 + $0x8] sm:$0xf]
        %v2263 = vld [vmem:[#allocation27 + $0xc] sm:$0xf]
        %v2264 = vld [vmem:[#allocation27 + $0x10] sm:$0xf]
        %v2265 = vld [vmem:[#allocation27 + $0x14] sm:$0xf]
        %v2266 = vld [vmem:[#allocation27 + $0x18] sm:$0xf]
        %v2267 = vld [vmem:[#allocation27 + $0x1c] sm:$0xf]
        %v2268 = vld [vmem:[#allocation27 + $0x20] sm:$0xf]
        %v2269 = vld [vmem:[#allocation27 + $0x24] sm:$0xf]
        %v2270 = vld [vmem:[#allocation27 + $0x28] sm:$0xf]
        %v2271 = vld [vmem:[#allocation27 + $0x2c] sm:$0xf]
        %v2272 = vld [vmem:[#allocation27 + $0x30] sm:$0xf]
        %v2273 = vld [vmem:[#allocation27 + $0x34] sm:$0xf]
        %v2274 = vld [vmem:[#allocation27 + $0x38] sm:$0xf]
        %v2275 = vld [vmem:[#allocation27 + $0x3c] sm:$0xf]
        %v2276 = vld [vmem:[#allocation2 + $0x4] sm:$0xc]
        %v2277 = vld [vmem:[#allocation2 + $0x8] sm:$0xf]
        %v2278 = vld [vmem:[#allocation2 + $0xc] sm:$0x3]
        %s2279 = scalar_lea.vmem [#allocation27], 64
        %v2280 = vld [vmem:[%s2279] sm:$0xf]
        %v2281 = vld [vmem:[%s2279 + $0x4] sm:$0xf]
        %v2282 = vld [vmem:[%s2279 + $0x8] sm:$0xf]
        %v2283 = vld [vmem:[%s2279 + $0xc] sm:$0xf]
        %v2284 = vld [vmem:[%s2279 + $0x10] sm:$0xf]
        %v2285 = vld [vmem:[%s2279 + $0x14] sm:$0xf]
        %v2286 = vld [vmem:[%s2279 + $0x18] sm:$0xf]
        %v2287 = vld [vmem:[%s2279 + $0x1c] sm:$0xf]
        %v2288 = vld [vmem:[%s2279 + $0x20] sm:$0xf]
        %v2289 = vld [vmem:[%s2279 + $0x24] sm:$0xf]
        %v2290 = vld [vmem:[%s2279 + $0x28] sm:$0xf]
        %v2291 = vld [vmem:[%s2279 + $0x2c] sm:$0xf]
        %v2292 = vld [vmem:[%s2279 + $0x30] sm:$0xf]
        %v2293 = vld [vmem:[%s2279 + $0x34] sm:$0xf]
        %v2294 = vld [vmem:[%s2279 + $0x38] sm:$0xf]
        %v2295 = vld [vmem:[%s2279 + $0x3c] sm:$0xf]
        %v2299 = vunpack.c.l.b16 %v2276
        %v2300 = vunpack.c.l.b16 %v2277
        %v2301 = vunpack.c.l.b16 %v2278
        %v2302 = vpack.c.b16 %v2300, %v2299
        %v2303 = vpack.c.b16 %v2301, %v2301
        %v2304 = vrot.slane %v2302, 2
        %v2305 = vrot.slane %v2303, 2
        %v2306 = vsel %vm1504, %v2304, %v2305
        %v2324 = vunpack.c.l.b16 %v2280
        %v2325 = vunpack.c.l.b16 %v2281
        %v2326 = vunpack.c.l.b16 %v2282
        %v2327 = vunpack.c.l.b16 %v2283
        %v2328 = vunpack.c.l.b16 %v2284
        %v2329 = vunpack.c.l.b16 %v2285
        %v2330 = vunpack.c.l.b16 %v2286
        %v2331 = vunpack.c.l.b16 %v2287
        %v2332 = vunpack.c.l.b16 %v2288
        %v2333 = vunpack.c.l.b16 %v2289
        %v2334 = vunpack.c.l.b16 %v2290
        %v2335 = vunpack.c.l.b16 %v2291
        %v2336 = vunpack.c.l.b16 %v2292
        %v2337 = vunpack.c.l.b16 %v2293
        %v2338 = vunpack.c.l.b16 %v2294
        %v2339 = vunpack.c.l.b16 %v2295
        %v2340 = vpack.c.b16 %v2325, %v2324
        %v2341 = vpack.c.b16 %v2327, %v2326
        %v2342 = vpack.c.b16 %v2329, %v2328
        %v2343 = vpack.c.b16 %v2331, %v2330
        %v2344 = vpack.c.b16 %v2333, %v2332
        %v2345 = vpack.c.b16 %v2335, %v2334
        %v2346 = vpack.c.b16 %v2337, %v2336
        %v2347 = vpack.c.b16 %v2339, %v2338
        %2356 = vmatpush.bf16.msra.mxu0 %v2347
        %2357 = vmatpush.bf16.msra.mxu0 %v2346
        %2358 = vmatpush.bf16.msra.mxu0 %v2345
        %2359 = vmatpush.bf16.msra.mxu0 %v2344
        %2360 = vmatpush.bf16.msra.mxu0 %v2343
        %2361 = vmatpush.bf16.msra.mxu0 %v2342
        %2362 = vmatpush.bf16.msra.mxu0 %v2341
        %2363 = vmatpush.bf16.msra.mxu0 %v2340
        %2364 = vmatmul.bf16.gmra.mxu0 %v2306
        %v2365 = vpop.f32.mrf.mxu0
        %v2366 = vadd.f32 0.0, %v2365
        %v2367 = vpop.f32.mrf.mxu0
        %v2368 = vadd.f32 0.0, %v2367
        %2369 = vdwg.mxu0
        %v2372 = vunpack.c.l.b16 %v2258
        %v2373 = vunpack.c.l.b16 %v2259
        %v2374 = vpack.c.b16 %v2373, %v2372
        %v2392 = vunpack.c.l.b16 %v2260
        %v2393 = vunpack.c.l.b16 %v2261
        %v2394 = vunpack.c.l.b16 %v2262
        %v2395 = vunpack.c.l.b16 %v2263
        %v2396 = vunpack.c.l.b16 %v2264
        %v2397 = vunpack.c.l.b16 %v2265
        %v2398 = vunpack.c.l.b16 %v2266
        %v2399 = vunpack.c.l.b16 %v2267
        %v2400 = vunpack.c.l.b16 %v2268
        %v2401 = vunpack.c.l.b16 %v2269
        %v2402 = vunpack.c.l.b16 %v2270
        %v2403 = vunpack.c.l.b16 %v2271
        %v2404 = vunpack.c.l.b16 %v2272
        %v2405 = vunpack.c.l.b16 %v2273
        %v2406 = vunpack.c.l.b16 %v2274
        %v2407 = vunpack.c.l.b16 %v2275
        %v2408 = vpack.c.b16 %v2393, %v2392
        %v2409 = vpack.c.b16 %v2395, %v2394
        %v2410 = vpack.c.b16 %v2397, %v2396
        %v2411 = vpack.c.b16 %v2399, %v2398
        %v2412 = vpack.c.b16 %v2401, %v2400
        %v2413 = vpack.c.b16 %v2403, %v2402
        %v2414 = vpack.c.b16 %v2405, %v2404
        %v2415 = vpack.c.b16 %v2407, %v2406
        %2424 = vmatpush.bf16.msra.mxu0 %v2415
        %2425 = vmatpush.bf16.msra.mxu0 %v2414
        %2426 = vmatpush.bf16.msra.mxu0 %v2413
        %2427 = vmatpush.bf16.msra.mxu0 %v2412
        %2428 = vmatpush.bf16.msra.mxu0 %v2411
        %2429 = vmatpush.bf16.msra.mxu0 %v2410
        %2430 = vmatpush.bf16.msra.mxu0 %v2409
        %2431 = vmatpush.bf16.msra.mxu0 %v2408
        %2432 = vmatmul.bf16.gmra.mxu0 %v2374
        %v2433 = vpop.f32.mrf.mxu0
        %v2434 = vadd.f32 %v2366, %v2433
        %v2435 = vpop.f32.mrf.mxu0
        %v2436 = vadd.f32 %v2368, %v2435
        %2437 = vdwg.mxu0
        %v2438 = vld [vmem:[#allocation2 + $0xc] sm:$0xf]
        %s2439 = scalar_lea.vmem [#allocation27], 128
        %v2440 = vld [vmem:[%s2439] sm:$0xf]
        %v2441 = vld [vmem:[%s2439 + $0x4] sm:$0xf]
        %v2442 = vld [vmem:[%s2439 + $0x8] sm:$0xf]
        %v2443 = vld [vmem:[%s2439 + $0xc] sm:$0xf]
        %v2444 = vld [vmem:[%s2439 + $0x10] sm:$0xf]
        %v2445 = vld [vmem:[%s2439 + $0x14] sm:$0xf]
        %v2446 = vld [vmem:[%s2439 + $0x18] sm:$0xf]
        %v2447 = vld [vmem:[%s2439 + $0x1c] sm:$0xf]
        %v2448 = vld [vmem:[%s2439 + $0x20] sm:$0xf]
        %v2449 = vld [vmem:[%s2439 + $0x24] sm:$0xf]
        %v2450 = vld [vmem:[%s2439 + $0x28] sm:$0xf]
        %v2451 = vld [vmem:[%s2439 + $0x2c] sm:$0xf]
        %v2452 = vld [vmem:[%s2439 + $0x30] sm:$0xf]
        %v2453 = vld [vmem:[%s2439 + $0x34] sm:$0xf]
        %v2454 = vld [vmem:[%s2439 + $0x38] sm:$0xf]
        %v2455 = vld [vmem:[%s2439 + $0x3c] sm:$0xf]
        %v2457 = vunpack.c.l.b16 %v2438
        %v2458 = vpack.c.b16 %v2457, %v2300
        %v2476 = vunpack.c.l.b16 %v2440
        %v2477 = vunpack.c.l.b16 %v2441
        %v2478 = vunpack.c.l.b16 %v2442
        %v2479 = vunpack.c.l.b16 %v2443
        %v2480 = vunpack.c.l.b16 %v2444
        %v2481 = vunpack.c.l.b16 %v2445
        %v2482 = vunpack.c.l.b16 %v2446
        %v2483 = vunpack.c.l.b16 %v2447
        %v2484 = vunpack.c.l.b16 %v2448
        %v2485 = vunpack.c.l.b16 %v2449
        %v2486 = vunpack.c.l.b16 %v2450
        %v2487 = vunpack.c.l.b16 %v2451
        %v2488 = vunpack.c.l.b16 %v2452
        %v2489 = vunpack.c.l.b16 %v2453
        %v2490 = vunpack.c.l.b16 %v2454
        %v2491 = vunpack.c.l.b16 %v2455
        %v2492 = vpack.c.b16 %v2477, %v2476
        %v2493 = vpack.c.b16 %v2479, %v2478
        %v2494 = vpack.c.b16 %v2481, %v2480
        %v2495 = vpack.c.b16 %v2483, %v2482
        %v2496 = vpack.c.b16 %v2485, %v2484
        %v2497 = vpack.c.b16 %v2487, %v2486
        %v2498 = vpack.c.b16 %v2489, %v2488
        %v2499 = vpack.c.b16 %v2491, %v2490
        %2508 = vmatpush.bf16.msra.mxu0 %v2499
        %2509 = vmatpush.bf16.msra.mxu0 %v2498
        %2510 = vmatpush.bf16.msra.mxu0 %v2497
        %2511 = vmatpush.bf16.msra.mxu0 %v2496
        %2512 = vmatpush.bf16.msra.mxu0 %v2495
        %2513 = vmatpush.bf16.msra.mxu0 %v2494
        %2514 = vmatpush.bf16.msra.mxu0 %v2493
        %2515 = vmatpush.bf16.msra.mxu0 %v2492
        %2516 = vmatmul.bf16.gmra.mxu0 %v2458
        %v2517 = vpop.f32.mrf.mxu0
        %v2518 = vadd.f32 0.0, %v2517
        %v2519 = vpop.f32.mrf.mxu0
        %v2520 = vadd.f32 0.0, %v2519
        %2521 = vdwg.mxu0
        %v2522 = vadd.f32 %v2434, %v2518
        %v2523 = vadd.f32 %v2436, %v2520
        %v2524 = vperm.slane %v1970, 0
        %v2525 = vmul.f32 %v2522, %v2524
        %v2526 = vmul.f32 %v2523, %v2524
        %v2527 = vperm.slane %v1971, 0
        %v2528 = vadd.f32 %v2525, %v2527
        %v2529 = vadd.f32 %v2526, %v2527
        %v2530 = vmax.f32 %v2528, 0.0
        %v2531 = vmax.f32 %v2529, 0.0
        %v2532 = vunpack.c.l.bf16 %v1966
        %v2533 = vunpack.c.l.bf16 %v1967
        %v2534 = vadd.f32 %v2530, %v2532
        %v2535 = vadd.f32 %v2531, %v2533
        %v2536 = vmax.f32 %v2534, 0.0
        %v2537 = vmax.f32 %v2535, 0.0
        %s2538 = smul.u32 %s41, 16
        %s2539 = ssub.s32 24, %s2538
        %p2540 = scmp.lt.s32.totalorder %s2539, 16
        %s2541 = scalar_select %p2540, %s2539, 16
        %v2542 = vlaneseq
        %v2543 = vshrl.u32 %v2542, 7
        %v2544 = vadd.s32 %v2543, 8
        %v2545 = vstv %s2541
        %vm2546 = vcmp.lt.s32.totalorder %v2543, %v2545
        %vm2547 = vcmp.lt.s32.totalorder %v2544, %v2545
        %v2548 = vsel %vm2546, %v2536, 0.0
        %v2549 = vsel %vm2547, %v2537, 0.0
        %v2550 = vld [vmem:[%s649] sm:$0x1]
        %v2551 = vadd.f32 %v2548, %v2549
        %v2552 = vrot.slane %v2551, 4
        %v2553 = vadd.f32 %v2551, %v2552
        %v2554 = vrot.slane %v2553, 2
        %v2555 = vadd.f32 %v2553, %v2554
        %v2556 = vrot.slane %v2555, 1
        %v2557 = vadd.f32 %v2555, %v2556
        %v2558 = vadd.f32 %v2550, %v2557
        %2559 = vst [vmem:[%s649] sm:$0x1] %v2558
        %p2560 = scmp.eq.s32.totalorder %s41, 1
        // Predicated region
        $region125: #{tpu_custom_call.1} parent=71 // pred_check
          %p2561 = pneg %p2560
        $region126: #{tpu_custom_call.1} parent=71 // pred_check_branch
          %2563 = sbr.rel (%p2561) target = $region128
        $region127: #{tpu_custom_call.1} parent=71 // pred_region
          %v2564 = vld [vmem:[%s649] sm:$0x1]
          %v2565 = vmul.f32 %v2564, 0.041666668
          %2566 = vst [vmem:[%s649] sm:$0x1] %v2565
        $region128: #{tpu_custom_call.1} parent=71 // pred_fallthru
          _
        %s2567 = sand.u32 %s336, 1
        %s2568 = scalar_lea.sflag [#allocation11], %s2567
        %s2569 = sand.u32 %s336, 1
        %s2570 = scalar_lea.vmem [#allocation29], %s2569
        // Predicated region
        $region129: #{tpu_custom_call.1} parent=71 // pred_check
          %p2571 = pneg %p346
        $region130: #{tpu_custom_call.1} parent=71 // pred_check_branch
          %2573 = sbr.rel (%p2571) target = $region132
        $region131: #{tpu_custom_call.1} parent=71 // pred_region
          %2575 = vsyncadd %s2568, 0
          %s2576 = scalar_lea.hbm %s13, %s40
          %s2578 = sshll.u32 %s2570, 4
          %s2579 = int_to_ptr.vmem [resolvable:$true] %s2578
          %s2580 = sshll.u32 %s2576, 4
          %s2581 = int_to_ptr.hbm [resolvable:$true] %s2580
          %2583 = dma.vmem_to_hbm [thread:$0]  %s2579, 16, %s2581, %s2568
        $region132: #{tpu_custom_call.1} parent=71 // pred_fallthru
          _
      $region72: #{tpu_custom_call.1} parent=5 // pred_fallthru
        _
      %p2584 = scmp.le.s32.totalorder 2, %s31
      // Predicated region
      $region133: #{tpu_custom_call.1} parent=5 // pred_check
        %p2585 = pneg %p2584
      $region134: #{tpu_custom_call.1} parent=5 // pred_check_branch
        %2587 = sbr.rel (%p2585) target = $region136
      $region135: #{tpu_custom_call.1} parent=5 // pred_region
        %s2588 = ssub.s32 %s31, 2
        // Predicated region
        $region137: #{tpu_custom_call.1} parent=135 // pred_check
          %p2589 = pneg %p352
        $region138: #{tpu_custom_call.1} parent=135 // pred_check_branch
          %2591 = sbr.rel (%p2589) target = $region140
        $region139: #{tpu_custom_call.1} parent=135 // pred_region
          %s2592 = sand.u32 %s337, 1
          %s2593 = scalar_lea.sflag [#allocation11], %s2592
          %s2594 = sand.u32 %s337, 1
          %s2595 = scalar_lea.vmem [#allocation29], %s2594
          %2597 = dma.done %s2593, 16
        $region140: #{tpu_custom_call.1} parent=135 // pred_fallthru
          _
      $region136: #{tpu_custom_call.1} parent=5 // pred_fallthru
        _
    $region6: #{tpu_custom_call.1} parent=1 // loop_footer
      %s35 = sadd.s32 1, %s31
    $region7: #{tpu_custom_call.1} parent=1 // loop_footer_branch
      %30 = sbr.rel target = $region3
    $region8: #{tpu_custom_call.1} parent=1 // loop_exit
      _
    %2598 = vsyncpa [#allocation10], 1
    %s2599 = scalar_lea.sflag [#allocation10], 1
    %2600 = vsyncpa %s2599, 1
    %2601 = vsyncpa [#allocation13], 1
    %2602 = vsyncpa [#allocation16], 1
    %2603 = vsyncpa [#allocation19], 1
    %2604 = vsyncpa [#allocation22], 1
    %2605 = vsyncpa [#allocation25], 1
    %2606 = vsyncpa [#allocation28], 1
    %2607 = vsyncpa [#allocation11], 1
    %s2608 = scalar_lea.sflag [#allocation11], 1
    %2609 = vsyncpa %s2608, 1

</llo_original>
